<compile_context>
chip_gen: v6e
topology: v6e:2x2x1
jax: 0.10.0
libtpu: 0.0.40
codegen_flags: <defaults>
</compile_context>

<pallas_src>
import numpy as np
import jax
import jax.numpy as jnp
from jax import lax
from jax.experimental import pallas as pl
from jax.experimental.pallas import tpu as pltpu

# ----------------------------- model config ---------------------------------
D_MODEL = 256
D_INNER = 512
N_HEAD = 4
D_K = D_V = 64
LN_EPS = 1e-5                      # torch nn.LayerNorm default

FF_CHUNK = 256                     # lane-aligned chunk of the d_inner axis
VMEM_LIMIT = 32 * 1024 * 1024      # safe on v5e/v6e/v7x


def _layer_norm(y, gamma, beta, eps):
    mu = jnp.mean(y, axis=-1, keepdims=True)
    var = jnp.mean(jnp.square(y - mu), axis=-1, keepdims=True)
    return (y - mu) * lax.rsqrt(var + eps) * gamma + beta


# ----------------------- fully fused EncodeLayer kernel ----------------------

def _encode_layer_kernel(x_ref, w_qkv_ref, b_qkv_ref, w_fc_ref, b_fc_ref,
                         g1_ref, be1_ref, w1_ref, b1_ref, w2_ref, b2_ref,
                         g2_ref, be2_ref,
                         o_ref, attn_ref, qkv_scr):
    L = x_ref.shape[0]                       # sequence length of this batch
    x_f32 = x_ref[...]                       # (L, D) f32 residual
    x_bf = x_f32.astype(jnp.bfloat16)

    # ---- fused QKV projection (scale 1/sqrt(d_k) pre-folded into q weights) ----
    # computed in 256-wide lane-aligned sections -> bf16 VMEM scratch
    HK = N_HEAD * D_K
    HV = N_HEAD * D_V
    for off, width in ((0, HK), (HK, HK), (2 * HK, HV)):
        sec = jnp.dot(x_bf, w_qkv_ref[:, off:off + width],
                      preferred_element_type=jnp.float32)
        qkv_scr[:, off:off + width] = (sec + b_qkv_ref[:, off:off + width]
                                       ).astype(jnp.bfloat16)

    # ---- per-head scaled-dot-product attention; head-merge fused into fc ----
    fc_acc = jnp.zeros((L, D_MODEL), jnp.float32)
    for h in range(N_HEAD):
        q = qkv_scr[:, h * D_K:(h + 1) * D_K]                     # (L, d_k) bf16
        k = qkv_scr[:, HK + h * D_K: HK + (h + 1) * D_K]          # (L, d_k) bf16
        v = qkv_scr[:, 2 * HK + h * D_V: 2 * HK + (h + 1) * D_V]  # (L, d_v) bf16

        # s = q @ k^T — contract the lane dims directly (no transpose pass)
        s = lax.dot_general(q, k, (((1,), (1,)), ((), ())),
                            preferred_element_type=jnp.float32)   # (L, L) f32
        s = s - jnp.max(s, axis=-1, keepdims=True)
        p = jnp.exp(s)
        p = p * pl.reciprocal(jnp.sum(p, axis=-1, keepdims=True), approx=True)
        attn_ref[h, :, :] = p                 # attention probabilities output

        # TODO(synk): attention dropout runs as identity (eval mode).
        out_h = jnp.dot(p.astype(jnp.bfloat16), v,
                        preferred_element_type=jnp.float32)       # (L, d_v)
        # head-merge is fused into the fc projection: out[:, h*dv:] @ w_fc[h*dv:, :]
        fc_acc = fc_acc + jnp.dot(out_h.astype(jnp.bfloat16),
                                  w_fc_ref[h * D_V:(h + 1) * D_V, :],
                                  preferred_element_type=jnp.float32)

    # ---- fc bias + (dropout=identity) + residual + LayerNorm ----
    enc1 = _layer_norm(fc_acc + b_fc_ref[...] + x_f32,
                       g1_ref[...], be1_ref[...], LN_EPS)          # (L, D) f32

    # ---- PositionwiseFeedForward (Conv1d k=1 == pointwise linear) ----
    # chunked over d_inner so the (L, d_inner) hidden never fully materializes
    enc1_bf = enc1.astype(jnp.bfloat16)
    y2 = enc1 + b2_ref[...]                   # residual + w2 bias
    for t in range(D_INNER // FF_CHUNK):
        lo = t * FF_CHUNK
        h_t = jnp.dot(enc1_bf, w1_ref[:, lo:lo + FF_CHUNK],
                      preferred_element_type=jnp.float32) + b1_ref[:, lo:lo + FF_CHUNK]
        h_t = jnp.maximum(h_t, 0.0).astype(jnp.bfloat16)          # ReLU
        # TODO(synk): FFN dropout runs as identity (eval mode).
        y2 = y2 + jnp.dot(h_t, w2_ref[lo:lo + FF_CHUNK, :],
                          preferred_element_type=jnp.float32)

    o_ref[...] = _layer_norm(y2, g2_ref[...], be2_ref[...], LN_EPS)


# ------------------------------ parameters -----------------------------------

def build_params(key):
    keys = jax.random.split(key, 6)

    def w_init(kk, din, dout, std):
        # stored pre-transposed (in, out); cast to bf16 below (MXU-native)
        return jax.random.normal(kk, (din, dout), jnp.float32) * std

    def vec(n):
        return jnp.zeros((1, n), jnp.float32)

    std_qk = float(np.sqrt(2.0 / (D_MODEL + D_K)))
    std_v = float(np.sqrt(2.0 / (D_MODEL + D_V)))
    inv_temp = 1.0 / float(np.power(D_K, 0.5))

    # 1/temperature folded into the q weights (and would be folded into the
    # q bias if it were nonzero) — mathematically identical, zero runtime cost.
    w_q = w_init(keys[0], D_MODEL, N_HEAD * D_K, std_qk) * inv_temp
    w_k = w_init(keys[1], D_MODEL, N_HEAD * D_K, std_qk)
    w_v = w_init(keys[2], D_MODEL, N_HEAD * D_V, std_v)

    return dict(
        # fused QKV projection weight: (D_MODEL, 3*N_HEAD*D_K), bf16
        w_qkv=jnp.concatenate([w_q, w_k, w_v], axis=1).astype(jnp.bfloat16),
        b_qkv=vec(N_HEAD * (2 * D_K + D_V)),
        # fc: xavier-normal
        w_fc=w_init(keys[3], N_HEAD * D_V, D_MODEL,
                    float(np.sqrt(2.0 / (N_HEAD * D_V + D_MODEL)))).astype(jnp.bfloat16),
        b_fc=vec(D_MODEL),
        ln_attn_g=jnp.ones((1, D_MODEL), jnp.float32),
        ln_attn_b=vec(D_MODEL),
        w1=w_init(keys[4], D_MODEL, D_INNER,
                  float(np.sqrt(2.0 / D_MODEL))).astype(jnp.bfloat16),
        b1=vec(D_INNER),
        w2=w_init(keys[5], D_INNER, D_MODEL,
                  float(np.sqrt(2.0 / D_INNER))).astype(jnp.bfloat16),
        b2=vec(D_MODEL),
        ln_ffn_g=jnp.ones((1, D_MODEL), jnp.float32),
        ln_ffn_b=vec(D_MODEL),
    )


# ----------------------------- forward pass -----------------------------------

def encode_layer(params, enc_input):
    """EncodeLayer.forward(enc_input, mask=None) -> (enc_output, enc_attention)."""
    B, L, D = enc_input.shape
    assert D == D_MODEL and L % 8 == 0
    x2d = enc_input.reshape(B * L, D)
    HQKV = 3 * N_HEAD * D_K

    const = lambda b: (0, 0)                      # weights: fetched once

    out, attn = pl.pallas_call(
        _encode_layer_kernel,
        out_shape=(jax.ShapeDtypeStruct((B * L, D_MODEL), jnp.float32),
                   jax.ShapeDtypeStruct((N_HEAD, B, L, L), jnp.float32)),
        grid_spec=pltpu.PrefetchScalarGridSpec(
            num_scalar_prefetch=0,
            grid=(B,),
            in_specs=[
                pl.BlockSpec((L, D_MODEL), lambda b: (b, 0)),         # x (per batch)
                pl.BlockSpec((D_MODEL, HQKV), const),                 # w_qkv
                pl.BlockSpec((1, HQKV), const),                       # b_qkv
                pl.BlockSpec((N_HEAD * D_V, D_MODEL), const),         # w_fc
                pl.BlockSpec((1, D_MODEL), const),                    # b_fc
                pl.BlockSpec((1, D_MODEL), const),                    # ln1 gamma
                pl.BlockSpec((1, D_MODEL), const),                    # ln1 beta
                pl.BlockSpec((D_MODEL, D_INNER), const),              # w1
                pl.BlockSpec((1, D_INNER), const),                    # b1
                pl.BlockSpec((D_INNER, D_MODEL), const),              # w2
                pl.BlockSpec((1, D_MODEL), const),                    # b2
                pl.BlockSpec((1, D_MODEL), const),                    # ln2 gamma
                pl.BlockSpec((1, D_MODEL), const),                    # ln2 beta
            ],
            out_specs=(
                pl.BlockSpec((L, D_MODEL), lambda b: (b, 0)),         # enc output
                pl.BlockSpec((N_HEAD, None, L, L),
                             lambda b: (0, b, 0, 0)),                 # attn probs
            ),
            scratch_shapes=[pltpu.VMEM((L, HQKV), jnp.bfloat16)]),    # qkv staging
        compiler_params=pltpu.CompilerParams(
            dimension_semantics=("parallel",),
            vmem_limit_bytes=VMEM_LIMIT),
    )(x2d,
      params['w_qkv'], params['b_qkv'],
      params['w_fc'], params['b_fc'],
      params['ln_attn_g'], params['ln_attn_b'],
      params['w1'], params['b1'],
      params['w2'], params['b2'],
      params['ln_ffn_g'], params['ln_ffn_b'])

    # (H, B, L, L) -> (H*B, L, L) matches torch's head-major attn layout (free).
    return out.reshape(B, L, D_MODEL), attn.reshape(N_HEAD * B, L, L)


# --------------------------------- main ---------------------------------------

if __name__ == "__main__":
    B, L = 2, 64
    key = jax.random.PRNGKey(0)
    k_in, k_par = jax.random.split(key)
    enc_input = jax.random.normal(k_in, (B, L, D_MODEL), jnp.float32)
    params = build_params(k_par)

    fwd = jax.jit(encode_layer)
    enc_out, attn = fwd(params, enc_input)
    jax.block_until_ready((enc_out, attn))

    assert enc_out.shape == (B, L, D_MODEL)
    assert attn.shape == (N_HEAD * B, L, L)
    assert bool(jnp.isfinite(enc_out).all())
    assert bool(jnp.isfinite(attn).all())
    # structural sanity: softmax rows sum to ~1; final LayerNorm rows ~N(0,1).
    assert bool(jnp.all(jnp.abs(jnp.sum(attn, axis=-1) - 1.0) < 1e-2))
    assert bool(jnp.all(jnp.abs(jnp.mean(enc_out, axis=-1)) < 1e-2))
    assert bool(jnp.all(jnp.abs(jnp.std(enc_out, axis=-1) - 1.0) < 5e-2))
    print("KERNEL_OK")
</pallas_src>

<mosaic_0001>
module attributes {stable_mosaic.version = 11 : i64} {
  func.func @_encode_layer_kernel(%arg0: i32, %arg1: memref<64x256xf32, #tpu.memory_space<vmem>>, %arg2: memref<256x768xbf16, #tpu.memory_space<vmem>>, %arg3: memref<1x768xf32, #tpu.memory_space<vmem>>, %arg4: memref<256x256xbf16, #tpu.memory_space<vmem>>, %arg5: memref<1x256xf32, #tpu.memory_space<vmem>>, %arg6: memref<1x256xf32, #tpu.memory_space<vmem>>, %arg7: memref<1x256xf32, #tpu.memory_space<vmem>>, %arg8: memref<256x512xbf16, #tpu.memory_space<vmem>>, %arg9: memref<1x512xf32, #tpu.memory_space<vmem>>, %arg10: memref<512x256xbf16, #tpu.memory_space<vmem>>, %arg11: memref<1x256xf32, #tpu.memory_space<vmem>>, %arg12: memref<1x256xf32, #tpu.memory_space<vmem>>, %arg13: memref<1x256xf32, #tpu.memory_space<vmem>>, %arg14: memref<64x256xf32, #tpu.memory_space<vmem>>, %arg15: memref<4x1x64x64xf32, #tpu.memory_space<vmem>>, %arg16: memref<64x768xbf16, #tpu.memory_space<vmem>>) attributes {dimension_semantics = [#tpu.dimension_semantics<parallel>], iteration_bounds = array<i64: 2>, scalar_prefetch = 0 : i64, scratch_operands = 1 : i64, tpu.core_type = #tpu.core_type<tc>, window_params = [{transform_indices = @transform_0, window_bounds = array<i64: 64, 256>}, {pipeline_mode = #tpu.pipeline_mode<synchronous>, transform_indices = @transform_1, window_bounds = array<i64: 256, 768>}, {pipeline_mode = #tpu.pipeline_mode<synchronous>, transform_indices = @transform_2, window_bounds = array<i64: 1, 768>}, {pipeline_mode = #tpu.pipeline_mode<synchronous>, transform_indices = @transform_3, window_bounds = array<i64: 256, 256>}, {pipeline_mode = #tpu.pipeline_mode<synchronous>, transform_indices = @transform_4, window_bounds = array<i64: 1, 256>}, {pipeline_mode = #tpu.pipeline_mode<synchronous>, transform_indices = @transform_5, window_bounds = array<i64: 1, 256>}, {pipeline_mode = #tpu.pipeline_mode<synchronous>, transform_indices = @transform_6, window_bounds = array<i64: 1, 256>}, {pipeline_mode = #tpu.pipeline_mode<synchronous>, transform_indices = @transform_7, window_bounds = array<i64: 256, 512>}, {pipeline_mode = #tpu.pipeline_mode<synchronous>, transform_indices = @transform_8, window_bounds = array<i64: 1, 512>}, {pipeline_mode = #tpu.pipeline_mode<synchronous>, transform_indices = @transform_9, window_bounds = array<i64: 512, 256>}, {pipeline_mode = #tpu.pipeline_mode<synchronous>, transform_indices = @transform_10, window_bounds = array<i64: 1, 256>}, {pipeline_mode = #tpu.pipeline_mode<synchronous>, transform_indices = @transform_11, window_bounds = array<i64: 1, 256>}, {pipeline_mode = #tpu.pipeline_mode<synchronous>, transform_indices = @transform_12, window_bounds = array<i64: 1, 256>}, {transform_indices = @transform_13, window_bounds = array<i64: 64, 256>}, {transform_indices = @transform_14, window_bounds = array<i64: 4, 1, 64, 64>}]} {
    %c0 = arith.constant 0 : index
    %c0_0 = arith.constant 0 : index
    %0 = vector.load %arg1[%c0, %c0_0] : memref<64x256xf32, #tpu.memory_space<vmem>>, vector<64x256xf32>
    %1 = arith.truncf %0 : vector<64x256xf32> to vector<64x256xbf16>
    %c0_1 = arith.constant 0 : index
    %c0_2 = arith.constant 0 : index
    %2 = vector.load %arg2[%c0_1, %c0_2] : memref<256x768xbf16, #tpu.memory_space<vmem>>, vector<256x256xbf16>
    %cst = arith.constant dense<0.000000e+00> : vector<64x256xf32>
    %3 = tpu.matmul %1, %2, %cst {dimension_numbers = #tpu.dot_dimension_numbers<[1], [0], [0], [1], [0, 0, 1, 1], [], []>} : vector<64x256xbf16>, vector<256x256xbf16>, vector<64x256xf32> -> vector<64x256xf32>
    %c0_3 = arith.constant 0 : index
    %c0_4 = arith.constant 0 : index
    %4 = vector.load %arg3[%c0_3, %c0_4] : memref<1x768xf32, #tpu.memory_space<vmem>>, vector<1x256xf32>
    %5 = vector.broadcast %4 : vector<1x256xf32> to vector<64x256xf32>
    %6 = arith.addf %3, %5 : vector<64x256xf32>
    %7 = arith.truncf %6 : vector<64x256xf32> to vector<64x256xbf16>
    %c0_5 = arith.constant 0 : index
    %c0_6 = arith.constant 0 : index
    %8 = vector.load %arg16[%c0_5, %c0_6] : memref<64x768xbf16, #tpu.memory_space<vmem>>, vector<64x256xbf16>
    tpu.vector_store %arg16[%c0_5, %c0_6], %7 {strides = array<i32>} : memref<64x768xbf16, #tpu.memory_space<vmem>>, vector<64x256xbf16>,
    %c0_7 = arith.constant 0 : index
    %c256 = arith.constant 256 : index
    %9 = vector.load %arg2[%c0_7, %c256] : memref<256x768xbf16, #tpu.memory_space<vmem>>, vector<256x256xbf16>
    %cst_8 = arith.constant dense<0.000000e+00> : vector<64x256xf32>
    %10 = tpu.matmul %1, %9, %cst_8 {dimension_numbers = #tpu.dot_dimension_numbers<[1], [0], [0], [1], [0, 0, 1, 1], [], []>} : vector<64x256xbf16>, vector<256x256xbf16>, vector<64x256xf32> -> vector<64x256xf32>
    %c0_9 = arith.constant 0 : index
    %c256_10 = arith.constant 256 : index
    %11 = vector.load %arg3[%c0_9, %c256_10] : memref<1x768xf32, #tpu.memory_space<vmem>>, vector<1x256xf32>
    %12 = vector.broadcast %11 : vector<1x256xf32> to vector<64x256xf32>
    %13 = arith.addf %10, %12 : vector<64x256xf32>
    %14 = arith.truncf %13 : vector<64x256xf32> to vector<64x256xbf16>
    %c0_11 = arith.constant 0 : index
    %c256_12 = arith.constant 256 : index
    %15 = vector.load %arg16[%c0_11, %c256_12] : memref<64x768xbf16, #tpu.memory_space<vmem>>, vector<64x256xbf16>
    tpu.vector_store %arg16[%c0_11, %c256_12], %14 {strides = array<i32>} : memref<64x768xbf16, #tpu.memory_space<vmem>>, vector<64x256xbf16>,
    %c0_13 = arith.constant 0 : index
    %c512 = arith.constant 512 : index
    %16 = vector.load %arg2[%c0_13, %c512] : memref<256x768xbf16, #tpu.memory_space<vmem>>, vector<256x256xbf16>
    %cst_14 = arith.constant dense<0.000000e+00> : vector<64x256xf32>
    %17 = tpu.matmul %1, %16, %cst_14 {dimension_numbers = #tpu.dot_dimension_numbers<[1], [0], [0], [1], [0, 0, 1, 1], [], []>} : vector<64x256xbf16>, vector<256x256xbf16>, vector<64x256xf32> -> vector<64x256xf32>
    %c0_15 = arith.constant 0 : index
    %c512_16 = arith.constant 512 : index
    %18 = vector.load %arg3[%c0_15, %c512_16] : memref<1x768xf32, #tpu.memory_space<vmem>>, vector<1x256xf32>
    %19 = vector.broadcast %18 : vector<1x256xf32> to vector<64x256xf32>
    %20 = arith.addf %17, %19 : vector<64x256xf32>
    %21 = arith.truncf %20 : vector<64x256xf32> to vector<64x256xbf16>
    %c0_17 = arith.constant 0 : index
    %c512_18 = arith.constant 512 : index
    %22 = vector.load %arg16[%c0_17, %c512_18] : memref<64x768xbf16, #tpu.memory_space<vmem>>, vector<64x256xbf16>
    tpu.vector_store %arg16[%c0_17, %c512_18], %21 {strides = array<i32>} : memref<64x768xbf16, #tpu.memory_space<vmem>>, vector<64x256xbf16>,
    %cst_19 = arith.constant 0.000000e+00 : f32
    %23 = vector.broadcast %cst_19 : f32 to vector<64x256xf32>
    %c0_20 = arith.constant 0 : index
    %c0_21 = arith.constant 0 : index
    %24 = vector.load %arg16[%c0_20, %c0_21] : memref<64x768xbf16, #tpu.memory_space<vmem>>, vector<64x64xbf16>
    %c0_22 = arith.constant 0 : index
    %c256_23 = arith.constant 256 : index
    %25 = vector.load %arg16[%c0_22, %c256_23] : memref<64x768xbf16, #tpu.memory_space<vmem>>, vector<64x64xbf16>
    %c0_24 = arith.constant 0 : index
    %c512_25 = arith.constant 512 : index
    %26 = vector.load %arg16[%c0_24, %c512_25] : memref<64x768xbf16, #tpu.memory_space<vmem>>, vector<64x64xbf16>
    %cst_26 = arith.constant dense<0.000000e+00> : vector<64x64xf32>
    %27 = tpu.matmul %24, %25, %cst_26 {dimension_numbers = #tpu.dot_dimension_numbers<[1], [1], [0], [0], [0, 0, 1, 0], [], []>} : vector<64x64xbf16>, vector<64x64xbf16>, vector<64x64xf32> -> vector<64x64xf32>
    %cst_27 = arith.constant dense<0xFF800000> : vector<64xf32>
    %28 = vector.multi_reduction <maximumf>, %27, %cst_27 [1] : vector<64x64xf32> to vector<64xf32>
    %29 = vector.shape_cast %28 : vector<64xf32> to vector<64x1xf32>
    %30 = vector.broadcast %29 : vector<64x1xf32> to vector<64x64xf32>
    %31 = arith.subf %27, %30 : vector<64x64xf32>
    %32 = math.exp %31 : vector<64x64xf32>
    %cst_28 = arith.constant dense<0.000000e+00> : vector<64xf32>
    %33 = vector.multi_reduction <add>, %32, %cst_28 [1] : vector<64x64xf32> to vector<64xf32>
    %34 = vector.shape_cast %33 : vector<64xf32> to vector<64x1xf32>
    %35 = tpu.reciprocal %34 {approx = true} : vector<64x1xf32> -> vector<64x1xf32>
    %36 = vector.broadcast %35 : vector<64x1xf32> to vector<64x64xf32>
    %37 = arith.mulf %32, %36 : vector<64x64xf32>
    %c0_29 = arith.constant 0 : index
    %c0_30 = arith.constant 0 : index
    %c0_31 = arith.constant 0 : index
    %c0_32 = arith.constant 0 : index
    %38 = vector.load %arg15[%c0_29, %c0_30, %c0_31, %c0_32] : memref<4x1x64x64xf32, #tpu.memory_space<vmem>>, vector<1x1x64x64xf32>
    %39 = vector.shape_cast %38 : vector<1x1x64x64xf32> to vector<64x64xf32>
    %40 = vector.shape_cast %37 : vector<64x64xf32> to vector<1x1x64x64xf32>
    tpu.vector_store %arg15[%c0_29, %c0_30, %c0_31, %c0_32], %40 {strides = array<i32>} : memref<4x1x64x64xf32, #tpu.memory_space<vmem>>, vector<1x1x64x64xf32>,
    %41 = arith.truncf %37 : vector<64x64xf32> to vector<64x64xbf16>
    %cst_33 = arith.constant dense<0.000000e+00> : vector<64x64xf32>
    %42 = tpu.matmul %41, %26, %cst_33 {dimension_numbers = #tpu.dot_dimension_numbers<[1], [0], [0], [1], [0, 0, 1, 1], [], []>} : vector<64x64xbf16>, vector<64x64xbf16>, vector<64x64xf32> -> vector<64x64xf32>
    %43 = arith.truncf %42 : vector<64x64xf32> to vector<64x64xbf16>
    %c0_34 = arith.constant 0 : index
    %c0_35 = arith.constant 0 : index
    %44 = vector.load %arg4[%c0_34, %c0_35] : memref<256x256xbf16, #tpu.memory_space<vmem>>, vector<64x256xbf16>
    %cst_36 = arith.constant dense<0.000000e+00> : vector<64x256xf32>
    %45 = tpu.matmul %43, %44, %cst_36 {dimension_numbers = #tpu.dot_dimension_numbers<[1], [0], [0], [1], [0, 0, 1, 1], [], []>} : vector<64x64xbf16>, vector<64x256xbf16>, vector<64x256xf32> -> vector<64x256xf32>
    %46 = arith.addf %23, %45 : vector<64x256xf32>
    %c0_37 = arith.constant 0 : index
    %c64 = arith.constant 64 : index
    %47 = vector.load %arg16[%c0_37, %c64] : memref<64x768xbf16, #tpu.memory_space<vmem>>, vector<64x64xbf16>
    %c0_38 = arith.constant 0 : index
    %c320 = arith.constant 320 : index
    %48 = vector.load %arg16[%c0_38, %c320] : memref<64x768xbf16, #tpu.memory_space<vmem>>, vector<64x64xbf16>
    %c0_39 = arith.constant 0 : index
    %c576 = arith.constant 576 : index
    %49 = vector.load %arg16[%c0_39, %c576] : memref<64x768xbf16, #tpu.memory_space<vmem>>, vector<64x64xbf16>
    %cst_40 = arith.constant dense<0.000000e+00> : vector<64x64xf32>
    %50 = tpu.matmul %47, %48, %cst_40 {dimension_numbers = #tpu.dot_dimension_numbers<[1], [1], [0], [0], [0, 0, 1, 0], [], []>} : vector<64x64xbf16>, vector<64x64xbf16>, vector<64x64xf32> -> vector<64x64xf32>
    %cst_41 = arith.constant dense<0xFF800000> : vector<64xf32>
    %51 = vector.multi_reduction <maximumf>, %50, %cst_41 [1] : vector<64x64xf32> to vector<64xf32>
    %52 = vector.shape_cast %51 : vector<64xf32> to vector<64x1xf32>
    %53 = vector.broadcast %52 : vector<64x1xf32> to vector<64x64xf32>
    %54 = arith.subf %50, %53 : vector<64x64xf32>
    %55 = math.exp %54 : vector<64x64xf32>
    %cst_42 = arith.constant dense<0.000000e+00> : vector<64xf32>
    %56 = vector.multi_reduction <add>, %55, %cst_42 [1] : vector<64x64xf32> to vector<64xf32>
    %57 = vector.shape_cast %56 : vector<64xf32> to vector<64x1xf32>
    %58 = tpu.reciprocal %57 {approx = true} : vector<64x1xf32> -> vector<64x1xf32>
    %59 = vector.broadcast %58 : vector<64x1xf32> to vector<64x64xf32>
    %60 = arith.mulf %55, %59 : vector<64x64xf32>
    %c1 = arith.constant 1 : index
    %c0_43 = arith.constant 0 : index
    %c0_44 = arith.constant 0 : index
    %c0_45 = arith.constant 0 : index
    %61 = vector.load %arg15[%c1, %c0_43, %c0_44, %c0_45] : memref<4x1x64x64xf32, #tpu.memory_space<vmem>>, vector<1x1x64x64xf32>
    %62 = vector.shape_cast %61 : vector<1x1x64x64xf32> to vector<64x64xf32>
    %63 = vector.shape_cast %60 : vector<64x64xf32> to vector<1x1x64x64xf32>
    tpu.vector_store %arg15[%c1, %c0_43, %c0_44, %c0_45], %63 {strides = array<i32>} : memref<4x1x64x64xf32, #tpu.memory_space<vmem>>, vector<1x1x64x64xf32>,
    %64 = arith.truncf %60 : vector<64x64xf32> to vector<64x64xbf16>
    %cst_46 = arith.constant dense<0.000000e+00> : vector<64x64xf32>
    %65 = tpu.matmul %64, %49, %cst_46 {dimension_numbers = #tpu.dot_dimension_numbers<[1], [0], [0], [1], [0, 0, 1, 1], [], []>} : vector<64x64xbf16>, vector<64x64xbf16>, vector<64x64xf32> -> vector<64x64xf32>
    %66 = arith.truncf %65 : vector<64x64xf32> to vector<64x64xbf16>
    %c64_47 = arith.constant 64 : index
    %c0_48 = arith.constant 0 : index
    %67 = vector.load %arg4[%c64_47, %c0_48] : memref<256x256xbf16, #tpu.memory_space<vmem>>, vector<64x256xbf16>
    %cst_49 = arith.constant dense<0.000000e+00> : vector<64x256xf32>
    %68 = tpu.matmul %66, %67, %cst_49 {dimension_numbers = #tpu.dot_dimension_numbers<[1], [0], [0], [1], [0, 0, 1, 1], [], []>} : vector<64x64xbf16>, vector<64x256xbf16>, vector<64x256xf32> -> vector<64x256xf32>
    %69 = arith.addf %46, %68 : vector<64x256xf32>
    %c0_50 = arith.constant 0 : index
    %c128 = arith.constant 128 : index
    %70 = vector.load %arg16[%c0_50, %c128] : memref<64x768xbf16, #tpu.memory_space<vmem>>, vector<64x64xbf16>
    %c0_51 = arith.constant 0 : index
    %c384 = arith.constant 384 : index
    %71 = vector.load %arg16[%c0_51, %c384] : memref<64x768xbf16, #tpu.memory_space<vmem>>, vector<64x64xbf16>
    %c0_52 = arith.constant 0 : index
    %c640 = arith.constant 640 : index
    %72 = vector.load %arg16[%c0_52, %c640] : memref<64x768xbf16, #tpu.memory_space<vmem>>, vector<64x64xbf16>
    %cst_53 = arith.constant dense<0.000000e+00> : vector<64x64xf32>
    %73 = tpu.matmul %70, %71, %cst_53 {dimension_numbers = #tpu.dot_dimension_numbers<[1], [1], [0], [0], [0, 0, 1, 0], [], []>} : vector<64x64xbf16>, vector<64x64xbf16>, vector<64x64xf32> -> vector<64x64xf32>
    %cst_54 = arith.constant dense<0xFF800000> : vector<64xf32>
    %74 = vector.multi_reduction <maximumf>, %73, %cst_54 [1] : vector<64x64xf32> to vector<64xf32>
    %75 = vector.shape_cast %74 : vector<64xf32> to vector<64x1xf32>
    %76 = vector.broadcast %75 : vector<64x1xf32> to vector<64x64xf32>
    %77 = arith.subf %73, %76 : vector<64x64xf32>
    %78 = math.exp %77 : vector<64x64xf32>
    %cst_55 = arith.constant dense<0.000000e+00> : vector<64xf32>
    %79 = vector.multi_reduction <add>, %78, %cst_55 [1] : vector<64x64xf32> to vector<64xf32>
    %80 = vector.shape_cast %79 : vector<64xf32> to vector<64x1xf32>
    %81 = tpu.reciprocal %80 {approx = true} : vector<64x1xf32> -> vector<64x1xf32>
    %82 = vector.broadcast %81 : vector<64x1xf32> to vector<64x64xf32>
    %83 = arith.mulf %78, %82 : vector<64x64xf32>
    %c2 = arith.constant 2 : index
    %c0_56 = arith.constant 0 : index
    %c0_57 = arith.constant 0 : index
    %c0_58 = arith.constant 0 : index
    %84 = vector.load %arg15[%c2, %c0_56, %c0_57, %c0_58] : memref<4x1x64x64xf32, #tpu.memory_space<vmem>>, vector<1x1x64x64xf32>
    %85 = vector.shape_cast %84 : vector<1x1x64x64xf32> to vector<64x64xf32>
    %86 = vector.shape_cast %83 : vector<64x64xf32> to vector<1x1x64x64xf32>
    tpu.vector_store %arg15[%c2, %c0_56, %c0_57, %c0_58], %86 {strides = array<i32>} : memref<4x1x64x64xf32, #tpu.memory_space<vmem>>, vector<1x1x64x64xf32>,
    %87 = arith.truncf %83 : vector<64x64xf32> to vector<64x64xbf16>
    %cst_59 = arith.constant dense<0.000000e+00> : vector<64x64xf32>
    %88 = tpu.matmul %87, %72, %cst_59 {dimension_numbers = #tpu.dot_dimension_numbers<[1], [0], [0], [1], [0, 0, 1, 1], [], []>} : vector<64x64xbf16>, vector<64x64xbf16>, vector<64x64xf32> -> vector<64x64xf32>
    %89 = arith.truncf %88 : vector<64x64xf32> to vector<64x64xbf16>
    %c128_60 = arith.constant 128 : index
    %c0_61 = arith.constant 0 : index
    %90 = vector.load %arg4[%c128_60, %c0_61] : memref<256x256xbf16, #tpu.memory_space<vmem>>, vector<64x256xbf16>
    %cst_62 = arith.constant dense<0.000000e+00> : vector<64x256xf32>
    %91 = tpu.matmul %89, %90, %cst_62 {dimension_numbers = #tpu.dot_dimension_numbers<[1], [0], [0], [1], [0, 0, 1, 1], [], []>} : vector<64x64xbf16>, vector<64x256xbf16>, vector<64x256xf32> -> vector<64x256xf32>
    %92 = arith.addf %69, %91 : vector<64x256xf32>
    %c0_63 = arith.constant 0 : index
    %c192 = arith.constant 192 : index
    %93 = vector.load %arg16[%c0_63, %c192] : memref<64x768xbf16, #tpu.memory_space<vmem>>, vector<64x64xbf16>
    %c0_64 = arith.constant 0 : index
    %c448 = arith.constant 448 : index
    %94 = vector.load %arg16[%c0_64, %c448] : memref<64x768xbf16, #tpu.memory_space<vmem>>, vector<64x64xbf16>
    %c0_65 = arith.constant 0 : index
    %c704 = arith.constant 704 : index
    %95 = vector.load %arg16[%c0_65, %c704] : memref<64x768xbf16, #tpu.memory_space<vmem>>, vector<64x64xbf16>
    %cst_66 = arith.constant dense<0.000000e+00> : vector<64x64xf32>
    %96 = tpu.matmul %93, %94, %cst_66 {dimension_numbers = #tpu.dot_dimension_numbers<[1], [1], [0], [0], [0, 0, 1, 0], [], []>} : vector<64x64xbf16>, vector<64x64xbf16>, vector<64x64xf32> -> vector<64x64xf32>
    %cst_67 = arith.constant dense<0xFF800000> : vector<64xf32>
    %97 = vector.multi_reduction <maximumf>, %96, %cst_67 [1] : vector<64x64xf32> to vector<64xf32>
    %98 = vector.shape_cast %97 : vector<64xf32> to vector<64x1xf32>
    %99 = vector.broadcast %98 : vector<64x1xf32> to vector<64x64xf32>
    %100 = arith.subf %96, %99 : vector<64x64xf32>
    %101 = math.exp %100 : vector<64x64xf32>
    %cst_68 = arith.constant dense<0.000000e+00> : vector<64xf32>
    %102 = vector.multi_reduction <add>, %101, %cst_68 [1] : vector<64x64xf32> to vector<64xf32>
    %103 = vector.shape_cast %102 : vector<64xf32> to vector<64x1xf32>
    %104 = tpu.reciprocal %103 {approx = true} : vector<64x1xf32> -> vector<64x1xf32>
    %105 = vector.broadcast %104 : vector<64x1xf32> to vector<64x64xf32>
    %106 = arith.mulf %101, %105 : vector<64x64xf32>
    %c3 = arith.constant 3 : index
    %c0_69 = arith.constant 0 : index
    %c0_70 = arith.constant 0 : index
    %c0_71 = arith.constant 0 : index
    %107 = vector.load %arg15[%c3, %c0_69, %c0_70, %c0_71] : memref<4x1x64x64xf32, #tpu.memory_space<vmem>>, vector<1x1x64x64xf32>
    %108 = vector.shape_cast %107 : vector<1x1x64x64xf32> to vector<64x64xf32>
    %109 = vector.shape_cast %106 : vector<64x64xf32> to vector<1x1x64x64xf32>
    tpu.vector_store %arg15[%c3, %c0_69, %c0_70, %c0_71], %109 {strides = array<i32>} : memref<4x1x64x64xf32, #tpu.memory_space<vmem>>, vector<1x1x64x64xf32>,
    %110 = arith.truncf %106 : vector<64x64xf32> to vector<64x64xbf16>
    %cst_72 = arith.constant dense<0.000000e+00> : vector<64x64xf32>
    %111 = tpu.matmul %110, %95, %cst_72 {dimension_numbers = #tpu.dot_dimension_numbers<[1], [0], [0], [1], [0, 0, 1, 1], [], []>} : vector<64x64xbf16>, vector<64x64xbf16>, vector<64x64xf32> -> vector<64x64xf32>
    %112 = arith.truncf %111 : vector<64x64xf32> to vector<64x64xbf16>
    %c192_73 = arith.constant 192 : index
    %c0_74 = arith.constant 0 : index
    %113 = vector.load %arg4[%c192_73, %c0_74] : memref<256x256xbf16, #tpu.memory_space<vmem>>, vector<64x256xbf16>
    %cst_75 = arith.constant dense<0.000000e+00> : vector<64x256xf32>
    %114 = tpu.matmul %112, %113, %cst_75 {dimension_numbers = #tpu.dot_dimension_numbers<[1], [0], [0], [1], [0, 0, 1, 1], [], []>} : vector<64x64xbf16>, vector<64x256xbf16>, vector<64x256xf32> -> vector<64x256xf32>
    %115 = arith.addf %92, %114 : vector<64x256xf32>
    %c0_76 = arith.constant 0 : index
    %c0_77 = arith.constant 0 : index
    %116 = vector.load %arg5[%c0_76, %c0_77] : memref<1x256xf32, #tpu.memory_space<vmem>>, vector<1x256xf32>
    %117 = vector.broadcast %116 : vector<1x256xf32> to vector<64x256xf32>
    %118 = arith.addf %115, %117 : vector<64x256xf32>
    %119 = arith.addf %118, %0 : vector<64x256xf32>
    %c0_78 = arith.constant 0 : index
    %c0_79 = arith.constant 0 : index
    %120 = vector.load %arg6[%c0_78, %c0_79] : memref<1x256xf32, #tpu.memory_space<vmem>>, vector<1x256xf32>
    %c0_80 = arith.constant 0 : index
    %c0_81 = arith.constant 0 : index
    %121 = vector.load %arg7[%c0_80, %c0_81] : memref<1x256xf32, #tpu.memory_space<vmem>>, vector<1x256xf32>
    %cst_82 = arith.constant dense<0.000000e+00> : vector<64xf32>
    %122 = vector.multi_reduction <add>, %119, %cst_82 [1] : vector<64x256xf32> to vector<64xf32>
    %123 = vector.shape_cast %122 : vector<64xf32> to vector<64x1xf32>
    %cst_83 = arith.constant 2.560000e+02 : f32
    %124 = vector.broadcast %cst_83 : f32 to vector<64x1xf32>
    %125 = arith.divf %123, %124 : vector<64x1xf32>
    %126 = vector.broadcast %125 : vector<64x1xf32> to vector<64x256xf32>
    %127 = arith.subf %119, %126 : vector<64x256xf32>
    %128 = arith.mulf %127, %127 : vector<64x256xf32>
    %cst_84 = arith.constant dense<0.000000e+00> : vector<64xf32>
    %129 = vector.multi_reduction <add>, %128, %cst_84 [1] : vector<64x256xf32> to vector<64xf32>
    %130 = vector.shape_cast %129 : vector<64xf32> to vector<64x1xf32>
    %cst_85 = arith.constant 2.560000e+02 : f32
    %131 = vector.broadcast %cst_85 : f32 to vector<64x1xf32>
    %132 = arith.divf %130, %131 : vector<64x1xf32>
    %133 = vector.broadcast %125 : vector<64x1xf32> to vector<64x256xf32>
    %134 = arith.subf %119, %133 : vector<64x256xf32>
    %cst_86 = arith.constant 9.99999974E-6 : f32
    %135 = vector.broadcast %cst_86 : f32 to vector<64x1xf32>
    %136 = arith.addf %132, %135 : vector<64x1xf32>
    %137 = math.rsqrt %136 : vector<64x1xf32>
    %138 = vector.broadcast %137 : vector<64x1xf32> to vector<64x256xf32>
    %139 = arith.mulf %134, %138 : vector<64x256xf32>
    %140 = vector.broadcast %120 : vector<1x256xf32> to vector<64x256xf32>
    %141 = arith.mulf %139, %140 : vector<64x256xf32>
    %142 = vector.broadcast %121 : vector<1x256xf32> to vector<64x256xf32>
    %143 = arith.addf %141, %142 : vector<64x256xf32>
    %144 = arith.truncf %143 : vector<64x256xf32> to vector<64x256xbf16>
    %c0_87 = arith.constant 0 : index
    %c0_88 = arith.constant 0 : index
    %145 = vector.load %arg11[%c0_87, %c0_88] : memref<1x256xf32, #tpu.memory_space<vmem>>, vector<1x256xf32>
    %146 = vector.broadcast %145 : vector<1x256xf32> to vector<64x256xf32>
    %147 = arith.addf %143, %146 : vector<64x256xf32>
    %c0_89 = arith.constant 0 : index
    %c0_90 = arith.constant 0 : index
    %148 = vector.load %arg8[%c0_89, %c0_90] : memref<256x512xbf16, #tpu.memory_space<vmem>>, vector<256x256xbf16>
    %cst_91 = arith.constant dense<0.000000e+00> : vector<64x256xf32>
    %149 = tpu.matmul %144, %148, %cst_91 {dimension_numbers = #tpu.dot_dimension_numbers<[1], [0], [0], [1], [0, 0, 1, 1], [], []>} : vector<64x256xbf16>, vector<256x256xbf16>, vector<64x256xf32> -> vector<64x256xf32>
    %c0_92 = arith.constant 0 : index
    %c0_93 = arith.constant 0 : index
    %150 = vector.load %arg9[%c0_92, %c0_93] : memref<1x512xf32, #tpu.memory_space<vmem>>, vector<1x256xf32>
    %151 = vector.broadcast %150 : vector<1x256xf32> to vector<64x256xf32>
    %152 = arith.addf %149, %151 : vector<64x256xf32>
    %cst_94 = arith.constant 0.000000e+00 : f32
    %153 = vector.broadcast %cst_94 : f32 to vector<64x256xf32>
    %154 = arith.maximumf %152, %153 : vector<64x256xf32>
    %155 = arith.truncf %154 : vector<64x256xf32> to vector<64x256xbf16>
    %c0_95 = arith.constant 0 : index
    %c0_96 = arith.constant 0 : index
    %156 = vector.load %arg10[%c0_95, %c0_96] : memref<512x256xbf16, #tpu.memory_space<vmem>>, vector<256x256xbf16>
    %cst_97 = arith.constant dense<0.000000e+00> : vector<64x256xf32>
    %157 = tpu.matmul %155, %156, %cst_97 {dimension_numbers = #tpu.dot_dimension_numbers<[1], [0], [0], [1], [0, 0, 1, 1], [], []>} : vector<64x256xbf16>, vector<256x256xbf16>, vector<64x256xf32> -> vector<64x256xf32>
    %158 = arith.addf %147, %157 : vector<64x256xf32>
    %c0_98 = arith.constant 0 : index
    %c256_99 = arith.constant 256 : index
    %159 = vector.load %arg8[%c0_98, %c256_99] : memref<256x512xbf16, #tpu.memory_space<vmem>>, vector<256x256xbf16>
    %cst_100 = arith.constant dense<0.000000e+00> : vector<64x256xf32>
    %160 = tpu.matmul %144, %159, %cst_100 {dimension_numbers = #tpu.dot_dimension_numbers<[1], [0], [0], [1], [0, 0, 1, 1], [], []>} : vector<64x256xbf16>, vector<256x256xbf16>, vector<64x256xf32> -> vector<64x256xf32>
    %c0_101 = arith.constant 0 : index
    %c256_102 = arith.constant 256 : index
    %161 = vector.load %arg9[%c0_101, %c256_102] : memref<1x512xf32, #tpu.memory_space<vmem>>, vector<1x256xf32>
    %162 = vector.broadcast %161 : vector<1x256xf32> to vector<64x256xf32>
    %163 = arith.addf %160, %162 : vector<64x256xf32>
    %cst_103 = arith.constant 0.000000e+00 : f32
    %164 = vector.broadcast %cst_103 : f32 to vector<64x256xf32>
    %165 = arith.maximumf %163, %164 : vector<64x256xf32>
    %166 = arith.truncf %165 : vector<64x256xf32> to vector<64x256xbf16>
    %c256_104 = arith.constant 256 : index
    %c0_105 = arith.constant 0 : index
    %167 = vector.load %arg10[%c256_104, %c0_105] : memref<512x256xbf16, #tpu.memory_space<vmem>>, vector<256x256xbf16>
    %cst_106 = arith.constant dense<0.000000e+00> : vector<64x256xf32>
    %168 = tpu.matmul %166, %167, %cst_106 {dimension_numbers = #tpu.dot_dimension_numbers<[1], [0], [0], [1], [0, 0, 1, 1], [], []>} : vector<64x256xbf16>, vector<256x256xbf16>, vector<64x256xf32> -> vector<64x256xf32>
    %169 = arith.addf %158, %168 : vector<64x256xf32>
    %c0_107 = arith.constant 0 : index
    %c0_108 = arith.constant 0 : index
    %170 = vector.load %arg12[%c0_107, %c0_108] : memref<1x256xf32, #tpu.memory_space<vmem>>, vector<1x256xf32>
    %c0_109 = arith.constant 0 : index
    %c0_110 = arith.constant 0 : index
    %171 = vector.load %arg13[%c0_109, %c0_110] : memref<1x256xf32, #tpu.memory_space<vmem>>, vector<1x256xf32>
    %cst_111 = arith.constant dense<0.000000e+00> : vector<64xf32>
    %172 = vector.multi_reduction <add>, %169, %cst_111 [1] : vector<64x256xf32> to vector<64xf32>
    %173 = vector.shape_cast %172 : vector<64xf32> to vector<64x1xf32>
    %cst_112 = arith.constant 2.560000e+02 : f32
    %174 = vector.broadcast %cst_112 : f32 to vector<64x1xf32>
    %175 = arith.divf %173, %174 : vector<64x1xf32>
    %176 = vector.broadcast %175 : vector<64x1xf32> to vector<64x256xf32>
    %177 = arith.subf %169, %176 : vector<64x256xf32>
    %178 = arith.mulf %177, %177 : vector<64x256xf32>
    %cst_113 = arith.constant dense<0.000000e+00> : vector<64xf32>
    %179 = vector.multi_reduction <add>, %178, %cst_113 [1] : vector<64x256xf32> to vector<64xf32>
    %180 = vector.shape_cast %179 : vector<64xf32> to vector<64x1xf32>
    %cst_114 = arith.constant 2.560000e+02 : f32
    %181 = vector.broadcast %cst_114 : f32 to vector<64x1xf32>
    %182 = arith.divf %180, %181 : vector<64x1xf32>
    %183 = vector.broadcast %175 : vector<64x1xf32> to vector<64x256xf32>
    %184 = arith.subf %169, %183 : vector<64x256xf32>
    %cst_115 = arith.constant 9.99999974E-6 : f32
    %185 = vector.broadcast %cst_115 : f32 to vector<64x1xf32>
    %186 = arith.addf %182, %185 : vector<64x1xf32>
    %187 = math.rsqrt %186 : vector<64x1xf32>
    %188 = vector.broadcast %187 : vector<64x1xf32> to vector<64x256xf32>
    %189 = arith.mulf %184, %188 : vector<64x256xf32>
    %190 = vector.broadcast %170 : vector<1x256xf32> to vector<64x256xf32>
    %191 = arith.mulf %189, %190 : vector<64x256xf32>
    %192 = vector.broadcast %171 : vector<1x256xf32> to vector<64x256xf32>
    %193 = arith.addf %191, %192 : vector<64x256xf32>
    %c0_116 = arith.constant 0 : index
    %c0_117 = arith.constant 0 : index
    %194 = vector.load %arg14[%c0_116, %c0_117] : memref<64x256xf32, #tpu.memory_space<vmem>>, vector<64x256xf32>
    tpu.vector_store %arg14[%c0_116, %c0_117], %193 {strides = array<i32>} : memref<64x256xf32, #tpu.memory_space<vmem>>, vector<64x256xf32>,
    return
  }
  func.func @transform_0(%arg0: i32) -> (i32, i32) {
    %c0_i32 = arith.constant 0 : i32
    %c0_i32_0 = arith.constant 0 : i32
    return %arg0, %c0_i32 : i32, i32
  }
  func.func @transform_1(%arg0: i32) -> (i32, i32) {
    %c0_i32 = arith.constant 0 : i32
    %c0_i32_0 = arith.constant 0 : i32
    %c0_i32_1 = arith.constant 0 : i32
    return %c0_i32, %c0_i32_0 : i32, i32
  }
  func.func @transform_2(%arg0: i32) -> (i32, i32) {
    %c0_i32 = arith.constant 0 : i32
    %c0_i32_0 = arith.constant 0 : i32
    %c0_i32_1 = arith.constant 0 : i32
    return %c0_i32, %c0_i32_0 : i32, i32
  }
  func.func @transform_3(%arg0: i32) -> (i32, i32) {
    %c0_i32 = arith.constant 0 : i32
    %c0_i32_0 = arith.constant 0 : i32
    %c0_i32_1 = arith.constant 0 : i32
    return %c0_i32, %c0_i32_0 : i32, i32
  }
  func.func @transform_4(%arg0: i32) -> (i32, i32) {
    %c0_i32 = arith.constant 0 : i32
    %c0_i32_0 = arith.constant 0 : i32
    %c0_i32_1 = arith.constant 0 : i32
    return %c0_i32, %c0_i32_0 : i32, i32
  }
  func.func @transform_5(%arg0: i32) -> (i32, i32) {
    %c0_i32 = arith.constant 0 : i32
    %c0_i32_0 = arith.constant 0 : i32
    %c0_i32_1 = arith.constant 0 : i32
    return %c0_i32, %c0_i32_0 : i32, i32
  }
  func.func @transform_6(%arg0: i32) -> (i32, i32) {
    %c0_i32 = arith.constant 0 : i32
    %c0_i32_0 = arith.constant 0 : i32
    %c0_i32_1 = arith.constant 0 : i32
    return %c0_i32, %c0_i32_0 : i32, i32
  }
  func.func @transform_7(%arg0: i32) -> (i32, i32) {
    %c0_i32 = arith.constant 0 : i32
    %c0_i32_0 = arith.constant 0 : i32
    %c0_i32_1 = arith.constant 0 : i32
    return %c0_i32, %c0_i32_0 : i32, i32
  }
  func.func @transform_8(%arg0: i32) -> (i32, i32) {
    %c0_i32 = arith.constant 0 : i32
    %c0_i32_0 = arith.constant 0 : i32
    %c0_i32_1 = arith.constant 0 : i32
    return %c0_i32, %c0_i32_0 : i32, i32
  }
  func.func @transform_9(%arg0: i32) -> (i32, i32) {
    %c0_i32 = arith.constant 0 : i32
    %c0_i32_0 = arith.constant 0 : i32
    %c0_i32_1 = arith.constant 0 : i32
    return %c0_i32, %c0_i32_0 : i32, i32
  }
  func.func @transform_10(%arg0: i32) -> (i32, i32) {
    %c0_i32 = arith.constant 0 : i32
    %c0_i32_0 = arith.constant 0 : i32
    %c0_i32_1 = arith.constant 0 : i32
    return %c0_i32, %c0_i32_0 : i32, i32
  }
  func.func @transform_11(%arg0: i32) -> (i32, i32) {
    %c0_i32 = arith.constant 0 : i32
    %c0_i32_0 = arith.constant 0 : i32
    %c0_i32_1 = arith.constant 0 : i32
    return %c0_i32, %c0_i32_0 : i32, i32
  }
  func.func @transform_12(%arg0: i32) -> (i32, i32) {
    %c0_i32 = arith.constant 0 : i32
    %c0_i32_0 = arith.constant 0 : i32
    %c0_i32_1 = arith.constant 0 : i32
    return %c0_i32, %c0_i32_0 : i32, i32
  }
  func.func @transform_13(%arg0: i32) -> (i32, i32) {
    %c0_i32 = arith.constant 0 : i32
    %c0_i32_0 = arith.constant 0 : i32
    return %arg0, %c0_i32 : i32, i32
  }
  func.func @transform_14(%arg0: i32) -> (i32, i32, i32, i32) {
    %c0_i32 = arith.constant 0 : i32
    %c0_i32_0 = arith.constant 0 : i32
    %c0_i32_1 = arith.constant 0 : i32
    %c0_i32_2 = arith.constant 0 : i32
    return %c0_i32, %arg0, %c0_i32_0, %c0_i32_1 : i32, i32, i32, i32
  }
}

</mosaic_0001>

<llo_original>
// kernel: encode_layer.1
$region0: #{encode_layer.1}
  #allocation0 [shape = 'u32[]', space=smem, size = 0x4, offset = 0x4, fixed_abs, tag = 'smem constant byte address 0x4 - core index']
  #allocation1 [shape = 'u32[144,128]{1,0:T(1,128)}', space=vmem, size = 0x12000, scoped, tag = 'internal scratch']
  #allocation2 [shape = 'bf16[64,768]{1,0:T(8,128)(2,1)}', space=vmem, size = 0x18000, scoped, tag = 'scratch operand']
  #allocation21 [shape = 's32[]', space=sflag, size = 0x4, offset = 0, fixed_abs, tag = 'sflag constant byte address 0x0 - dummy sync flag']
  %s0 = inlined_call_operand.hbm [shape: f32[128,256], index: 0, kind: input, shape index: {}]
  %s1 = inlined_call_operand.hbm [shape: bf16[256,768], index: 1, kind: input, shape index: {}]
  %s2 = inlined_call_operand.vmem [shape: f32[1,768], index: 2, kind: input, shape index: {}]
  %s3 = inlined_call_operand.hbm [shape: bf16[256,256], index: 3, kind: input, shape index: {}]
  %s4 = inlined_call_operand.hbm [shape: f32[1,256], index: 4, kind: input, shape index: {}]
  %s5 = inlined_call_operand.vmem [shape: f32[1,256], index: 5, kind: input, shape index: {}]
  %s6 = inlined_call_operand.hbm [shape: f32[1,256], index: 6, kind: input, shape index: {}]
  %s7 = inlined_call_operand.hbm [shape: bf16[256,512], index: 7, kind: input, shape index: {}]
  %s8 = inlined_call_operand.hbm [shape: f32[1,512], index: 8, kind: input, shape index: {}]
  %s9 = inlined_call_operand.hbm [shape: bf16[512,256], index: 9, kind: input, shape index: {}]
  %s10 = inlined_call_operand.hbm [shape: f32[1,256], index: 10, kind: input, shape index: {}]
  %s11 = inlined_call_operand.vmem [shape: f32[1,256], index: 11, kind: input, shape index: {}]
  %s12 = inlined_call_operand.vmem [shape: f32[1,256], index: 12, kind: input, shape index: {}]
  %s13 = inlined_call_operand.hbm [shape: f32[128,256], index: 13, kind: output, shape index: {0}]
  %s14 = inlined_call_operand.hbm [shape: f32[4,2,64,64], index: 14, kind: output, shape index: {1}]
  %15 = xla_tuple %s13, %s14
  %s16 = sld [smem:[#allocation0]]
  $region129: #{encode_layer.1} parent=0
    _
  %s18 = ssub.s32 1, %s16
  %s19 = scalar_select 0, %s18, %s16
  $region1: #{encode_layer.1} parent=0
    #allocation3 [shape = 'u8[131072]{0}', space=vmem, size = 0x20000, scoped, tag = 'input window, operand 0']
    #allocation4 [shape = 's32[2]{0}', space=sflag, size = 0x8, scoped, tag = 'scoped memory for encode_layer.1']
    #allocation5 [shape = 's32[2]{0}', space=sflag, size = 0x8, scoped, tag = 'scoped memory for encode_layer.1']
    #allocation6 [shape = 'u8[393216]{0}', space=vmem, size = 0x60000, scoped, tag = 'input window, operand 1, single buffered']
    #allocation7 [shape = 's32[1]{0}', space=sflag, size = 0x4, scoped, tag = 'scoped memory for encode_layer.1']
    #allocation8 [shape = 'u8[131072]{0}', space=vmem, size = 0x20000, scoped, tag = 'input window, operand 3, single buffered']
    #allocation9 [shape = 'u8[1024]{0}', space=vmem, size = 0x400, scoped, tag = 'input window, operand 4, single buffered']
    #allocation10 [shape = 's32[1]{0}', space=sflag, size = 0x4, scoped, tag = 'scoped memory for encode_layer.1']
    #allocation11 [shape = 'u8[1024]{0}', space=vmem, size = 0x400, scoped, tag = 'input window, operand 6, single buffered']
    #allocation12 [shape = 'u8[262144]{0}', space=vmem, size = 0x40000, scoped, tag = 'input window, operand 7, single buffered']
    #allocation13 [shape = 's32[1]{0}', space=sflag, size = 0x4, scoped, tag = 'scoped memory for encode_layer.1']
    #allocation14 [shape = 'u8[2048]{0}', space=vmem, size = 0x800, scoped, tag = 'input window, operand 8, single buffered']
    #allocation15 [shape = 'u8[262144]{0}', space=vmem, size = 0x40000, scoped, tag = 'input window, operand 9, single buffered']
    #allocation16 [shape = 's32[1]{0}', space=sflag, size = 0x4, scoped, tag = 'scoped memory for encode_layer.1']
    #allocation17 [shape = 'u8[1024]{0}', space=vmem, size = 0x400, scoped, tag = 'input window, operand 10, single buffered']
    #allocation18 [shape = 'u8[131072]{0}', space=vmem, size = 0x20000, scoped, tag = 'output window, operand 0']
    #allocation19 [shape = 'u8[262144]{0}', space=vmem, size = 0x40000, scoped, tag = 'output window, operand 1']
    #allocation20 [shape = 's32[2]{0}', space=sflag, size = 0x8, scoped, tag = 'scoped memory for encode_layer.1']
    %20 = vsyncpa [#allocation4], 0
    %s21 = scalar_lea.sflag [#allocation4], 1
    %22 = vsyncpa %s21, 0
    %23 = vsyncpa [#allocation7], 0
    %24 = vsyncpa [#allocation10], 0
    %25 = vsyncpa [#allocation13], 0
    %26 = vsyncpa [#allocation16], 0
    %27 = vsyncpa [#allocation5], 0
    %s28 = scalar_lea.sflag [#allocation5], 1
    %29 = vsyncpa %s28, 0
    %30 = vsyncpa [#allocation20], 0
    %s31 = scalar_lea.sflag [#allocation20], 1
    %32 = vsyncpa %s31, 0
    loop: start=0, step=1, limit=4
    $region2: #{encode_layer.1} parent=1 // loop_pre_header
      _
    $region3: #{encode_layer.1} parent=1 // loop_header
      %s34 = sphi 0, %s38
      %p35 = scmp.ge.s32.totalorder %s34, 4
      %s44 = sphi 0, %s46
      %s47 = sphi 0, %s44
      %s48 = sphi 0, %s47
      %s64 = sphi 0, %s48
      %s68 = sphi 0, %s68
      %s70 = sphi 0, %s68
      %s71 = sphi 0, %s70
      %s85 = sphi 0, %s71
      %s89 = sphi 0, %s89
      %s91 = sphi 0, %s89
      %s92 = sphi 0, %s91
      %s106 = sphi 0, %s92
      %s110 = sphi 0, %s110
      %s112 = sphi 0, %s110
      %s113 = sphi 0, %s112
      %s127 = sphi 0, %s113
      %s131 = sphi 0, %s131
      %s133 = sphi 0, %s131
      %s134 = sphi 0, %s133
      %s148 = sphi 0, %s134
      %s152 = sphi 0, %s152
      %s154 = sphi 0, %s152
      %s155 = sphi 0, %s154
      %s169 = sphi 0, %s155
      %s173 = sphi 0, %s173
      %s175 = sphi 0, %s173
      %s176 = sphi 0, %s175
      %s190 = sphi 0, %s176
      %s194 = sphi 0, %s194
      %s196 = sphi 0, %s194
      %s197 = sphi 0, %s196
      %s211 = sphi 0, %s197
      %s215 = sphi 0, %s215
      %s217 = sphi 0, %s215
      %s218 = sphi 0, %s217
      %s232 = sphi 0, %s218
      %s236 = sphi 0, %s236
      %s238 = sphi 0, %s236
      %s239 = sphi 0, %s238
      %s253 = sphi 0, %s239
      %s257 = sphi 0, %s257
      %s259 = sphi 0, %s257
      %s260 = sphi 0, %s259
      %s274 = sphi 0, %s260
      %s278 = sphi 0, %s278
      %s280 = sphi 0, %s278
      %s281 = sphi 0, %s280
      %s295 = sphi 0, %s281
      %s299 = sphi 0, %s299
      %s301 = sphi 0, %s299
      %s302 = sphi 0, %s301
      %s316 = sphi 0, %s302
      %s322 = sphi 0, %s324
      %s325 = sphi 0, %s322
      %s326 = sphi 0, %s325
      %s342 = sphi 0, %s326
      %s348 = sphi 0, %s350
      %s351 = sphi 0, %s348
      %s352 = sphi 0, %s351
      %s368 = sphi 0, %s352
    $region4: #{encode_layer.1} parent=1 // loop_header_branch
      %37 = sbr.rel (%p35) target = $region8
    $region5: #{encode_layer.1} parent=1 // loop_body
      %s39 = ssub.s32 %s34, 1
      %s40 = ssub.s32 %s34, 2
      %s41 = sadd.s32 %s34, 1
      %s42 = ssub.s32 %s34, %s41
      %p43 = scmp.eq.s32.totalorder %s42, 0
      %s45 = sadd.s32 %s44, 1
      %s46 = scalar_select %p43, %s44, %s45
      %p49 = pneg %p43
      %p50 = scmp.eq.s32.totalorder %s34, 1
      %p51 = por %p49, %p50
      %p52 = scmp.ne.s32.totalorder %s44, %s47
      %p53 = scmp.eq.s32.totalorder %s34, 0
      %p54 = por %p52, %p53
      %p55 = scmp.ne.s32.totalorder %s44, %s47
      %p56 = scmp.eq.s32.totalorder %s39, 1
      %p57 = por %p55, %p56
      %p58 = scmp.ne.s32.totalorder %s47, %s48
      %p59 = scmp.eq.s32.totalorder %s39, 0
      %p60 = por %p58, %p59
      %p61 = scmp.ne.s32.totalorder %s47, %s48
      %p62 = scmp.eq.s32.totalorder %s40, 1
      %p63 = por %p61, %p62
      %p65 = scmp.ne.s32.totalorder %s48, %s64
      %p66 = scmp.eq.s32.totalorder %s40, 0
      %p67 = por %p65, %p66
      %s69 = sadd.s32 %s68, 1
      %p72 = scmp.eq.s32.totalorder %s34, 1
      %p73 = scmp.ne.s32.totalorder %s68, %s70
      %p74 = scmp.eq.s32.totalorder %s34, 0
      %p75 = por %p73, %p74
      %p76 = scmp.ne.s32.totalorder %s68, %s70
      %p77 = scmp.eq.s32.totalorder %s39, 1
      %p78 = por %p76, %p77
      %p79 = scmp.ne.s32.totalorder %s70, %s71
      %p80 = scmp.eq.s32.totalorder %s39, 0
      %p81 = por %p79, %p80
      %p82 = scmp.ne.s32.totalorder %s70, %s71
      %p83 = scmp.eq.s32.totalorder %s40, 1
      %p84 = por %p82, %p83
      %p86 = scmp.ne.s32.totalorder %s71, %s85
      %p87 = scmp.eq.s32.totalorder %s40, 0
      %p88 = por %p86, %p87
      %s90 = sadd.s32 %s89, 1
      %p93 = scmp.eq.s32.totalorder %s34, 1
      %p94 = scmp.ne.s32.totalorder %s89, %s91
      %p95 = scmp.eq.s32.totalorder %s34, 0
      %p96 = por %p94, %p95
      %p97 = scmp.ne.s32.totalorder %s89, %s91
      %p98 = scmp.eq.s32.totalorder %s39, 1
      %p99 = por %p97, %p98
      %p100 = scmp.ne.s32.totalorder %s91, %s92
      %p101 = scmp.eq.s32.totalorder %s39, 0
      %p102 = por %p100, %p101
      %p103 = scmp.ne.s32.totalorder %s91, %s92
      %p104 = scmp.eq.s32.totalorder %s40, 1
      %p105 = por %p103, %p104
      %p107 = scmp.ne.s32.totalorder %s92, %s106
      %p108 = scmp.eq.s32.totalorder %s40, 0
      %p109 = por %p107, %p108
      %s111 = sadd.s32 %s110, 1
      %p114 = scmp.eq.s32.totalorder %s34, 1
      %p115 = scmp.ne.s32.totalorder %s110, %s112
      %p116 = scmp.eq.s32.totalorder %s34, 0
      %p117 = por %p115, %p116
      %p118 = scmp.ne.s32.totalorder %s110, %s112
      %p119 = scmp.eq.s32.totalorder %s39, 1
      %p120 = por %p118, %p119
      %p121 = scmp.ne.s32.totalorder %s112, %s113
      %p122 = scmp.eq.s32.totalorder %s39, 0
      %p123 = por %p121, %p122
      %p124 = scmp.ne.s32.totalorder %s112, %s113
      %p125 = scmp.eq.s32.totalorder %s40, 1
      %p126 = por %p124, %p125
      %p128 = scmp.ne.s32.totalorder %s113, %s127
      %p129 = scmp.eq.s32.totalorder %s40, 0
      %p130 = por %p128, %p129
      %s132 = sadd.s32 %s131, 1
      %p135 = scmp.eq.s32.totalorder %s34, 1
      %p136 = scmp.ne.s32.totalorder %s131, %s133
      %p137 = scmp.eq.s32.totalorder %s34, 0
      %p138 = por %p136, %p137
      %p139 = scmp.ne.s32.totalorder %s131, %s133
      %p140 = scmp.eq.s32.totalorder %s39, 1
      %p141 = por %p139, %p140
      %p142 = scmp.ne.s32.totalorder %s133, %s134
      %p143 = scmp.eq.s32.totalorder %s39, 0
      %p144 = por %p142, %p143
      %p145 = scmp.ne.s32.totalorder %s133, %s134
      %p146 = scmp.eq.s32.totalorder %s40, 1
      %p147 = por %p145, %p146
      %p149 = scmp.ne.s32.totalorder %s134, %s148
      %p150 = scmp.eq.s32.totalorder %s40, 0
      %p151 = por %p149, %p150
      %s153 = sadd.s32 %s152, 1
      %p156 = scmp.eq.s32.totalorder %s34, 1
      %p157 = scmp.ne.s32.totalorder %s152, %s154
      %p158 = scmp.eq.s32.totalorder %s34, 0
      %p159 = por %p157, %p158
      %p160 = scmp.ne.s32.totalorder %s152, %s154
      %p161 = scmp.eq.s32.totalorder %s39, 1
      %p162 = por %p160, %p161
      %p163 = scmp.ne.s32.totalorder %s154, %s155
      %p164 = scmp.eq.s32.totalorder %s39, 0
      %p165 = por %p163, %p164
      %p166 = scmp.ne.s32.totalorder %s154, %s155
      %p167 = scmp.eq.s32.totalorder %s40, 1
      %p168 = por %p166, %p167
      %p170 = scmp.ne.s32.totalorder %s155, %s169
      %p171 = scmp.eq.s32.totalorder %s40, 0
      %p172 = por %p170, %p171
      %s174 = sadd.s32 %s173, 1
      %p177 = scmp.eq.s32.totalorder %s34, 1
      %p178 = scmp.ne.s32.totalorder %s173, %s175
      %p179 = scmp.eq.s32.totalorder %s34, 0
      %p180 = por %p178, %p179
      %p181 = scmp.ne.s32.totalorder %s173, %s175
      %p182 = scmp.eq.s32.totalorder %s39, 1
      %p183 = por %p181, %p182
      %p184 = scmp.ne.s32.totalorder %s175, %s176
      %p185 = scmp.eq.s32.totalorder %s39, 0
      %p186 = por %p184, %p185
      %p187 = scmp.ne.s32.totalorder %s175, %s176
      %p188 = scmp.eq.s32.totalorder %s40, 1
      %p189 = por %p187, %p188
      %p191 = scmp.ne.s32.totalorder %s176, %s190
      %p192 = scmp.eq.s32.totalorder %s40, 0
      %p193 = por %p191, %p192
      %s195 = sadd.s32 %s194, 1
      %p198 = scmp.eq.s32.totalorder %s34, 1
      %p199 = scmp.ne.s32.totalorder %s194, %s196
      %p200 = scmp.eq.s32.totalorder %s34, 0
      %p201 = por %p199, %p200
      %p202 = scmp.ne.s32.totalorder %s194, %s196
      %p203 = scmp.eq.s32.totalorder %s39, 1
      %p204 = por %p202, %p203
      %p205 = scmp.ne.s32.totalorder %s196, %s197
      %p206 = scmp.eq.s32.totalorder %s39, 0
      %p207 = por %p205, %p206
      %p208 = scmp.ne.s32.totalorder %s196, %s197
      %p209 = scmp.eq.s32.totalorder %s40, 1
      %p210 = por %p208, %p209
      %p212 = scmp.ne.s32.totalorder %s197, %s211
      %p213 = scmp.eq.s32.totalorder %s40, 0
      %p214 = por %p212, %p213
      %s216 = sadd.s32 %s215, 1
      %p219 = scmp.eq.s32.totalorder %s34, 1
      %p220 = scmp.ne.s32.totalorder %s215, %s217
      %p221 = scmp.eq.s32.totalorder %s34, 0
      %p222 = por %p220, %p221
      %p223 = scmp.ne.s32.totalorder %s215, %s217
      %p224 = scmp.eq.s32.totalorder %s39, 1
      %p225 = por %p223, %p224
      %p226 = scmp.ne.s32.totalorder %s217, %s218
      %p227 = scmp.eq.s32.totalorder %s39, 0
      %p228 = por %p226, %p227
      %p229 = scmp.ne.s32.totalorder %s217, %s218
      %p230 = scmp.eq.s32.totalorder %s40, 1
      %p231 = por %p229, %p230
      %p233 = scmp.ne.s32.totalorder %s218, %s232
      %p234 = scmp.eq.s32.totalorder %s40, 0
      %p235 = por %p233, %p234
      %s237 = sadd.s32 %s236, 1
      %p240 = scmp.eq.s32.totalorder %s34, 1
      %p241 = scmp.ne.s32.totalorder %s236, %s238
      %p242 = scmp.eq.s32.totalorder %s34, 0
      %p243 = por %p241, %p242
      %p244 = scmp.ne.s32.totalorder %s236, %s238
      %p245 = scmp.eq.s32.totalorder %s39, 1
      %p246 = por %p244, %p245
      %p247 = scmp.ne.s32.totalorder %s238, %s239
      %p248 = scmp.eq.s32.totalorder %s39, 0
      %p249 = por %p247, %p248
      %p250 = scmp.ne.s32.totalorder %s238, %s239
      %p251 = scmp.eq.s32.totalorder %s40, 1
      %p252 = por %p250, %p251
      %p254 = scmp.ne.s32.totalorder %s239, %s253
      %p255 = scmp.eq.s32.totalorder %s40, 0
      %p256 = por %p254, %p255
      %s258 = sadd.s32 %s257, 1
      %p261 = scmp.eq.s32.totalorder %s34, 1
      %p262 = scmp.ne.s32.totalorder %s257, %s259
      %p263 = scmp.eq.s32.totalorder %s34, 0
      %p264 = por %p262, %p263
      %p265 = scmp.ne.s32.totalorder %s257, %s259
      %p266 = scmp.eq.s32.totalorder %s39, 1
      %p267 = por %p265, %p266
      %p268 = scmp.ne.s32.totalorder %s259, %s260
      %p269 = scmp.eq.s32.totalorder %s39, 0
      %p270 = por %p268, %p269
      %p271 = scmp.ne.s32.totalorder %s259, %s260
      %p272 = scmp.eq.s32.totalorder %s40, 1
      %p273 = por %p271, %p272
      %p275 = scmp.ne.s32.totalorder %s260, %s274
      %p276 = scmp.eq.s32.totalorder %s40, 0
      %p277 = por %p275, %p276
      %s279 = sadd.s32 %s278, 1
      %p282 = scmp.eq.s32.totalorder %s34, 1
      %p283 = scmp.ne.s32.totalorder %s278, %s280
      %p284 = scmp.eq.s32.totalorder %s34, 0
      %p285 = por %p283, %p284
      %p286 = scmp.ne.s32.totalorder %s278, %s280
      %p287 = scmp.eq.s32.totalorder %s39, 1
      %p288 = por %p286, %p287
      %p289 = scmp.ne.s32.totalorder %s280, %s281
      %p290 = scmp.eq.s32.totalorder %s39, 0
      %p291 = por %p289, %p290
      %p292 = scmp.ne.s32.totalorder %s280, %s281
      %p293 = scmp.eq.s32.totalorder %s40, 1
      %p294 = por %p292, %p293
      %p296 = scmp.ne.s32.totalorder %s281, %s295
      %p297 = scmp.eq.s32.totalorder %s40, 0
      %p298 = por %p296, %p297
      %s300 = sadd.s32 %s299, 1
      %p303 = scmp.eq.s32.totalorder %s34, 1
      %p304 = scmp.ne.s32.totalorder %s299, %s301
      %p305 = scmp.eq.s32.totalorder %s34, 0
      %p306 = por %p304, %p305
      %p307 = scmp.ne.s32.totalorder %s299, %s301
      %p308 = scmp.eq.s32.totalorder %s39, 1
      %p309 = por %p307, %p308
      %p310 = scmp.ne.s32.totalorder %s301, %s302
      %p311 = scmp.eq.s32.totalorder %s39, 0
      %p312 = por %p310, %p311
      %p313 = scmp.ne.s32.totalorder %s301, %s302
      %p314 = scmp.eq.s32.totalorder %s40, 1
      %p315 = por %p313, %p314
      %p317 = scmp.ne.s32.totalorder %s302, %s316
      %p318 = scmp.eq.s32.totalorder %s40, 0
      %p319 = por %p317, %p318
      %s320 = ssub.s32 %s34, %s41
      %p321 = scmp.eq.s32.totalorder %s320, 0
      %s323 = sadd.s32 %s322, 1
      %s324 = scalar_select %p321, %s322, %s323
      %p327 = pneg %p321
      %p328 = scmp.eq.s32.totalorder %s34, 1
      %p329 = por %p327, %p328
      %p330 = scmp.ne.s32.totalorder %s322, %s325
      %p331 = scmp.eq.s32.totalorder %s34, 0
      %p332 = por %p330, %p331
      %p333 = scmp.ne.s32.totalorder %s322, %s325
      %p334 = scmp.eq.s32.totalorder %s39, 1
      %p335 = por %p333, %p334
      %p336 = scmp.ne.s32.totalorder %s325, %s326
      %p337 = scmp.eq.s32.totalorder %s39, 0
      %p338 = por %p336, %p337
      %p339 = scmp.ne.s32.totalorder %s325, %s326
      %p340 = scmp.eq.s32.totalorder %s40, 1
      %p341 = por %p339, %p340
      %p343 = scmp.ne.s32.totalorder %s326, %s342
      %p344 = scmp.eq.s32.totalorder %s40, 0
      %p345 = por %p343, %p344
      %s346 = ssub.s32 %s34, %s41
      %p347 = scmp.eq.s32.totalorder %s346, 0
      %s349 = sadd.s32 %s348, 1
      %s350 = scalar_select %p347, %s348, %s349
      %p353 = pneg %p347
      %p354 = scmp.eq.s32.totalorder %s34, 1
      %p355 = por %p353, %p354
      %p356 = scmp.ne.s32.totalorder %s348, %s351
      %p357 = scmp.eq.s32.totalorder %s34, 0
      %p358 = por %p356, %p357
      %p359 = scmp.ne.s32.totalorder %s348, %s351
      %p360 = scmp.eq.s32.totalorder %s39, 1
      %p361 = por %p359, %p360
      %p362 = scmp.ne.s32.totalorder %s351, %s352
      %p363 = scmp.eq.s32.totalorder %s39, 0
      %p364 = por %p362, %p363
      %p365 = scmp.ne.s32.totalorder %s351, %s352
      %p366 = scmp.eq.s32.totalorder %s40, 1
      %p367 = por %p365, %p366
      %p369 = scmp.ne.s32.totalorder %s352, %s368
      %p370 = scmp.eq.s32.totalorder %s40, 0
      %p371 = por %p369, %p370
      %p372 = scmp.le.s32.totalorder 1, %s34
      %p373 = scmp.lt.s32.totalorder %s34, 3
      %p374 = pnand %p372, %p373
      %p375 = pneg %p374
      // Predicated region
      $region9: #{encode_layer.1} parent=5 // pred_check
        _
      $region10: #{encode_layer.1} parent=5 // pred_check_branch
        %377 = sbr.rel (%p374) target = $region12
      $region11: #{encode_layer.1} parent=5 // pred_region
        %s378 = ssub.s32 %s34, 1
        // Predicated region
        $region13: #{encode_layer.1} parent=11 // pred_check
          %p379 = pneg %p81
        $region14: #{encode_layer.1} parent=11 // pred_check_branch
          %381 = sbr.rel (%p379) target = $region16
        $region15: #{encode_layer.1} parent=11 // pred_region
          %s383 = ssub.s32 12288, 12288
          %384 = vsyncadd [#allocation7], %s383
          %s385 = sshll.u32 [#allocation6], 4
          %s386 = int_to_ptr.vmem [resolvable:$true] %s385
          %391 = dma.hbm_to_vmem [thread:$0]  %s1, 12288, %s386, [#allocation7], 384, 384, 24
        $region16: #{encode_layer.1} parent=11 // pred_fallthru
          _
        // Predicated region
        $region17: #{encode_layer.1} parent=11 // pred_check
          %p392 = pneg %p102
        $region18: #{encode_layer.1} parent=11 // pred_check_branch
          %394 = sbr.rel (%p392) target = $region20
        $region19: #{encode_layer.1} parent=11 // pred_region
          _
        $region20: #{encode_layer.1} parent=11 // pred_fallthru
          _
        // Predicated region
        $region21: #{encode_layer.1} parent=11 // pred_check
          %p395 = pneg %p123
        $region22: #{encode_layer.1} parent=11 // pred_check_branch
          %397 = sbr.rel (%p395) target = $region24
        $region23: #{encode_layer.1} parent=11 // pred_region
          %s399 = ssub.s32 4096, 4096
          %400 = vsyncadd [#allocation7], %s399
          %s401 = sshll.u32 [#allocation8], 4
          %s402 = int_to_ptr.vmem [resolvable:$true] %s401
          %407 = dma.hbm_to_vmem [thread:$0]  %s3, 4096, %s402, [#allocation7], 128, 128, 8
        $region24: #{encode_layer.1} parent=11 // pred_fallthru
          _
        // Predicated region
        $region25: #{encode_layer.1} parent=11 // pred_check
          %p408 = pneg %p144
        $region26: #{encode_layer.1} parent=11 // pred_check_branch
          %410 = sbr.rel (%p408) target = $region28
        $region27: #{encode_layer.1} parent=11 // pred_region
          %s412 = ssub.s32 32, 32
          %413 = vsyncadd [#allocation10], %s412
          %s415 = sshll.u32 [#allocation9], 4
          %s416 = int_to_ptr.vmem [resolvable:$true] %s415
          %418 = dma.hbm_to_vmem [thread:$0]  %s4, 32, %s416, [#allocation10]
        $region28: #{encode_layer.1} parent=11 // pred_fallthru
          _
        // Predicated region
        $region29: #{encode_layer.1} parent=11 // pred_check
          %p419 = pneg %p165
        $region30: #{encode_layer.1} parent=11 // pred_check_branch
          %421 = sbr.rel (%p419) target = $region32
        $region31: #{encode_layer.1} parent=11 // pred_region
          _
        $region32: #{encode_layer.1} parent=11 // pred_fallthru
          _
        // Predicated region
        $region33: #{encode_layer.1} parent=11 // pred_check
          %p422 = pneg %p186
        $region34: #{encode_layer.1} parent=11 // pred_check_branch
          %424 = sbr.rel (%p422) target = $region36
        $region35: #{encode_layer.1} parent=11 // pred_region
          %s426 = ssub.s32 32, 32
          %427 = vsyncadd [#allocation10], %s426
          %s429 = sshll.u32 [#allocation11], 4
          %s430 = int_to_ptr.vmem [resolvable:$true] %s429
          %432 = dma.hbm_to_vmem [thread:$0]  %s6, 32, %s430, [#allocation10]
        $region36: #{encode_layer.1} parent=11 // pred_fallthru
          _
        // Predicated region
        $region37: #{encode_layer.1} parent=11 // pred_check
          %p433 = pneg %p207
        $region38: #{encode_layer.1} parent=11 // pred_check_branch
          %435 = sbr.rel (%p433) target = $region40
        $region39: #{encode_layer.1} parent=11 // pred_region
          %s437 = ssub.s32 8192, 8192
          %438 = vsyncadd [#allocation13], %s437
          %s439 = sshll.u32 [#allocation12], 4
          %s440 = int_to_ptr.vmem [resolvable:$true] %s439
          %445 = dma.hbm_to_vmem [thread:$0]  %s7, 8192, %s440, [#allocation13], 256, 256, 16
        $region40: #{encode_layer.1} parent=11 // pred_fallthru
          _
        // Predicated region
        $region41: #{encode_layer.1} parent=11 // pred_check
          %p446 = pneg %p228
        $region42: #{encode_layer.1} parent=11 // pred_check_branch
          %448 = sbr.rel (%p446) target = $region44
        $region43: #{encode_layer.1} parent=11 // pred_region
          %s450 = ssub.s32 64, 64
          %451 = vsyncadd [#allocation13], %s450
          %s453 = sshll.u32 [#allocation14], 4
          %s454 = int_to_ptr.vmem [resolvable:$true] %s453
          %456 = dma.hbm_to_vmem [thread:$0]  %s8, 64, %s454, [#allocation13]
        $region44: #{encode_layer.1} parent=11 // pred_fallthru
          _
        // Predicated region
        $region45: #{encode_layer.1} parent=11 // pred_check
          %p457 = pneg %p249
        $region46: #{encode_layer.1} parent=11 // pred_check_branch
          %459 = sbr.rel (%p457) target = $region48
        $region47: #{encode_layer.1} parent=11 // pred_region
          %s461 = ssub.s32 8192, 8192
          %462 = vsyncadd [#allocation16], %s461
          %s463 = sshll.u32 [#allocation15], 4
          %s464 = int_to_ptr.vmem [resolvable:$true] %s463
          %469 = dma.hbm_to_vmem [thread:$0]  %s9, 8192, %s464, [#allocation16], 128, 128, 8
        $region48: #{encode_layer.1} parent=11 // pred_fallthru
          _
        // Predicated region
        $region49: #{encode_layer.1} parent=11 // pred_check
          %p470 = pneg %p270
        $region50: #{encode_layer.1} parent=11 // pred_check_branch
          %472 = sbr.rel (%p470) target = $region52
        $region51: #{encode_layer.1} parent=11 // pred_region
          %s474 = ssub.s32 32, 32
          %475 = vsyncadd [#allocation16], %s474
          %s477 = sshll.u32 [#allocation17], 4
          %s478 = int_to_ptr.vmem [resolvable:$true] %s477
          %480 = dma.hbm_to_vmem [thread:$0]  %s10, 32, %s478, [#allocation16]
        $region52: #{encode_layer.1} parent=11 // pred_fallthru
          _
        // Predicated region
        $region53: #{encode_layer.1} parent=11 // pred_check
          %p481 = pneg %p291
        $region54: #{encode_layer.1} parent=11 // pred_check_branch
          %483 = sbr.rel (%p481) target = $region56
        $region55: #{encode_layer.1} parent=11 // pred_region
          _
        $region56: #{encode_layer.1} parent=11 // pred_fallthru
          _
        // Predicated region
        $region57: #{encode_layer.1} parent=11 // pred_check
          %p484 = pneg %p312
        $region58: #{encode_layer.1} parent=11 // pred_check_branch
          %486 = sbr.rel (%p484) target = $region60
        $region59: #{encode_layer.1} parent=11 // pred_region
          _
        $region60: #{encode_layer.1} parent=11 // pred_fallthru
          _
      $region12: #{encode_layer.1} parent=5 // pred_fallthru
        _
      %p487 = scmp.lt.s32.totalorder %s34, 2
      // Predicated region
      $region61: #{encode_layer.1} parent=5 // pred_check
        %p488 = pneg %p487
      $region62: #{encode_layer.1} parent=5 // pred_check_branch
        %490 = sbr.rel (%p488) target = $region64
      $region63: #{encode_layer.1} parent=5 // pred_region
        // Predicated region
        $region65: #{encode_layer.1} parent=63 // pred_check
          %p491 = pneg %p54
        $region66: #{encode_layer.1} parent=63 // pred_check_branch
          %493 = sbr.rel (%p491) target = $region68
        $region67: #{encode_layer.1} parent=63 // pred_region
          %s494 = sand.u32 %s44, 1
          %s495 = scalar_lea.sflag [#allocation4], %s494
          %s496 = sand.u32 %s44, 1
          %s497 = smul.addr %s496, 128
          %s498 = scalar_lea.vmem [#allocation3], %s497
          %s499 = smul.u32 8, %s34
          %s501 = ssub.s32 2048, 2048
          %502 = vsyncadd %s495, %s501
          %s503 = smul.addr %s499, 2
          %s504 = smul.addr %s503, 128
          %s505 = scalar_lea.hbm %s0, %s504
          %s506 = sshll.u32 %s498, 4
          %s507 = int_to_ptr.vmem [resolvable:$true] %s506
          %512 = dma.hbm_to_vmem [thread:$0]  %s505, 2048, %s507, %s495, 256, 256, 16
        $region68: #{encode_layer.1} parent=63 // pred_fallthru
          _
      $region64: #{encode_layer.1} parent=5 // pred_fallthru
        _
      %p513 = scmp.le.s32.totalorder 1, %s34
      %p514 = scmp.lt.s32.totalorder %s34, 3
      %p515 = pnand %p513, %p514
      %p516 = pneg %p515
      // Predicated region
      $region69: #{encode_layer.1} parent=5 // pred_check
        _
      $region70: #{encode_layer.1} parent=5 // pred_check_branch
        %518 = sbr.rel (%p515) target = $region72
      $region71: #{encode_layer.1} parent=5 // pred_region
        %s519 = ssub.s32 %s34, 1
        %s520 = sand.u32 %s47, 1
        %s521 = scalar_lea.sflag [#allocation4], %s520
        %s522 = sand.u32 %s47, 1
        %s523 = smul.addr %s522, 128
        %s524 = scalar_lea.vmem [#allocation3], %s523
        // Predicated region
        $region73: #{encode_layer.1} parent=71 // pred_check
          %p525 = pneg %p60
        $region74: #{encode_layer.1} parent=71 // pred_check_branch
          %527 = sbr.rel (%p525) target = $region76
        $region75: #{encode_layer.1} parent=71 // pred_region
          %528 = dma.done %s521, 2048
        $region76: #{encode_layer.1} parent=71 // pred_fallthru
          _
        // Predicated region
        $region77: #{encode_layer.1} parent=71 // pred_check
          %p529 = pneg %p81
        $region78: #{encode_layer.1} parent=71 // pred_check_branch
          %531 = sbr.rel (%p529) target = $region80
        $region79: #{encode_layer.1} parent=71 // pred_region
          %532 = dma.done [#allocation7], 12288
        $region80: #{encode_layer.1} parent=71 // pred_fallthru
          _
        // Predicated region
        $region81: #{encode_layer.1} parent=71 // pred_check
          %p533 = pneg %p123
        $region82: #{encode_layer.1} parent=71 // pred_check_branch
          %535 = sbr.rel (%p533) target = $region84
        $region83: #{encode_layer.1} parent=71 // pred_region
          %536 = dma.done [#allocation7], 4096
        $region84: #{encode_layer.1} parent=71 // pred_fallthru
          _
        // Predicated region
        $region85: #{encode_layer.1} parent=71 // pred_check
          %p537 = pneg %p144
        $region86: #{encode_layer.1} parent=71 // pred_check_branch
          %539 = sbr.rel (%p537) target = $region88
        $region87: #{encode_layer.1} parent=71 // pred_region
          %540 = dma.done [#allocation10], 32
        $region88: #{encode_layer.1} parent=71 // pred_fallthru
          _
        // Predicated region
        $region89: #{encode_layer.1} parent=71 // pred_check
          %p541 = pneg %p186
        $region90: #{encode_layer.1} parent=71 // pred_check_branch
          %543 = sbr.rel (%p541) target = $region92
        $region91: #{encode_layer.1} parent=71 // pred_region
          %544 = dma.done [#allocation10], 32
        $region92: #{encode_layer.1} parent=71 // pred_fallthru
          _
        // Predicated region
        $region93: #{encode_layer.1} parent=71 // pred_check
          %p545 = pneg %p207
        $region94: #{encode_layer.1} parent=71 // pred_check_branch
          %547 = sbr.rel (%p545) target = $region96
        $region95: #{encode_layer.1} parent=71 // pred_region
          %548 = dma.done [#allocation13], 8192
        $region96: #{encode_layer.1} parent=71 // pred_fallthru
          _
        // Predicated region
        $region97: #{encode_layer.1} parent=71 // pred_check
          %p549 = pneg %p228
        $region98: #{encode_layer.1} parent=71 // pred_check_branch
          %551 = sbr.rel (%p549) target = $region100
        $region99: #{encode_layer.1} parent=71 // pred_region
          %552 = dma.done [#allocation13], 64
        $region100: #{encode_layer.1} parent=71 // pred_fallthru
          _
        // Predicated region
        $region101: #{encode_layer.1} parent=71 // pred_check
          %p553 = pneg %p249
        $region102: #{encode_layer.1} parent=71 // pred_check_branch
          %555 = sbr.rel (%p553) target = $region104
        $region103: #{encode_layer.1} parent=71 // pred_region
          %556 = dma.done [#allocation16], 8192
        $region104: #{encode_layer.1} parent=71 // pred_fallthru
          _
        // Predicated region
        $region105: #{encode_layer.1} parent=71 // pred_check
          %p557 = pneg %p270
        $region106: #{encode_layer.1} parent=71 // pred_check_branch
          %559 = sbr.rel (%p557) target = $region108
        $region107: #{encode_layer.1} parent=71 // pred_region
          %560 = dma.done [#allocation16], 32
        $region108: #{encode_layer.1} parent=71 // pred_fallthru
          _
        %s561 = sand.u32 %s47, 1
        %s562 = scalar_lea.sflag [#allocation4], %s561
        %s563 = sand.u32 %s47, 1
        %s564 = smul.addr %s563, 128
        %s565 = scalar_lea.vmem [#allocation3], %s564
        %p566 = pneg %p60
        %p567 = pneg %p57
        %p568 = pneg %p81
        %p569 = pneg %p78
        %p570 = pneg %p102
        %p571 = pneg %p99
        %p572 = pneg %p123
        %p573 = pneg %p120
        %p574 = pneg %p144
        %p575 = pneg %p141
        %p576 = pneg %p165
        %p577 = pneg %p162
        %p578 = pneg %p186
        %p579 = pneg %p183
        %p580 = pneg %p207
        %p581 = pneg %p204
        %p582 = pneg %p228
        %p583 = pneg %p225
        %p584 = pneg %p249
        %p585 = pneg %p246
        %p586 = pneg %p270
        %p587 = pneg %p267
        %p588 = pneg %p291
        %p589 = pneg %p288
        %p590 = pneg %p312
        %p591 = pneg %p309
        %p592 = pneg %p338
        %p593 = pneg %p335
        %s594 = sand.u32 %s325, 1
        %s595 = scalar_lea.sflag [#allocation5], %s594
        %s596 = sand.u32 %s325, 1
        %s597 = smul.addr %s596, 128
        %s598 = scalar_lea.vmem [#allocation18], %s597
        %p599 = pneg %p364
        %p600 = pneg %p361
        %s601 = sand.u32 %s351, 1
        %s602 = scalar_lea.sflag [#allocation20], %s601
        %s603 = sand.u32 %s351, 1
        %s604 = smul.addr %s603, 256
        %s605 = scalar_lea.vmem [#allocation19], %s604
        %s606 = smul.u32 8, %s39
        %s607 = smul.u32 8, %s39
        %v609 = vld [vmem:[%s524] sm:$0xff]
        %v610 = vld [vmem:[%s524 + $0x8] sm:$0xff]
        %v611 = vld [vmem:[%s524 + $0x10] sm:$0xff]
        %v612 = vld [vmem:[%s524 + $0x18] sm:$0xff]
        %v613 = vld [vmem:[%s524 + $0x20] sm:$0xff]
        %v614 = vld [vmem:[%s524 + $0x28] sm:$0xff]
        %v615 = vld [vmem:[%s524 + $0x30] sm:$0xff]
        %v616 = vld [vmem:[%s524 + $0x38] sm:$0xff]
        %v617 = vld [vmem:[%s524 + $0x40] sm:$0xff]
        %v618 = vld [vmem:[%s524 + $0x48] sm:$0xff]
        %v619 = vld [vmem:[%s524 + $0x50] sm:$0xff]
        %v620 = vld [vmem:[%s524 + $0x58] sm:$0xff]
        %v621 = vld [vmem:[%s524 + $0x60] sm:$0xff]
        %v622 = vld [vmem:[%s524 + $0x68] sm:$0xff]
        %v623 = vld [vmem:[%s524 + $0x70] sm:$0xff]
        %v624 = vld [vmem:[%s524 + $0x78] sm:$0xff]
        %v625 = vpack.c.bf16 %v611, %v609
        %v626 = vpack.c.bf16 %v612, %v610
        %v627 = vpack.c.bf16 %v615, %v613
        %v628 = vpack.c.bf16 %v616, %v614
        %v629 = vpack.c.bf16 %v619, %v617
        %v630 = vpack.c.bf16 %v620, %v618
        %v631 = vpack.c.bf16 %v623, %v621
        %v632 = vpack.c.bf16 %v624, %v622
        %v633 = vld [vmem:[#allocation6] sm:$0xff]
        %v634 = vld [vmem:[#allocation6 + $0x18] sm:$0xff]
        %v635 = vld [vmem:[#allocation6 + $0x30] sm:$0xff]
        %v636 = vld [vmem:[#allocation6 + $0x48] sm:$0xff]
        %v637 = vld [vmem:[#allocation6 + $0x60] sm:$0xff]
        %v638 = vld [vmem:[#allocation6 + $0x78] sm:$0xff]
        %v639 = vld [vmem:[#allocation6 + $0x90] sm:$0xff]
        %v640 = vld [vmem:[#allocation6 + $0xa8] sm:$0xff]
        %v641 = vld [vmem:[#allocation6 + $0xc0] sm:$0xff]
        %v642 = vld [vmem:[#allocation6 + $0xd8] sm:$0xff]
        %v643 = vld [vmem:[#allocation6 + $0xf0] sm:$0xff]
        %v644 = vld [vmem:[#allocation6 + $0x108] sm:$0xff]
        %v645 = vld [vmem:[#allocation6 + $0x120] sm:$0xff]
        %v646 = vld [vmem:[#allocation6 + $0x138] sm:$0xff]
        %v647 = vld [vmem:[#allocation6 + $0x150] sm:$0xff]
        %v648 = vld [vmem:[#allocation6 + $0x168] sm:$0xff]
        %v649 = vld [vmem:[#allocation6 + $0x180] sm:$0xff]
        %v650 = vld [vmem:[#allocation6 + $0x198] sm:$0xff]
        %v651 = vld [vmem:[#allocation6 + $0x1b0] sm:$0xff]
        %v652 = vld [vmem:[#allocation6 + $0x1c8] sm:$0xff]
        %v653 = vld [vmem:[#allocation6 + $0x1e0] sm:$0xff]
        %v654 = vld [vmem:[#allocation6 + $0x1f8] sm:$0xff]
        %v655 = vld [vmem:[#allocation6 + $0x210] sm:$0xff]
        %v656 = vld [vmem:[#allocation6 + $0x228] sm:$0xff]
        %v657 = vld [vmem:[#allocation6 + $0x240] sm:$0xff]
        %v658 = vld [vmem:[#allocation6 + $0x258] sm:$0xff]
        %v659 = vld [vmem:[#allocation6 + $0x270] sm:$0xff]
        %v660 = vld [vmem:[#allocation6 + $0x288] sm:$0xff]
        %v661 = vld [vmem:[#allocation6 + $0x2a0] sm:$0xff]
        %v662 = vld [vmem:[#allocation6 + $0x2b8] sm:$0xff]
        %v663 = vld [vmem:[#allocation6 + $0x2d0] sm:$0xff]
        %v664 = vld [vmem:[#allocation6 + $0x2e8] sm:$0xff]
        %v665 = vld [vmem:[%s2] sm:$0x3]
        %v667 = vlaneseq
        %v668 = vshrl.u32 %v667, 7
        %v669 = vsub.s32 0, %v668
        %v670 = vrot.slane %v665, %v669
        %v671 = vlaneseq
        %v672 = vshrl.u32 %v671, 7
        %v673 = vsub.s32 1, %v672
        %v674 = vrot.slane %v665, %v673
        %v709 = vunpack.c.l.b16 %v633
        %v710 = vunpack.c.h.b16 %v633
        %v711 = vunpack.c.l.b16 %v634
        %v712 = vunpack.c.h.b16 %v634
        %v713 = vunpack.c.l.b16 %v635
        %v714 = vunpack.c.h.b16 %v635
        %v715 = vunpack.c.l.b16 %v636
        %v716 = vunpack.c.h.b16 %v636
        %v717 = vunpack.c.l.b16 %v637
        %v718 = vunpack.c.h.b16 %v637
        %v719 = vunpack.c.l.b16 %v638
        %v720 = vunpack.c.h.b16 %v638
        %v721 = vunpack.c.l.b16 %v639
        %v722 = vunpack.c.h.b16 %v639
        %v723 = vunpack.c.l.b16 %v640
        %v724 = vunpack.c.h.b16 %v640
        %v725 = vunpack.c.l.b16 %v641
        %v726 = vunpack.c.h.b16 %v641
        %v727 = vunpack.c.l.b16 %v642
        %v728 = vunpack.c.h.b16 %v642
        %v729 = vunpack.c.l.b16 %v643
        %v730 = vunpack.c.h.b16 %v643
        %v731 = vunpack.c.l.b16 %v644
        %v732 = vunpack.c.h.b16 %v644
        %v733 = vunpack.c.l.b16 %v645
        %v734 = vunpack.c.h.b16 %v645
        %v735 = vunpack.c.l.b16 %v646
        %v736 = vunpack.c.h.b16 %v646
        %v737 = vunpack.c.l.b16 %v647
        %v738 = vunpack.c.h.b16 %v647
        %v739 = vunpack.c.l.b16 %v648
        %v740 = vunpack.c.h.b16 %v648
        %v741 = vunpack.c.l.b16 %v649
        %v742 = vunpack.c.h.b16 %v649
        %v743 = vunpack.c.l.b16 %v650
        %v744 = vunpack.c.h.b16 %v650
        %v745 = vunpack.c.l.b16 %v651
        %v746 = vunpack.c.h.b16 %v651
        %v747 = vunpack.c.l.b16 %v652
        %v748 = vunpack.c.h.b16 %v652
        %v749 = vunpack.c.l.b16 %v653
        %v750 = vunpack.c.h.b16 %v653
        %v751 = vunpack.c.l.b16 %v654
        %v752 = vunpack.c.h.b16 %v654
        %v753 = vunpack.c.l.b16 %v655
        %v754 = vunpack.c.h.b16 %v655
        %v755 = vunpack.c.l.b16 %v656
        %v756 = vunpack.c.h.b16 %v656
        %v757 = vunpack.c.l.b16 %v657
        %v758 = vunpack.c.h.b16 %v657
        %v759 = vunpack.c.l.b16 %v658
        %v760 = vunpack.c.h.b16 %v658
        %v761 = vunpack.c.l.b16 %v659
        %v762 = vunpack.c.h.b16 %v659
        %v763 = vunpack.c.l.b16 %v660
        %v764 = vunpack.c.h.b16 %v660
        %v765 = vunpack.c.l.b16 %v661
        %v766 = vunpack.c.h.b16 %v661
        %v767 = vunpack.c.l.b16 %v662
        %v768 = vunpack.c.h.b16 %v662
        %v769 = vunpack.c.l.b16 %v663
        %v770 = vunpack.c.h.b16 %v663
        %v771 = vunpack.c.l.b16 %v664
        %v772 = vunpack.c.h.b16 %v664
        %v773 = vpack.c.b16 %v711, %v709
        %v774 = vpack.c.b16 %v712, %v710
        %v775 = vpack.c.b16 %v715, %v713
        %v776 = vpack.c.b16 %v716, %v714
        %v777 = vpack.c.b16 %v719, %v717
        %v778 = vpack.c.b16 %v720, %v718
        %v779 = vpack.c.b16 %v723, %v721
        %v780 = vpack.c.b16 %v724, %v722
        %v781 = vpack.c.b16 %v727, %v725
        %v782 = vpack.c.b16 %v728, %v726
        %v783 = vpack.c.b16 %v731, %v729
        %v784 = vpack.c.b16 %v732, %v730
        %v785 = vpack.c.b16 %v735, %v733
        %v786 = vpack.c.b16 %v736, %v734
        %v787 = vpack.c.b16 %v739, %v737
        %v788 = vpack.c.b16 %v740, %v738
        %v789 = vpack.c.b16 %v743, %v741
        %v790 = vpack.c.b16 %v744, %v742
        %v791 = vpack.c.b16 %v747, %v745
        %v792 = vpack.c.b16 %v748, %v746
        %v793 = vpack.c.b16 %v751, %v749
        %v794 = vpack.c.b16 %v752, %v750
        %v795 = vpack.c.b16 %v755, %v753
        %v796 = vpack.c.b16 %v756, %v754
        %v797 = vpack.c.b16 %v759, %v757
        %v798 = vpack.c.b16 %v760, %v758
        %v799 = vpack.c.b16 %v763, %v761
        %v800 = vpack.c.b16 %v764, %v762
        %v801 = vpack.c.b16 %v767, %v765
        %v802 = vpack.c.b16 %v768, %v766
        %v803 = vpack.c.b16 %v771, %v769
        %v804 = vpack.c.b16 %v772, %v770
        %837 = vmatprep.subr.bf16.mxu0 %v788
        %838 = vmatpush1.bf16.msra.mxu0 %v787
        %839 = vmatprep.subr.bf16.mxu0 %v786
        %840 = vmatpush1.bf16.msra.mxu0 %v785
        %841 = vmatprep.subr.bf16.mxu0 %v784
        %842 = vmatpush1.bf16.msra.mxu0 %v783
        %843 = vmatprep.subr.bf16.mxu0 %v782
        %844 = vmatpush1.bf16.msra.mxu0 %v781
        %845 = vmatprep.subr.bf16.mxu0 %v780
        %846 = vmatpush1.bf16.msra.mxu0 %v779
        %847 = vmatprep.subr.bf16.mxu0 %v778
        %848 = vmatpush1.bf16.msra.mxu0 %v777
        %849 = vmatprep.subr.bf16.mxu0 %v776
        %850 = vmatpush1.bf16.msra.mxu0 %v775
        %851 = vmatprep.subr.bf16.mxu0 %v774
        %852 = vmatpush1.bf16.msra.mxu0 %v773
        %853 = vmatprep.subr.bf16.mxu0 %v804
        %854 = vmatpush2.bf16.msra.mxu0 %v803
        %855 = vmatprep.subr.bf16.mxu0 %v802
        %856 = vmatpush2.bf16.msra.mxu0 %v801
        %857 = vmatprep.subr.bf16.mxu0 %v800
        %858 = vmatpush2.bf16.msra.mxu0 %v799
        %859 = vmatprep.subr.bf16.mxu0 %v798
        %860 = vmatpush2.bf16.msra.mxu0 %v797
        %861 = vmatprep.subr.bf16.mxu0 %v796
        %862 = vmatpush2.bf16.msra.mxu0 %v795
        %863 = vmatprep.subr.bf16.mxu0 %v794
        %864 = vmatpush2.bf16.msra.mxu0 %v793
        %865 = vmatprep.subr.bf16.mxu0 %v792
        %866 = vmatpush2.bf16.msra.mxu0 %v791
        %867 = vmatprep.subr.bf16.mxu0 %v790
        %868 = vmatpush2.bf16.msra.mxu0 %v789
        %869 = vmatprep.mubr.bf16.mxu0 %v626
        %870 = vmatmul.mubr.bf16.gmra.mxu0 %v625
        %v871 = vpop.f32.mrf.mxu0
        %v872 = vadd.f32 %v670, %v871
        %v873 = vpop.f32.mrf.mxu0
        %v874 = vadd.f32 %v674, %v873
        %v875 = vpop.f32.mrf.mxu0
        %v876 = vadd.f32 %v670, %v875
        %v877 = vpop.f32.mrf.mxu0
        %v878 = vadd.f32 %v674, %v877
        %879 = vmatprep.mubr.bf16.mxu0 %v628
        %880 = vmatmul.mubr.bf16.gmra.mxu0 %v627
        %v881 = vpop.f32.mrf.mxu0
        %v882 = vadd.f32 %v670, %v881
        %v883 = vpop.f32.mrf.mxu0
        %v884 = vadd.f32 %v674, %v883
        %v885 = vpop.f32.mrf.mxu0
        %v886 = vadd.f32 %v670, %v885
        %v887 = vpop.f32.mrf.mxu0
        %v888 = vadd.f32 %v674, %v887
        %889 = vmatprep.mubr.bf16.mxu0 %v630
        %890 = vmatmul.mubr.bf16.gmra.mxu0 %v629
        %v891 = vpop.f32.mrf.mxu0
        %v892 = vadd.f32 %v670, %v891
        %v893 = vpop.f32.mrf.mxu0
        %v894 = vadd.f32 %v674, %v893
        %v895 = vpop.f32.mrf.mxu0
        %v896 = vadd.f32 %v670, %v895
        %v897 = vpop.f32.mrf.mxu0
        %v898 = vadd.f32 %v674, %v897
        %899 = vmatprep.mubr.bf16.mxu0 %v632
        %900 = vmatmul.mubr.bf16.gmra.mxu0 %v631
        %v901 = vpop.f32.mrf.mxu0
        %v902 = vadd.f32 %v670, %v901
        %v903 = vpop.f32.mrf.mxu0
        %v904 = vadd.f32 %v674, %v903
        %v905 = vpop.f32.mrf.mxu0
        %v906 = vadd.f32 %v670, %v905
        %v907 = vpop.f32.mrf.mxu0
        %v908 = vadd.f32 %v674, %v907
        %909 = vdwg.mxu0
        %v910 = vpack.c.bf16 %v876, %v872
        %v911 = vpack.c.bf16 %v878, %v874
        %v912 = vpack.c.bf16 %v886, %v882
        %v913 = vpack.c.bf16 %v888, %v884
        %v914 = vpack.c.bf16 %v896, %v892
        %v915 = vpack.c.bf16 %v898, %v894
        %v916 = vpack.c.bf16 %v906, %v902
        %v917 = vpack.c.bf16 %v908, %v904
        %v926 = vunpack.c.l.b16 %v910
        %v927 = vunpack.c.l.b16 %v911
        %v928 = vunpack.c.h.b16 %v910
        %v929 = vunpack.c.h.b16 %v911
        %v930 = vunpack.c.l.b16 %v912
        %v931 = vunpack.c.l.b16 %v913
        %v932 = vunpack.c.h.b16 %v912
        %v933 = vunpack.c.h.b16 %v913
        %v934 = vunpack.c.l.b16 %v914
        %v935 = vunpack.c.l.b16 %v915
        %v936 = vunpack.c.h.b16 %v914
        %v937 = vunpack.c.h.b16 %v915
        %v938 = vunpack.c.l.b16 %v916
        %v939 = vunpack.c.l.b16 %v917
        %v940 = vunpack.c.h.b16 %v916
        %v941 = vunpack.c.h.b16 %v917
        %v942 = vpack.c.b16 %v927, %v926
        %v943 = vpack.c.b16 %v929, %v928
        %v944 = vpack.c.b16 %v931, %v930
        %v945 = vpack.c.b16 %v933, %v932
        %v946 = vpack.c.b16 %v935, %v934
        %v947 = vpack.c.b16 %v937, %v936
        %v948 = vpack.c.b16 %v939, %v938
        %v949 = vpack.c.b16 %v941, %v940
        %958 = vst [vmem:[#allocation2] sm:$0xff] %v942
        %959 = vst [vmem:[#allocation2 + $0x18] sm:$0xff] %v943
        %960 = vst [vmem:[#allocation2 + $0x30] sm:$0xff] %v944
        %961 = vst [vmem:[#allocation2 + $0x48] sm:$0xff] %v945
        %962 = vst [vmem:[#allocation2 + $0x60] sm:$0xff] %v946
        %963 = vst [vmem:[#allocation2 + $0x78] sm:$0xff] %v947
        %964 = vst [vmem:[#allocation2 + $0x90] sm:$0xff] %v948
        %965 = vst [vmem:[#allocation2 + $0xa8] sm:$0xff] %v949
        %v966 = vld [vmem:[#allocation6 + $0x8] sm:$0xff]
        %v967 = vld [vmem:[#allocation6 + $0x20] sm:$0xff]
        %v968 = vld [vmem:[#allocation6 + $0x38] sm:$0xff]
        %v969 = vld [vmem:[#allocation6 + $0x50] sm:$0xff]
        %v970 = vld [vmem:[#allocation6 + $0x68] sm:$0xff]
        %v971 = vld [vmem:[#allocation6 + $0x80] sm:$0xff]
        %v972 = vld [vmem:[#allocation6 + $0x98] sm:$0xff]
        %v973 = vld [vmem:[#allocation6 + $0xb0] sm:$0xff]
        %v974 = vld [vmem:[#allocation6 + $0xc8] sm:$0xff]
        %v975 = vld [vmem:[#allocation6 + $0xe0] sm:$0xff]
        %v976 = vld [vmem:[#allocation6 + $0xf8] sm:$0xff]
        %v977 = vld [vmem:[#allocation6 + $0x110] sm:$0xff]
        %v978 = vld [vmem:[#allocation6 + $0x128] sm:$0xff]
        %v979 = vld [vmem:[#allocation6 + $0x140] sm:$0xff]
        %v980 = vld [vmem:[#allocation6 + $0x158] sm:$0xff]
        %v981 = vld [vmem:[#allocation6 + $0x170] sm:$0xff]
        %v982 = vld [vmem:[#allocation6 + $0x188] sm:$0xff]
        %v983 = vld [vmem:[#allocation6 + $0x1a0] sm:$0xff]
        %v984 = vld [vmem:[#allocation6 + $0x1b8] sm:$0xff]
        %v985 = vld [vmem:[#allocation6 + $0x1d0] sm:$0xff]
        %v986 = vld [vmem:[#allocation6 + $0x1e8] sm:$0xff]
        %v987 = vld [vmem:[#allocation6 + $0x200] sm:$0xff]
        %v988 = vld [vmem:[#allocation6 + $0x218] sm:$0xff]
        %v989 = vld [vmem:[#allocation6 + $0x230] sm:$0xff]
        %v990 = vld [vmem:[#allocation6 + $0x248] sm:$0xff]
        %v991 = vld [vmem:[#allocation6 + $0x260] sm:$0xff]
        %v992 = vld [vmem:[#allocation6 + $0x278] sm:$0xff]
        %v993 = vld [vmem:[#allocation6 + $0x290] sm:$0xff]
        %v994 = vld [vmem:[#allocation6 + $0x2a8] sm:$0xff]
        %v995 = vld [vmem:[#allocation6 + $0x2c0] sm:$0xff]
        %v996 = vld [vmem:[#allocation6 + $0x2d8] sm:$0xff]
        %v997 = vld [vmem:[#allocation6 + $0x2f0] sm:$0xff]
        %v998 = vld [vmem:[%s2 + $0x2] sm:$0x3]
        %v1000 = vlaneseq
        %v1001 = vshrl.u32 %v1000, 7
        %v1002 = vsub.s32 0, %v1001
        %v1003 = vrot.slane %v998, %v1002
        %v1004 = vlaneseq
        %v1005 = vshrl.u32 %v1004, 7
        %v1006 = vsub.s32 1, %v1005
        %v1007 = vrot.slane %v998, %v1006
        %v1042 = vunpack.c.l.b16 %v966
        %v1043 = vunpack.c.h.b16 %v966
        %v1044 = vunpack.c.l.b16 %v967
        %v1045 = vunpack.c.h.b16 %v967
        %v1046 = vunpack.c.l.b16 %v968
        %v1047 = vunpack.c.h.b16 %v968
        %v1048 = vunpack.c.l.b16 %v969
        %v1049 = vunpack.c.h.b16 %v969
        %v1050 = vunpack.c.l.b16 %v970
        %v1051 = vunpack.c.h.b16 %v970
        %v1052 = vunpack.c.l.b16 %v971
        %v1053 = vunpack.c.h.b16 %v971
        %v1054 = vunpack.c.l.b16 %v972
        %v1055 = vunpack.c.h.b16 %v972
        %v1056 = vunpack.c.l.b16 %v973
        %v1057 = vunpack.c.h.b16 %v973
        %v1058 = vunpack.c.l.b16 %v974
        %v1059 = vunpack.c.h.b16 %v974
        %v1060 = vunpack.c.l.b16 %v975
        %v1061 = vunpack.c.h.b16 %v975
        %v1062 = vunpack.c.l.b16 %v976
        %v1063 = vunpack.c.h.b16 %v976
        %v1064 = vunpack.c.l.b16 %v977
        %v1065 = vunpack.c.h.b16 %v977
        %v1066 = vunpack.c.l.b16 %v978
        %v1067 = vunpack.c.h.b16 %v978
        %v1068 = vunpack.c.l.b16 %v979
        %v1069 = vunpack.c.h.b16 %v979
        %v1070 = vunpack.c.l.b16 %v980
        %v1071 = vunpack.c.h.b16 %v980
        %v1072 = vunpack.c.l.b16 %v981
        %v1073 = vunpack.c.h.b16 %v981
        %v1074 = vunpack.c.l.b16 %v982
        %v1075 = vunpack.c.h.b16 %v982
        %v1076 = vunpack.c.l.b16 %v983
        %v1077 = vunpack.c.h.b16 %v983
        %v1078 = vunpack.c.l.b16 %v984
        %v1079 = vunpack.c.h.b16 %v984
        %v1080 = vunpack.c.l.b16 %v985
        %v1081 = vunpack.c.h.b16 %v985
        %v1082 = vunpack.c.l.b16 %v986
        %v1083 = vunpack.c.h.b16 %v986
        %v1084 = vunpack.c.l.b16 %v987
        %v1085 = vunpack.c.h.b16 %v987
        %v1086 = vunpack.c.l.b16 %v988
        %v1087 = vunpack.c.h.b16 %v988
        %v1088 = vunpack.c.l.b16 %v989
        %v1089 = vunpack.c.h.b16 %v989
        %v1090 = vunpack.c.l.b16 %v990
        %v1091 = vunpack.c.h.b16 %v990
        %v1092 = vunpack.c.l.b16 %v991
        %v1093 = vunpack.c.h.b16 %v991
        %v1094 = vunpack.c.l.b16 %v992
        %v1095 = vunpack.c.h.b16 %v992
        %v1096 = vunpack.c.l.b16 %v993
        %v1097 = vunpack.c.h.b16 %v993
        %v1098 = vunpack.c.l.b16 %v994
        %v1099 = vunpack.c.h.b16 %v994
        %v1100 = vunpack.c.l.b16 %v995
        %v1101 = vunpack.c.h.b16 %v995
        %v1102 = vunpack.c.l.b16 %v996
        %v1103 = vunpack.c.h.b16 %v996
        %v1104 = vunpack.c.l.b16 %v997
        %v1105 = vunpack.c.h.b16 %v997
        %v1106 = vpack.c.b16 %v1044, %v1042
        %v1107 = vpack.c.b16 %v1045, %v1043
        %v1108 = vpack.c.b16 %v1048, %v1046
        %v1109 = vpack.c.b16 %v1049, %v1047
        %v1110 = vpack.c.b16 %v1052, %v1050
        %v1111 = vpack.c.b16 %v1053, %v1051
        %v1112 = vpack.c.b16 %v1056, %v1054
        %v1113 = vpack.c.b16 %v1057, %v1055
        %v1114 = vpack.c.b16 %v1060, %v1058
        %v1115 = vpack.c.b16 %v1061, %v1059
        %v1116 = vpack.c.b16 %v1064, %v1062
        %v1117 = vpack.c.b16 %v1065, %v1063
        %v1118 = vpack.c.b16 %v1068, %v1066
        %v1119 = vpack.c.b16 %v1069, %v1067
        %v1120 = vpack.c.b16 %v1072, %v1070
        %v1121 = vpack.c.b16 %v1073, %v1071
        %v1122 = vpack.c.b16 %v1076, %v1074
        %v1123 = vpack.c.b16 %v1077, %v1075
        %v1124 = vpack.c.b16 %v1080, %v1078
        %v1125 = vpack.c.b16 %v1081, %v1079
        %v1126 = vpack.c.b16 %v1084, %v1082
        %v1127 = vpack.c.b16 %v1085, %v1083
        %v1128 = vpack.c.b16 %v1088, %v1086
        %v1129 = vpack.c.b16 %v1089, %v1087
        %v1130 = vpack.c.b16 %v1092, %v1090
        %v1131 = vpack.c.b16 %v1093, %v1091
        %v1132 = vpack.c.b16 %v1096, %v1094
        %v1133 = vpack.c.b16 %v1097, %v1095
        %v1134 = vpack.c.b16 %v1100, %v1098
        %v1135 = vpack.c.b16 %v1101, %v1099
        %v1136 = vpack.c.b16 %v1104, %v1102
        %v1137 = vpack.c.b16 %v1105, %v1103
        %1170 = vmatprep.subr.bf16.mxu0 %v1121
        %1171 = vmatpush1.bf16.msra.mxu0 %v1120
        %1172 = vmatprep.subr.bf16.mxu0 %v1119
        %1173 = vmatpush1.bf16.msra.mxu0 %v1118
        %1174 = vmatprep.subr.bf16.mxu0 %v1117
        %1175 = vmatpush1.bf16.msra.mxu0 %v1116
        %1176 = vmatprep.subr.bf16.mxu0 %v1115
        %1177 = vmatpush1.bf16.msra.mxu0 %v1114
        %1178 = vmatprep.subr.bf16.mxu0 %v1113
        %1179 = vmatpush1.bf16.msra.mxu0 %v1112
        %1180 = vmatprep.subr.bf16.mxu0 %v1111
        %1181 = vmatpush1.bf16.msra.mxu0 %v1110
        %1182 = vmatprep.subr.bf16.mxu0 %v1109
        %1183 = vmatpush1.bf16.msra.mxu0 %v1108
        %1184 = vmatprep.subr.bf16.mxu0 %v1107
        %1185 = vmatpush1.bf16.msra.mxu0 %v1106
        %1186 = vmatprep.subr.bf16.mxu0 %v1137
        %1187 = vmatpush2.bf16.msra.mxu0 %v1136
        %1188 = vmatprep.subr.bf16.mxu0 %v1135
        %1189 = vmatpush2.bf16.msra.mxu0 %v1134
        %1190 = vmatprep.subr.bf16.mxu0 %v1133
        %1191 = vmatpush2.bf16.msra.mxu0 %v1132
        %1192 = vmatprep.subr.bf16.mxu0 %v1131
        %1193 = vmatpush2.bf16.msra.mxu0 %v1130
        %1194 = vmatprep.subr.bf16.mxu0 %v1129
        %1195 = vmatpush2.bf16.msra.mxu0 %v1128
        %1196 = vmatprep.subr.bf16.mxu0 %v1127
        %1197 = vmatpush2.bf16.msra.mxu0 %v1126
        %1198 = vmatprep.subr.bf16.mxu0 %v1125
        %1199 = vmatpush2.bf16.msra.mxu0 %v1124
        %1200 = vmatprep.subr.bf16.mxu0 %v1123
        %1201 = vmatpush2.bf16.msra.mxu0 %v1122
        %1202 = vmatprep.mubr.bf16.mxu0 %v626
        %1203 = vmatmul.mubr.bf16.gmra.mxu0 %v625
        %v1204 = vpop.f32.mrf.mxu0
        %v1205 = vadd.f32 %v1003, %v1204
        %v1206 = vpop.f32.mrf.mxu0
        %v1207 = vadd.f32 %v1007, %v1206
        %v1208 = vpop.f32.mrf.mxu0
        %v1209 = vadd.f32 %v1003, %v1208
        %v1210 = vpop.f32.mrf.mxu0
        %v1211 = vadd.f32 %v1007, %v1210
        %1212 = vmatprep.mubr.bf16.mxu0 %v628
        %1213 = vmatmul.mubr.bf16.gmra.mxu0 %v627
        %v1214 = vpop.f32.mrf.mxu0
        %v1215 = vadd.f32 %v1003, %v1214
        %v1216 = vpop.f32.mrf.mxu0
        %v1217 = vadd.f32 %v1007, %v1216
        %v1218 = vpop.f32.mrf.mxu0
        %v1219 = vadd.f32 %v1003, %v1218
        %v1220 = vpop.f32.mrf.mxu0
        %v1221 = vadd.f32 %v1007, %v1220
        %1222 = vmatprep.mubr.bf16.mxu0 %v630
        %1223 = vmatmul.mubr.bf16.gmra.mxu0 %v629
        %v1224 = vpop.f32.mrf.mxu0
        %v1225 = vadd.f32 %v1003, %v1224
        %v1226 = vpop.f32.mrf.mxu0
        %v1227 = vadd.f32 %v1007, %v1226
        %v1228 = vpop.f32.mrf.mxu0
        %v1229 = vadd.f32 %v1003, %v1228
        %v1230 = vpop.f32.mrf.mxu0
        %v1231 = vadd.f32 %v1007, %v1230
        %1232 = vmatprep.mubr.bf16.mxu0 %v632
        %1233 = vmatmul.mubr.bf16.gmra.mxu0 %v631
        %v1234 = vpop.f32.mrf.mxu0
        %v1235 = vadd.f32 %v1003, %v1234
        %v1236 = vpop.f32.mrf.mxu0
        %v1237 = vadd.f32 %v1007, %v1236
        %v1238 = vpop.f32.mrf.mxu0
        %v1239 = vadd.f32 %v1003, %v1238
        %v1240 = vpop.f32.mrf.mxu0
        %v1241 = vadd.f32 %v1007, %v1240
        %1242 = vdwg.mxu0
        %v1243 = vpack.c.bf16 %v1209, %v1205
        %v1244 = vpack.c.bf16 %v1211, %v1207
        %v1245 = vpack.c.bf16 %v1219, %v1215
        %v1246 = vpack.c.bf16 %v1221, %v1217
        %v1247 = vpack.c.bf16 %v1229, %v1225
        %v1248 = vpack.c.bf16 %v1231, %v1227
        %v1249 = vpack.c.bf16 %v1239, %v1235
        %v1250 = vpack.c.bf16 %v1241, %v1237
        %v1259 = vunpack.c.l.b16 %v1243
        %v1260 = vunpack.c.l.b16 %v1244
        %v1261 = vunpack.c.h.b16 %v1243
        %v1262 = vunpack.c.h.b16 %v1244
        %v1263 = vunpack.c.l.b16 %v1245
        %v1264 = vunpack.c.l.b16 %v1246
        %v1265 = vunpack.c.h.b16 %v1245
        %v1266 = vunpack.c.h.b16 %v1246
        %v1267 = vunpack.c.l.b16 %v1247
        %v1268 = vunpack.c.l.b16 %v1248
        %v1269 = vunpack.c.h.b16 %v1247
        %v1270 = vunpack.c.h.b16 %v1248
        %v1271 = vunpack.c.l.b16 %v1249
        %v1272 = vunpack.c.l.b16 %v1250
        %v1273 = vunpack.c.h.b16 %v1249
        %v1274 = vunpack.c.h.b16 %v1250
        %v1275 = vpack.c.b16 %v1260, %v1259
        %v1276 = vpack.c.b16 %v1262, %v1261
        %v1277 = vpack.c.b16 %v1264, %v1263
        %v1278 = vpack.c.b16 %v1266, %v1265
        %v1279 = vpack.c.b16 %v1268, %v1267
        %v1280 = vpack.c.b16 %v1270, %v1269
        %v1281 = vpack.c.b16 %v1272, %v1271
        %v1282 = vpack.c.b16 %v1274, %v1273
        %1291 = vst [vmem:[#allocation2 + $0x8] sm:$0xff] %v1275
        %1292 = vst [vmem:[#allocation2 + $0x20] sm:$0xff] %v1276
        %1293 = vst [vmem:[#allocation2 + $0x38] sm:$0xff] %v1277
        %1294 = vst [vmem:[#allocation2 + $0x50] sm:$0xff] %v1278
        %1295 = vst [vmem:[#allocation2 + $0x68] sm:$0xff] %v1279
        %1296 = vst [vmem:[#allocation2 + $0x80] sm:$0xff] %v1280
        %1297 = vst [vmem:[#allocation2 + $0x98] sm:$0xff] %v1281
        %1298 = vst [vmem:[#allocation2 + $0xb0] sm:$0xff] %v1282
        %v1299 = vld [vmem:[#allocation6 + $0x10] sm:$0xff]
        %v1300 = vld [vmem:[#allocation6 + $0x28] sm:$0xff]
        %v1301 = vld [vmem:[#allocation6 + $0x40] sm:$0xff]
        %v1302 = vld [vmem:[#allocation6 + $0x58] sm:$0xff]
        %v1303 = vld [vmem:[#allocation6 + $0x70] sm:$0xff]
        %v1304 = vld [vmem:[#allocation6 + $0x88] sm:$0xff]
        %v1305 = vld [vmem:[#allocation6 + $0xa0] sm:$0xff]
        %v1306 = vld [vmem:[#allocation6 + $0xb8] sm:$0xff]
        %v1307 = vld [vmem:[#allocation6 + $0xd0] sm:$0xff]
        %v1308 = vld [vmem:[#allocation6 + $0xe8] sm:$0xff]
        %v1309 = vld [vmem:[#allocation6 + $0x100] sm:$0xff]
        %v1310 = vld [vmem:[#allocation6 + $0x118] sm:$0xff]
        %v1311 = vld [vmem:[#allocation6 + $0x130] sm:$0xff]
        %v1312 = vld [vmem:[#allocation6 + $0x148] sm:$0xff]
        %v1313 = vld [vmem:[#allocation6 + $0x160] sm:$0xff]
        %v1314 = vld [vmem:[#allocation6 + $0x178] sm:$0xff]
        %v1315 = vld [vmem:[#allocation6 + $0x190] sm:$0xff]
        %v1316 = vld [vmem:[#allocation6 + $0x1a8] sm:$0xff]
        %v1317 = vld [vmem:[#allocation6 + $0x1c0] sm:$0xff]
        %v1318 = vld [vmem:[#allocation6 + $0x1d8] sm:$0xff]
        %v1319 = vld [vmem:[#allocation6 + $0x1f0] sm:$0xff]
        %v1320 = vld [vmem:[#allocation6 + $0x208] sm:$0xff]
        %v1321 = vld [vmem:[#allocation6 + $0x220] sm:$0xff]
        %v1322 = vld [vmem:[#allocation6 + $0x238] sm:$0xff]
        %v1323 = vld [vmem:[#allocation6 + $0x250] sm:$0xff]
        %v1324 = vld [vmem:[#allocation6 + $0x268] sm:$0xff]
        %v1325 = vld [vmem:[#allocation6 + $0x280] sm:$0xff]
        %v1326 = vld [vmem:[#allocation6 + $0x298] sm:$0xff]
        %v1327 = vld [vmem:[#allocation6 + $0x2b0] sm:$0xff]
        %v1328 = vld [vmem:[#allocation6 + $0x2c8] sm:$0xff]
        %v1329 = vld [vmem:[#allocation6 + $0x2e0] sm:$0xff]
        %v1330 = vld [vmem:[#allocation6 + $0x2f8] sm:$0xff]
        %v1331 = vld [vmem:[%s2 + $0x4] sm:$0x3]
        %v1333 = vlaneseq
        %v1334 = vshrl.u32 %v1333, 7
        %v1335 = vsub.s32 0, %v1334
        %v1336 = vrot.slane %v1331, %v1335
        %v1337 = vlaneseq
        %v1338 = vshrl.u32 %v1337, 7
        %v1339 = vsub.s32 1, %v1338
        %v1340 = vrot.slane %v1331, %v1339
        %v1375 = vunpack.c.l.b16 %v1299
        %v1376 = vunpack.c.h.b16 %v1299
        %v1377 = vunpack.c.l.b16 %v1300
        %v1378 = vunpack.c.h.b16 %v1300
        %v1379 = vunpack.c.l.b16 %v1301
        %v1380 = vunpack.c.h.b16 %v1301
        %v1381 = vunpack.c.l.b16 %v1302
        %v1382 = vunpack.c.h.b16 %v1302
        %v1383 = vunpack.c.l.b16 %v1303
        %v1384 = vunpack.c.h.b16 %v1303
        %v1385 = vunpack.c.l.b16 %v1304
        %v1386 = vunpack.c.h.b16 %v1304
        %v1387 = vunpack.c.l.b16 %v1305
        %v1388 = vunpack.c.h.b16 %v1305
        %v1389 = vunpack.c.l.b16 %v1306
        %v1390 = vunpack.c.h.b16 %v1306
        %v1391 = vunpack.c.l.b16 %v1307
        %v1392 = vunpack.c.h.b16 %v1307
        %v1393 = vunpack.c.l.b16 %v1308
        %v1394 = vunpack.c.h.b16 %v1308
        %v1395 = vunpack.c.l.b16 %v1309
        %v1396 = vunpack.c.h.b16 %v1309
        %v1397 = vunpack.c.l.b16 %v1310
        %v1398 = vunpack.c.h.b16 %v1310
        %v1399 = vunpack.c.l.b16 %v1311
        %v1400 = vunpack.c.h.b16 %v1311
        %v1401 = vunpack.c.l.b16 %v1312
        %v1402 = vunpack.c.h.b16 %v1312
        %v1403 = vunpack.c.l.b16 %v1313
        %v1404 = vunpack.c.h.b16 %v1313
        %v1405 = vunpack.c.l.b16 %v1314
        %v1406 = vunpack.c.h.b16 %v1314
        %v1407 = vunpack.c.l.b16 %v1315
        %v1408 = vunpack.c.h.b16 %v1315
        %v1409 = vunpack.c.l.b16 %v1316
        %v1410 = vunpack.c.h.b16 %v1316
        %v1411 = vunpack.c.l.b16 %v1317
        %v1412 = vunpack.c.h.b16 %v1317
        %v1413 = vunpack.c.l.b16 %v1318
        %v1414 = vunpack.c.h.b16 %v1318
        %v1415 = vunpack.c.l.b16 %v1319
        %v1416 = vunpack.c.h.b16 %v1319
        %v1417 = vunpack.c.l.b16 %v1320
        %v1418 = vunpack.c.h.b16 %v1320
        %v1419 = vunpack.c.l.b16 %v1321
        %v1420 = vunpack.c.h.b16 %v1321
        %v1421 = vunpack.c.l.b16 %v1322
        %v1422 = vunpack.c.h.b16 %v1322
        %v1423 = vunpack.c.l.b16 %v1323
        %v1424 = vunpack.c.h.b16 %v1323
        %v1425 = vunpack.c.l.b16 %v1324
        %v1426 = vunpack.c.h.b16 %v1324
        %v1427 = vunpack.c.l.b16 %v1325
        %v1428 = vunpack.c.h.b16 %v1325
        %v1429 = vunpack.c.l.b16 %v1326
        %v1430 = vunpack.c.h.b16 %v1326
        %v1431 = vunpack.c.l.b16 %v1327
        %v1432 = vunpack.c.h.b16 %v1327
        %v1433 = vunpack.c.l.b16 %v1328
        %v1434 = vunpack.c.h.b16 %v1328
        %v1435 = vunpack.c.l.b16 %v1329
        %v1436 = vunpack.c.h.b16 %v1329
        %v1437 = vunpack.c.l.b16 %v1330
        %v1438 = vunpack.c.h.b16 %v1330
        %v1439 = vpack.c.b16 %v1377, %v1375
        %v1440 = vpack.c.b16 %v1378, %v1376
        %v1441 = vpack.c.b16 %v1381, %v1379
        %v1442 = vpack.c.b16 %v1382, %v1380
        %v1443 = vpack.c.b16 %v1385, %v1383
        %v1444 = vpack.c.b16 %v1386, %v1384
        %v1445 = vpack.c.b16 %v1389, %v1387
        %v1446 = vpack.c.b16 %v1390, %v1388
        %v1447 = vpack.c.b16 %v1393, %v1391
        %v1448 = vpack.c.b16 %v1394, %v1392
        %v1449 = vpack.c.b16 %v1397, %v1395
        %v1450 = vpack.c.b16 %v1398, %v1396
        %v1451 = vpack.c.b16 %v1401, %v1399
        %v1452 = vpack.c.b16 %v1402, %v1400
        %v1453 = vpack.c.b16 %v1405, %v1403
        %v1454 = vpack.c.b16 %v1406, %v1404
        %v1455 = vpack.c.b16 %v1409, %v1407
        %v1456 = vpack.c.b16 %v1410, %v1408
        %v1457 = vpack.c.b16 %v1413, %v1411
        %v1458 = vpack.c.b16 %v1414, %v1412
        %v1459 = vpack.c.b16 %v1417, %v1415
        %v1460 = vpack.c.b16 %v1418, %v1416
        %v1461 = vpack.c.b16 %v1421, %v1419
        %v1462 = vpack.c.b16 %v1422, %v1420
        %v1463 = vpack.c.b16 %v1425, %v1423
        %v1464 = vpack.c.b16 %v1426, %v1424
        %v1465 = vpack.c.b16 %v1429, %v1427
        %v1466 = vpack.c.b16 %v1430, %v1428
        %v1467 = vpack.c.b16 %v1433, %v1431
        %v1468 = vpack.c.b16 %v1434, %v1432
        %v1469 = vpack.c.b16 %v1437, %v1435
        %v1470 = vpack.c.b16 %v1438, %v1436
        %1503 = vmatprep.subr.bf16.mxu0 %v1454
        %1504 = vmatpush1.bf16.msra.mxu0 %v1453
        %1505 = vmatprep.subr.bf16.mxu0 %v1452
        %1506 = vmatpush1.bf16.msra.mxu0 %v1451
        %1507 = vmatprep.subr.bf16.mxu0 %v1450
        %1508 = vmatpush1.bf16.msra.mxu0 %v1449
        %1509 = vmatprep.subr.bf16.mxu0 %v1448
        %1510 = vmatpush1.bf16.msra.mxu0 %v1447
        %1511 = vmatprep.subr.bf16.mxu0 %v1446
        %1512 = vmatpush1.bf16.msra.mxu0 %v1445
        %1513 = vmatprep.subr.bf16.mxu0 %v1444
        %1514 = vmatpush1.bf16.msra.mxu0 %v1443
        %1515 = vmatprep.subr.bf16.mxu0 %v1442
        %1516 = vmatpush1.bf16.msra.mxu0 %v1441
        %1517 = vmatprep.subr.bf16.mxu0 %v1440
        %1518 = vmatpush1.bf16.msra.mxu0 %v1439
        %1519 = vmatprep.subr.bf16.mxu0 %v1470
        %1520 = vmatpush2.bf16.msra.mxu0 %v1469
        %1521 = vmatprep.subr.bf16.mxu0 %v1468
        %1522 = vmatpush2.bf16.msra.mxu0 %v1467
        %1523 = vmatprep.subr.bf16.mxu0 %v1466
        %1524 = vmatpush2.bf16.msra.mxu0 %v1465
        %1525 = vmatprep.subr.bf16.mxu0 %v1464
        %1526 = vmatpush2.bf16.msra.mxu0 %v1463
        %1527 = vmatprep.subr.bf16.mxu0 %v1462
        %1528 = vmatpush2.bf16.msra.mxu0 %v1461
        %1529 = vmatprep.subr.bf16.mxu0 %v1460
        %1530 = vmatpush2.bf16.msra.mxu0 %v1459
        %1531 = vmatprep.subr.bf16.mxu0 %v1458
        %1532 = vmatpush2.bf16.msra.mxu0 %v1457
        %1533 = vmatprep.subr.bf16.mxu0 %v1456
        %1534 = vmatpush2.bf16.msra.mxu0 %v1455
        %1535 = vmatprep.mubr.bf16.mxu0 %v626
        %1536 = vmatmul.mubr.bf16.gmra.mxu0 %v625
        %v1537 = vpop.f32.mrf.mxu0
        %v1538 = vadd.f32 %v1336, %v1537
        %v1539 = vpop.f32.mrf.mxu0
        %v1540 = vadd.f32 %v1340, %v1539
        %v1541 = vpop.f32.mrf.mxu0
        %v1542 = vadd.f32 %v1336, %v1541
        %v1543 = vpop.f32.mrf.mxu0
        %v1544 = vadd.f32 %v1340, %v1543
        %1545 = vmatprep.mubr.bf16.mxu0 %v628
        %1546 = vmatmul.mubr.bf16.gmra.mxu0 %v627
        %v1547 = vpop.f32.mrf.mxu0
        %v1548 = vadd.f32 %v1336, %v1547
        %v1549 = vpop.f32.mrf.mxu0
        %v1550 = vadd.f32 %v1340, %v1549
        %v1551 = vpop.f32.mrf.mxu0
        %v1552 = vadd.f32 %v1336, %v1551
        %v1553 = vpop.f32.mrf.mxu0
        %v1554 = vadd.f32 %v1340, %v1553
        %1555 = vmatprep.mubr.bf16.mxu0 %v630
        %1556 = vmatmul.mubr.bf16.gmra.mxu0 %v629
        %v1557 = vpop.f32.mrf.mxu0
        %v1558 = vadd.f32 %v1336, %v1557
        %v1559 = vpop.f32.mrf.mxu0
        %v1560 = vadd.f32 %v1340, %v1559
        %v1561 = vpop.f32.mrf.mxu0
        %v1562 = vadd.f32 %v1336, %v1561
        %v1563 = vpop.f32.mrf.mxu0
        %v1564 = vadd.f32 %v1340, %v1563
        %1565 = vmatprep.mubr.bf16.mxu0 %v632
        %1566 = vmatmul.mubr.bf16.gmra.mxu0 %v631
        %v1567 = vpop.f32.mrf.mxu0
        %v1568 = vadd.f32 %v1336, %v1567
        %v1569 = vpop.f32.mrf.mxu0
        %v1570 = vadd.f32 %v1340, %v1569
        %v1571 = vpop.f32.mrf.mxu0
        %v1572 = vadd.f32 %v1336, %v1571
        %v1573 = vpop.f32.mrf.mxu0
        %v1574 = vadd.f32 %v1340, %v1573
        %1575 = vdwg.mxu0
        %v1576 = vpack.c.bf16 %v1542, %v1538
        %v1577 = vpack.c.bf16 %v1544, %v1540
        %v1578 = vpack.c.bf16 %v1552, %v1548
        %v1579 = vpack.c.bf16 %v1554, %v1550
        %v1580 = vpack.c.bf16 %v1562, %v1558
        %v1581 = vpack.c.bf16 %v1564, %v1560
        %v1582 = vpack.c.bf16 %v1572, %v1568
        %v1583 = vpack.c.bf16 %v1574, %v1570
        %v1592 = vunpack.c.l.b16 %v1576
        %v1593 = vunpack.c.l.b16 %v1577
        %v1594 = vunpack.c.h.b16 %v1576
        %v1595 = vunpack.c.h.b16 %v1577
        %v1596 = vunpack.c.l.b16 %v1578
        %v1597 = vunpack.c.l.b16 %v1579
        %v1598 = vunpack.c.h.b16 %v1578
        %v1599 = vunpack.c.h.b16 %v1579
        %v1600 = vunpack.c.l.b16 %v1580
        %v1601 = vunpack.c.l.b16 %v1581
        %v1602 = vunpack.c.h.b16 %v1580
        %v1603 = vunpack.c.h.b16 %v1581
        %v1604 = vunpack.c.l.b16 %v1582
        %v1605 = vunpack.c.l.b16 %v1583
        %v1606 = vunpack.c.h.b16 %v1582
        %v1607 = vunpack.c.h.b16 %v1583
        %v1608 = vpack.c.b16 %v1593, %v1592
        %v1609 = vpack.c.b16 %v1595, %v1594
        %v1610 = vpack.c.b16 %v1597, %v1596
        %v1611 = vpack.c.b16 %v1599, %v1598
        %v1612 = vpack.c.b16 %v1601, %v1600
        %v1613 = vpack.c.b16 %v1603, %v1602
        %v1614 = vpack.c.b16 %v1605, %v1604
        %v1615 = vpack.c.b16 %v1607, %v1606
        %1624 = vst [vmem:[#allocation2 + $0x10] sm:$0xff] %v1608
        %1625 = vst [vmem:[#allocation2 + $0x28] sm:$0xff] %v1609
        %1626 = vst [vmem:[#allocation2 + $0x40] sm:$0xff] %v1610
        %1627 = vst [vmem:[#allocation2 + $0x58] sm:$0xff] %v1611
        %1628 = vst [vmem:[#allocation2 + $0x70] sm:$0xff] %v1612
        %1629 = vst [vmem:[#allocation2 + $0x88] sm:$0xff] %v1613
        %1630 = vst [vmem:[#allocation2 + $0xa0] sm:$0xff] %v1614
        %1631 = vst [vmem:[#allocation2 + $0xb8] sm:$0xff] %v1615
        %v1632 = vld [vmem:[#allocation2] sm:$0xf]
        %v1633 = vld [vmem:[#allocation2 + $0x18] sm:$0xf]
        %v1634 = vld [vmem:[#allocation2 + $0x30] sm:$0xf]
        %v1635 = vld [vmem:[#allocation2 + $0x48] sm:$0xf]
        %v1636 = vld [vmem:[#allocation2 + $0x60] sm:$0xf]
        %v1637 = vld [vmem:[#allocation2 + $0x78] sm:$0xf]
        %v1638 = vld [vmem:[#allocation2 + $0x90] sm:$0xf]
        %v1639 = vld [vmem:[#allocation2 + $0xa8] sm:$0xf]
        %v1640 = vld [vmem:[#allocation2 + $0x8] sm:$0xf]
        %v1641 = vld [vmem:[#allocation2 + $0x20] sm:$0xf]
        %v1642 = vld [vmem:[#allocation2 + $0x38] sm:$0xf]
        %v1643 = vld [vmem:[#allocation2 + $0x50] sm:$0xf]
        %v1644 = vld [vmem:[#allocation2 + $0x68] sm:$0xf]
        %v1645 = vld [vmem:[#allocation2 + $0x80] sm:$0xf]
        %v1646 = vld [vmem:[#allocation2 + $0x98] sm:$0xf]
        %v1647 = vld [vmem:[#allocation2 + $0xb0] sm:$0xf]
        %v1648 = vld [vmem:[#allocation2 + $0x10] sm:$0xf]
        %v1649 = vld [vmem:[#allocation2 + $0x28] sm:$0xf]
        %v1650 = vld [vmem:[#allocation2 + $0x40] sm:$0xf]
        %v1651 = vld [vmem:[#allocation2 + $0x58] sm:$0xf]
        %v1652 = vld [vmem:[#allocation2 + $0x70] sm:$0xf]
        %v1653 = vld [vmem:[#allocation2 + $0x88] sm:$0xf]
        %v1654 = vld [vmem:[#allocation2 + $0xa0] sm:$0xf]
        %v1655 = vld [vmem:[#allocation2 + $0xb8] sm:$0xf]
        %v1664 = vunpack.c.l.b16 %v1632
        %v1665 = vunpack.c.l.b16 %v1633
        %v1666 = vunpack.c.l.b16 %v1634
        %v1667 = vunpack.c.l.b16 %v1635
        %v1668 = vunpack.c.l.b16 %v1636
        %v1669 = vunpack.c.l.b16 %v1637
        %v1670 = vunpack.c.l.b16 %v1638
        %v1671 = vunpack.c.l.b16 %v1639
        %v1672 = vpack.c.b16 %v1665, %v1664
        %v1673 = vpack.c.b16 %v1667, %v1666
        %v1674 = vpack.c.b16 %v1669, %v1668
        %v1675 = vpack.c.b16 %v1671, %v1670
        %v1684 = vunpack.c.l.b16 %v1640
        %v1685 = vunpack.c.l.b16 %v1641
        %v1686 = vunpack.c.l.b16 %v1642
        %v1687 = vunpack.c.l.b16 %v1643
        %v1688 = vunpack.c.l.b16 %v1644
        %v1689 = vunpack.c.l.b16 %v1645
        %v1690 = vunpack.c.l.b16 %v1646
        %v1691 = vunpack.c.l.b16 %v1647
        %v1692 = vpack.c.b16 %v1685, %v1684
        %v1693 = vpack.c.b16 %v1687, %v1686
        %v1694 = vpack.c.b16 %v1689, %v1688
        %v1695 = vpack.c.b16 %v1691, %v1690
        %vm1696 = vcmask 523264
        %v1698 = vsel %vm1696, %v1672, 0
        %v1701 = vsel %vm1696, %v1673, 0
        %v1704 = vsel %vm1696, %v1674, 0
        %v1707 = vsel %vm1696, %v1675, 0
        %v1710 = vsel %vm1696, %v1692, 0
        %v1713 = vsel %vm1696, %v1693, 0
        %v1716 = vsel %vm1696, %v1694, 0
        %v1719 = vsel %vm1696, %v1695, 0
        %1721 = vmatprep.subr.bf16.mxu0 0
        %1722 = vmatpush1.bf16.xpose.msra.mxu0 0
        %1723 = vmatprep.subr.bf16.mxu0 0
        %1724 = vmatpush1.bf16.xpose.msra.mxu0 0
        %1725 = vmatprep.subr.bf16.mxu0 0
        %1726 = vmatpush1.bf16.xpose.msra.mxu0 0
        %1727 = vmatprep.subr.bf16.mxu0 0
        %1728 = vmatpush1.bf16.xpose.msra.mxu0 0
        %1729 = vmatprep.subr.bf16.mxu0 0
        %1730 = vmatpush1.bf16.xpose.msra.mxu0 %v1719
        %1731 = vmatprep.subr.bf16.mxu0 0
        %1732 = vmatpush1.bf16.xpose.msra.mxu0 %v1716
        %1733 = vmatprep.subr.bf16.mxu0 0
        %1734 = vmatpush1.bf16.xpose.msra.mxu0 %v1713
        %1735 = vmatprep.subr.bf16.mxu0 0
        %1736 = vmatpush1.bf16.xpose.msra.mxu0 %v1710
        %1737 = vmatprep.subr.bf16.mxu0 0
        %1738 = vmatpush2.bf16.xpose.msra.mxu0 0
        %1739 = vmatprep.subr.bf16.mxu0 0
        %1740 = vmatpush2.bf16.xpose.msra.mxu0 0
        %1741 = vmatprep.subr.bf16.mxu0 0
        %1742 = vmatpush2.bf16.xpose.msra.mxu0 0
        %1743 = vmatprep.subr.bf16.mxu0 0
        %1744 = vmatpush2.bf16.xpose.msra.mxu0 0
        %1745 = vmatprep.subr.bf16.mxu0 0
        %1746 = vmatpush2.bf16.xpose.msra.mxu0 0
        %1747 = vmatprep.subr.bf16.mxu0 0
        %1748 = vmatpush2.bf16.xpose.msra.mxu0 0
        %1749 = vmatprep.subr.bf16.mxu0 0
        %1750 = vmatpush2.bf16.xpose.msra.mxu0 0
        %1751 = vmatprep.subr.bf16.mxu0 0
        %1752 = vmatpush2.bf16.xpose.msra.mxu0 0
        %1753 = vmatprep.mubr.bf16.mxu0 0
        %1754 = vmatmul.mubr.bf16.gmra.mxu0 %v1698
        %v1755 = vpop.f32.mrf.mxu0
        %v1756 = vadd.f32 0.0, %v1755
        %v1757 = vpop.f32.mrf.mxu0
        %v1758 = vpop.f32.mrf.mxu0
        %v1759 = vadd.f32 0.0, %v1758
        %v1760 = vpop.f32.mrf.mxu0
        %1761 = vmatprep.mubr.bf16.mxu0 0
        %1762 = vmatmul.mubr.bf16.gmra.mxu0 %v1701
        %v1763 = vpop.f32.mrf.mxu0
        %v1764 = vadd.f32 0.0, %v1763
        %v1765 = vpop.f32.mrf.mxu0
        %v1766 = vpop.f32.mrf.mxu0
        %v1767 = vadd.f32 0.0, %v1766
        %v1768 = vpop.f32.mrf.mxu0
        %1769 = vmatprep.mubr.bf16.mxu0 0
        %1770 = vmatmul.mubr.bf16.gmra.mxu0 %v1704
        %v1771 = vpop.f32.mrf.mxu0
        %v1772 = vadd.f32 0.0, %v1771
        %v1773 = vpop.f32.mrf.mxu0
        %v1774 = vpop.f32.mrf.mxu0
        %v1775 = vadd.f32 0.0, %v1774
        %v1776 = vpop.f32.mrf.mxu0
        %1777 = vmatprep.mubr.bf16.mxu0 0
        %1778 = vmatmul.mubr.bf16.gmra.mxu0 %v1707
        %v1779 = vpop.f32.mrf.mxu0
        %v1780 = vadd.f32 0.0, %v1779
        %v1781 = vpop.f32.mrf.mxu0
        %v1782 = vpop.f32.mrf.mxu0
        %v1783 = vadd.f32 0.0, %v1782
        %v1784 = vpop.f32.mrf.mxu0
        %1785 = vdwg.mxu0
        %v1786 = vsel %vm1696, %v1756, -inf
        %1787 = vmax.xlane.f32.xlu0 %v1786
        %v1788 = vpop.xlane.xlu0 %1787
        %v1789 = vsel %vm1696, %v1759, -inf
        %1790 = vmax.xlane.f32.xlu0 %v1789
        %v1791 = vpop.xlane.xlu0 %1790
        %v1792 = vsel %vm1696, %v1764, -inf
        %1793 = vmax.xlane.f32.xlu0 %v1792
        %v1794 = vpop.xlane.xlu0 %1793
        %v1795 = vsel %vm1696, %v1767, -inf
        %1796 = vmax.xlane.f32.xlu0 %v1795
        %v1797 = vpop.xlane.xlu0 %1796
        %v1798 = vsel %vm1696, %v1772, -inf
        %1799 = vmax.xlane.f32.xlu0 %v1798
        %v1800 = vpop.xlane.xlu0 %1799
        %v1801 = vsel %vm1696, %v1775, -inf
        %1802 = vmax.xlane.f32.xlu0 %v1801
        %v1803 = vpop.xlane.xlu0 %1802
        %v1804 = vsel %vm1696, %v1780, -inf
        %1805 = vmax.xlane.f32.xlu0 %v1804
        %v1806 = vpop.xlane.xlu0 %1805
        %v1807 = vsel %vm1696, %v1783, -inf
        %1808 = vmax.xlane.f32.xlu0 %v1807
        %v1809 = vpop.xlane.xlu0 %1808
        %v1810 = vsub.f32 %v1756, %v1788
        %v1811 = vsub.f32 %v1759, %v1791
        %v1812 = vsub.f32 %v1764, %v1794
        %v1813 = vsub.f32 %v1767, %v1797
        %v1814 = vsub.f32 %v1772, %v1800
        %v1815 = vsub.f32 %v1775, %v1803
        %v1816 = vsub.f32 %v1780, %v1806
        %v1817 = vsub.f32 %v1783, %v1809
        %v1818 = vmul.f32 %v1810, 1.442695
        %v1819 = vpow.pop %v1818
        %v1820 = vmul.f32 %v1811, 1.442695
        %v1821 = vpow.pop %v1820
        %v1822 = vmul.f32 %v1812, 1.442695
        %v1823 = vpow.pop %v1822
        %v1824 = vmul.f32 %v1813, 1.442695
        %v1825 = vpow.pop %v1824
        %v1826 = vmul.f32 %v1814, 1.442695
        %v1827 = vpow.pop %v1826
        %v1828 = vmul.f32 %v1815, 1.442695
        %v1829 = vpow.pop %v1828
        %v1830 = vmul.f32 %v1816, 1.442695
        %v1831 = vpow.pop %v1830
        %v1832 = vmul.f32 %v1817, 1.442695
        %v1833 = vpow.pop %v1832
        %v1834 = vsel %vm1696, %v1819, 0.0
        %1835 = vadd.xlane.f32.xlu0 %v1834
        %v1836 = vpop.xlane.xlu0 %1835
        %v1837 = vsel %vm1696, %v1821, 0.0
        %1838 = vadd.xlane.f32.xlu0 %v1837
        %v1839 = vpop.xlane.xlu0 %1838
        %v1840 = vsel %vm1696, %v1823, 0.0
        %1841 = vadd.xlane.f32.xlu0 %v1840
        %v1842 = vpop.xlane.xlu0 %1841
        %v1843 = vsel %vm1696, %v1825, 0.0
        %1844 = vadd.xlane.f32.xlu0 %v1843
        %v1845 = vpop.xlane.xlu0 %1844
        %v1846 = vsel %vm1696, %v1827, 0.0
        %1847 = vadd.xlane.f32.xlu0 %v1846
        %v1848 = vpop.xlane.xlu0 %1847
        %v1849 = vsel %vm1696, %v1829, 0.0
        %1850 = vadd.xlane.f32.xlu0 %v1849
        %v1851 = vpop.xlane.xlu0 %1850
        %v1852 = vsel %vm1696, %v1831, 0.0
        %1853 = vadd.xlane.f32.xlu0 %v1852
        %v1854 = vpop.xlane.xlu0 %1853
        %v1855 = vsel %vm1696, %v1833, 0.0
        %1856 = vadd.xlane.f32.xlu0 %v1855
        %v1857 = vpop.xlane.xlu0 %1856
        %v1858 = vrcp.pop %v1836
        %v1859 = vrcp.pop %v1839
        %v1860 = vrcp.pop %v1842
        %v1861 = vrcp.pop %v1845
        %v1862 = vrcp.pop %v1848
        %v1863 = vrcp.pop %v1851
        %v1864 = vrcp.pop %v1854
        %v1865 = vrcp.pop %v1857
        %v1866 = vmul.f32 %v1819, %v1858
        %v1867 = vmul.f32 %v1821, %v1859
        %v1868 = vmul.f32 %v1823, %v1860
        %v1869 = vmul.f32 %v1825, %v1861
        %v1870 = vmul.f32 %v1827, %v1862
        %v1871 = vmul.f32 %v1829, %v1863
        %v1872 = vmul.f32 %v1831, %v1864
        %v1873 = vmul.f32 %v1833, %v1865
        %1874 = vst.msk [vmem:[%s605] sm:$0xff] %vm1696, %v1866
        %1875 = vst.msk [vmem:[%s605 + $0x8] sm:$0xff] %vm1696, %v1867
        %1876 = vst.msk [vmem:[%s605 + $0x10] sm:$0xff] %vm1696, %v1868
        %1877 = vst.msk [vmem:[%s605 + $0x18] sm:$0xff] %vm1696, %v1869
        %1878 = vst.msk [vmem:[%s605 + $0x20] sm:$0xff] %vm1696, %v1870
        %1879 = vst.msk [vmem:[%s605 + $0x28] sm:$0xff] %vm1696, %v1871
        %1880 = vst.msk [vmem:[%s605 + $0x30] sm:$0xff] %vm1696, %v1872
        %1881 = vst.msk [vmem:[%s605 + $0x38] sm:$0xff] %vm1696, %v1873
        %v1882 = vpack.c.bf16 %v1867, %v1866
        %v1883 = vpack.c.bf16 %v1869, %v1868
        %v1884 = vpack.c.bf16 %v1871, %v1870
        %v1885 = vpack.c.bf16 %v1873, %v1872
        %v1894 = vunpack.c.l.b16 %v1648
        %v1895 = vunpack.c.l.b16 %v1649
        %v1896 = vunpack.c.l.b16 %v1650
        %v1897 = vunpack.c.l.b16 %v1651
        %v1898 = vunpack.c.l.b16 %v1652
        %v1899 = vunpack.c.l.b16 %v1653
        %v1900 = vunpack.c.l.b16 %v1654
        %v1901 = vunpack.c.l.b16 %v1655
        %v1902 = vpack.c.b16 %v1895, %v1894
        %v1903 = vpack.c.b16 %v1897, %v1896
        %v1904 = vpack.c.b16 %v1899, %v1898
        %v1905 = vpack.c.b16 %v1901, %v1900
        %v1911 = vsel %vm1696, %v1882, 0
        %v1914 = vsel %vm1696, %v1883, 0
        %v1917 = vsel %vm1696, %v1884, 0
        %v1920 = vsel %vm1696, %v1885, 0
        %1922 = vmatprep.subr.bf16.mxu0 0
        %1923 = vmatpush1.bf16.msra.mxu0 0
        %1924 = vmatprep.subr.bf16.mxu0 0
        %1925 = vmatpush1.bf16.msra.mxu0 0
        %1926 = vmatprep.subr.bf16.mxu0 0
        %1927 = vmatpush1.bf16.msra.mxu0 0
        %1928 = vmatprep.subr.bf16.mxu0 0
        %1929 = vmatpush1.bf16.msra.mxu0 0
        %1930 = vmatprep.subr.bf16.mxu0 0
        %1931 = vmatpush1.bf16.msra.mxu0 %v1905
        %1932 = vmatprep.subr.bf16.mxu0 0
        %1933 = vmatpush1.bf16.msra.mxu0 %v1904
        %1934 = vmatprep.subr.bf16.mxu0 0
        %1935 = vmatpush1.bf16.msra.mxu0 %v1903
        %1936 = vmatprep.subr.bf16.mxu0 0
        %1937 = vmatpush1.bf16.msra.mxu0 %v1902
        %1938 = vmatprep.subr.bf16.mxu0 0
        %1939 = vmatpush2.bf16.msra.mxu0 0
        %1940 = vmatprep.subr.bf16.mxu0 0
        %1941 = vmatpush2.bf16.msra.mxu0 0
        %1942 = vmatprep.subr.bf16.mxu0 0
        %1943 = vmatpush2.bf16.msra.mxu0 0
        %1944 = vmatprep.subr.bf16.mxu0 0
        %1945 = vmatpush2.bf16.msra.mxu0 0
        %1946 = vmatprep.subr.bf16.mxu0 0
        %1947 = vmatpush2.bf16.msra.mxu0 0
        %1948 = vmatprep.subr.bf16.mxu0 0
        %1949 = vmatpush2.bf16.msra.mxu0 0
        %1950 = vmatprep.subr.bf16.mxu0 0
        %1951 = vmatpush2.bf16.msra.mxu0 0
        %1952 = vmatprep.subr.bf16.mxu0 0
        %1953 = vmatpush2.bf16.msra.mxu0 0
        %1954 = vmatprep.mubr.bf16.mxu0 0
        %1955 = vmatmul.mubr.bf16.gmra.mxu0 %v1911
        %v1956 = vpop.f32.mrf.mxu0
        %v1957 = vadd.f32 0.0, %v1956
        %v1958 = vpop.f32.mrf.mxu0
        %v1959 = vpop.f32.mrf.mxu0
        %v1960 = vadd.f32 0.0, %v1959
        %v1961 = vpop.f32.mrf.mxu0
        %1962 = vmatprep.mubr.bf16.mxu0 0
        %1963 = vmatmul.mubr.bf16.gmra.mxu0 %v1914
        %v1964 = vpop.f32.mrf.mxu0
        %v1965 = vadd.f32 0.0, %v1964
        %v1966 = vpop.f32.mrf.mxu0
        %v1967 = vpop.f32.mrf.mxu0
        %v1968 = vadd.f32 0.0, %v1967
        %v1969 = vpop.f32.mrf.mxu0
        %1970 = vmatprep.mubr.bf16.mxu0 0
        %1971 = vmatmul.mubr.bf16.gmra.mxu0 %v1917
        %v1972 = vpop.f32.mrf.mxu0
        %v1973 = vadd.f32 0.0, %v1972
        %v1974 = vpop.f32.mrf.mxu0
        %v1975 = vpop.f32.mrf.mxu0
        %v1976 = vadd.f32 0.0, %v1975
        %v1977 = vpop.f32.mrf.mxu0
        %1978 = vmatprep.mubr.bf16.mxu0 0
        %1979 = vmatmul.mubr.bf16.gmra.mxu0 %v1920
        %v1980 = vpop.f32.mrf.mxu0
        %v1981 = vadd.f32 0.0, %v1980
        %v1982 = vpop.f32.mrf.mxu0
        %v1983 = vpop.f32.mrf.mxu0
        %v1984 = vadd.f32 0.0, %v1983
        %v1985 = vpop.f32.mrf.mxu0
        %1986 = vdwg.mxu0
        %v1987 = vpack.c.bf16 %v1960, %v1957
        %v1988 = vpack.c.bf16 %v1968, %v1965
        %v1989 = vpack.c.bf16 %v1976, %v1973
        %v1990 = vpack.c.bf16 %v1984, %v1981
        %v1991 = vld [vmem:[#allocation8] sm:$0xff]
        %v1992 = vld [vmem:[#allocation8 + $0x8] sm:$0xff]
        %v1993 = vld [vmem:[#allocation8 + $0x10] sm:$0xff]
        %v1994 = vld [vmem:[#allocation8 + $0x18] sm:$0xff]
        %v1995 = vld [vmem:[#allocation8 + $0x20] sm:$0xff]
        %v1996 = vld [vmem:[#allocation8 + $0x28] sm:$0xff]
        %v1997 = vld [vmem:[#allocation8 + $0x30] sm:$0xff]
        %v1998 = vld [vmem:[#allocation8 + $0x38] sm:$0xff]
        %v1999 = vld [vmem:[#allocation2] sm:$0xf]
        %v2000 = vld [vmem:[#allocation2 + $0x18] sm:$0xf]
        %v2001 = vld [vmem:[#allocation2 + $0x30] sm:$0xf]
        %v2002 = vld [vmem:[#allocation2 + $0x48] sm:$0xf]
        %v2003 = vld [vmem:[#allocation2 + $0x60] sm:$0xf]
        %v2004 = vld [vmem:[#allocation2 + $0x78] sm:$0xf]
        %v2005 = vld [vmem:[#allocation2 + $0x90] sm:$0xf]
        %v2006 = vld [vmem:[#allocation2 + $0xa8] sm:$0xf]
        %v2007 = vld [vmem:[#allocation2 + $0x8] sm:$0xf]
        %v2008 = vld [vmem:[#allocation2 + $0x20] sm:$0xf]
        %v2009 = vld [vmem:[#allocation2 + $0x38] sm:$0xf]
        %v2010 = vld [vmem:[#allocation2 + $0x50] sm:$0xf]
        %v2011 = vld [vmem:[#allocation2 + $0x68] sm:$0xf]
        %v2012 = vld [vmem:[#allocation2 + $0x80] sm:$0xf]
        %v2013 = vld [vmem:[#allocation2 + $0x98] sm:$0xf]
        %v2014 = vld [vmem:[#allocation2 + $0xb0] sm:$0xf]
        %v2015 = vld [vmem:[#allocation2 + $0x10] sm:$0xf]
        %v2016 = vld [vmem:[#allocation2 + $0x28] sm:$0xf]
        %v2017 = vld [vmem:[#allocation2 + $0x40] sm:$0xf]
        %v2018 = vld [vmem:[#allocation2 + $0x58] sm:$0xf]
        %v2019 = vld [vmem:[#allocation2 + $0x70] sm:$0xf]
        %v2020 = vld [vmem:[#allocation2 + $0x88] sm:$0xf]
        %v2021 = vld [vmem:[#allocation2 + $0xa0] sm:$0xf]
        %v2022 = vld [vmem:[#allocation2 + $0xb8] sm:$0xf]
        %v2031 = vunpack.c.l.b16 %v1999
        %v2032 = vunpack.c.l.b16 %v2000
        %v2033 = vunpack.c.l.b16 %v2001
        %v2034 = vunpack.c.l.b16 %v2002
        %v2035 = vunpack.c.l.b16 %v2003
        %v2036 = vunpack.c.l.b16 %v2004
        %v2037 = vunpack.c.l.b16 %v2005
        %v2038 = vunpack.c.l.b16 %v2006
        %v2039 = vpack.c.b16 %v2032, %v2031
        %v2040 = vpack.c.b16 %v2034, %v2033
        %v2041 = vpack.c.b16 %v2036, %v2035
        %v2042 = vpack.c.b16 %v2038, %v2037
        %2043 = vrot.lane.b32.xlu0 %v2039, 64
        %v2044 = vpop.permute.xlu0 %2043
        %2045 = vrot.lane.b32.xlu0 %v2040, 64
        %v2046 = vpop.permute.xlu0 %2045
        %2047 = vrot.lane.b32.xlu0 %v2041, 64
        %v2048 = vpop.permute.xlu0 %2047
        %2049 = vrot.lane.b32.xlu0 %v2042, 64
        %v2050 = vpop.permute.xlu0 %2049
        %v2059 = vunpack.c.l.b16 %v2007
        %v2060 = vunpack.c.l.b16 %v2008
        %v2061 = vunpack.c.l.b16 %v2009
        %v2062 = vunpack.c.l.b16 %v2010
        %v2063 = vunpack.c.l.b16 %v2011
        %v2064 = vunpack.c.l.b16 %v2012
        %v2065 = vunpack.c.l.b16 %v2013
        %v2066 = vunpack.c.l.b16 %v2014
        %v2067 = vpack.c.b16 %v2060, %v2059
        %v2068 = vpack.c.b16 %v2062, %v2061
        %v2069 = vpack.c.b16 %v2064, %v2063
        %v2070 = vpack.c.b16 %v2066, %v2065
        %2071 = vrot.lane.b32.xlu0 %v2067, 64
        %v2072 = vpop.permute.xlu0 %2071
        %2073 = vrot.lane.b32.xlu0 %v2068, 64
        %v2074 = vpop.permute.xlu0 %2073
        %2075 = vrot.lane.b32.xlu0 %v2069, 64
        %v2076 = vpop.permute.xlu0 %2075
        %2077 = vrot.lane.b32.xlu0 %v2070, 64
        %v2078 = vpop.permute.xlu0 %2077
        %v2080 = vsel %vm1696, %v2044, 0
        %v2083 = vsel %vm1696, %v2046, 0
        %v2086 = vsel %vm1696, %v2048, 0
        %v2089 = vsel %vm1696, %v2050, 0
        %v2092 = vsel %vm1696, %v2072, 0
        %v2095 = vsel %vm1696, %v2074, 0
        %v2098 = vsel %vm1696, %v2076, 0
        %v2101 = vsel %vm1696, %v2078, 0
        %2103 = vmatprep.subr.bf16.mxu0 0
        %2104 = vmatpush1.bf16.xpose.msra.mxu0 0
        %2105 = vmatprep.subr.bf16.mxu0 0
        %2106 = vmatpush1.bf16.xpose.msra.mxu0 0
        %2107 = vmatprep.subr.bf16.mxu0 0
        %2108 = vmatpush1.bf16.xpose.msra.mxu0 0
        %2109 = vmatprep.subr.bf16.mxu0 0
        %2110 = vmatpush1.bf16.xpose.msra.mxu0 0
        %2111 = vmatprep.subr.bf16.mxu0 0
        %2112 = vmatpush1.bf16.xpose.msra.mxu0 %v2101
        %2113 = vmatprep.subr.bf16.mxu0 0
        %2114 = vmatpush1.bf16.xpose.msra.mxu0 %v2098
        %2115 = vmatprep.subr.bf16.mxu0 0
        %2116 = vmatpush1.bf16.xpose.msra.mxu0 %v2095
        %2117 = vmatprep.subr.bf16.mxu0 0
        %2118 = vmatpush1.bf16.xpose.msra.mxu0 %v2092
        %2119 = vmatprep.subr.bf16.mxu0 0
        %2120 = vmatpush2.bf16.xpose.msra.mxu0 0
        %2121 = vmatprep.subr.bf16.mxu0 0
        %2122 = vmatpush2.bf16.xpose.msra.mxu0 0
        %2123 = vmatprep.subr.bf16.mxu0 0
        %2124 = vmatpush2.bf16.xpose.msra.mxu0 0
        %2125 = vmatprep.subr.bf16.mxu0 0
        %2126 = vmatpush2.bf16.xpose.msra.mxu0 0
        %2127 = vmatprep.subr.bf16.mxu0 0
        %2128 = vmatpush2.bf16.xpose.msra.mxu0 0
        %2129 = vmatprep.subr.bf16.mxu0 0
        %2130 = vmatpush2.bf16.xpose.msra.mxu0 0
        %2131 = vmatprep.subr.bf16.mxu0 0
        %2132 = vmatpush2.bf16.xpose.msra.mxu0 0
        %2133 = vmatprep.subr.bf16.mxu0 0
        %2134 = vmatpush2.bf16.xpose.msra.mxu0 0
        %2135 = vmatprep.mubr.bf16.mxu0 0
        %2136 = vmatmul.mubr.bf16.gmra.mxu0 %v2080
        %v2137 = vpop.f32.mrf.mxu0
        %v2138 = vadd.f32 0.0, %v2137
        %v2139 = vpop.f32.mrf.mxu0
        %v2140 = vpop.f32.mrf.mxu0
        %v2141 = vadd.f32 0.0, %v2140
        %v2142 = vpop.f32.mrf.mxu0
        %2143 = vmatprep.mubr.bf16.mxu0 0
        %2144 = vmatmul.mubr.bf16.gmra.mxu0 %v2083
        %v2145 = vpop.f32.mrf.mxu0
        %v2146 = vadd.f32 0.0, %v2145
        %v2147 = vpop.f32.mrf.mxu0
        %v2148 = vpop.f32.mrf.mxu0
        %v2149 = vadd.f32 0.0, %v2148
        %v2150 = vpop.f32.mrf.mxu0
        %2151 = vmatprep.mubr.bf16.mxu0 0
        %2152 = vmatmul.mubr.bf16.gmra.mxu0 %v2086
        %v2153 = vpop.f32.mrf.mxu0
        %v2154 = vadd.f32 0.0, %v2153
        %v2155 = vpop.f32.mrf.mxu0
        %v2156 = vpop.f32.mrf.mxu0
        %v2157 = vadd.f32 0.0, %v2156
        %v2158 = vpop.f32.mrf.mxu0
        %2159 = vmatprep.mubr.bf16.mxu0 0
        %2160 = vmatmul.mubr.bf16.gmra.mxu0 %v2089
        %v2161 = vpop.f32.mrf.mxu0
        %v2162 = vadd.f32 0.0, %v2161
        %v2163 = vpop.f32.mrf.mxu0
        %v2164 = vpop.f32.mrf.mxu0
        %v2165 = vadd.f32 0.0, %v2164
        %v2166 = vpop.f32.mrf.mxu0
        %2167 = vdwg.mxu0
        %v2168 = vsel %vm1696, %v2138, -inf
        %2169 = vmax.xlane.f32.xlu0 %v2168
        %v2170 = vpop.xlane.xlu0 %2169
        %v2171 = vsel %vm1696, %v2141, -inf
        %2172 = vmax.xlane.f32.xlu0 %v2171
        %v2173 = vpop.xlane.xlu0 %2172
        %v2174 = vsel %vm1696, %v2146, -inf
        %2175 = vmax.xlane.f32.xlu0 %v2174
        %v2176 = vpop.xlane.xlu0 %2175
        %v2177 = vsel %vm1696, %v2149, -inf
        %2178 = vmax.xlane.f32.xlu0 %v2177
        %v2179 = vpop.xlane.xlu0 %2178
        %v2180 = vsel %vm1696, %v2154, -inf
        %2181 = vmax.xlane.f32.xlu0 %v2180
        %v2182 = vpop.xlane.xlu0 %2181
        %v2183 = vsel %vm1696, %v2157, -inf
        %2184 = vmax.xlane.f32.xlu0 %v2183
        %v2185 = vpop.xlane.xlu0 %2184
        %v2186 = vsel %vm1696, %v2162, -inf
        %2187 = vmax.xlane.f32.xlu0 %v2186
        %v2188 = vpop.xlane.xlu0 %2187
        %v2189 = vsel %vm1696, %v2165, -inf
        %2190 = vmax.xlane.f32.xlu0 %v2189
        %v2191 = vpop.xlane.xlu0 %2190
        %v2192 = vsub.f32 %v2138, %v2170
        %v2193 = vsub.f32 %v2141, %v2173
        %v2194 = vsub.f32 %v2146, %v2176
        %v2195 = vsub.f32 %v2149, %v2179
        %v2196 = vsub.f32 %v2154, %v2182
        %v2197 = vsub.f32 %v2157, %v2185
        %v2198 = vsub.f32 %v2162, %v2188
        %v2199 = vsub.f32 %v2165, %v2191
        %v2200 = vmul.f32 %v2192, 1.442695
        %v2201 = vpow.pop %v2200
        %v2202 = vmul.f32 %v2193, 1.442695
        %v2203 = vpow.pop %v2202
        %v2204 = vmul.f32 %v2194, 1.442695
        %v2205 = vpow.pop %v2204
        %v2206 = vmul.f32 %v2195, 1.442695
        %v2207 = vpow.pop %v2206
        %v2208 = vmul.f32 %v2196, 1.442695
        %v2209 = vpow.pop %v2208
        %v2210 = vmul.f32 %v2197, 1.442695
        %v2211 = vpow.pop %v2210
        %v2212 = vmul.f32 %v2198, 1.442695
        %v2213 = vpow.pop %v2212
        %v2214 = vmul.f32 %v2199, 1.442695
        %v2215 = vpow.pop %v2214
        %v2216 = vsel %vm1696, %v2201, 0.0
        %2217 = vadd.xlane.f32.xlu0 %v2216
        %v2218 = vpop.xlane.xlu0 %2217
        %v2219 = vsel %vm1696, %v2203, 0.0
        %2220 = vadd.xlane.f32.xlu0 %v2219
        %v2221 = vpop.xlane.xlu0 %2220
        %v2222 = vsel %vm1696, %v2205, 0.0
        %2223 = vadd.xlane.f32.xlu0 %v2222
        %v2224 = vpop.xlane.xlu0 %2223
        %v2225 = vsel %vm1696, %v2207, 0.0
        %2226 = vadd.xlane.f32.xlu0 %v2225
        %v2227 = vpop.xlane.xlu0 %2226
        %v2228 = vsel %vm1696, %v2209, 0.0
        %2229 = vadd.xlane.f32.xlu0 %v2228
        %v2230 = vpop.xlane.xlu0 %2229
        %v2231 = vsel %vm1696, %v2211, 0.0
        %2232 = vadd.xlane.f32.xlu0 %v2231
        %v2233 = vpop.xlane.xlu0 %2232
        %v2234 = vsel %vm1696, %v2213, 0.0
        %2235 = vadd.xlane.f32.xlu0 %v2234
        %v2236 = vpop.xlane.xlu0 %2235
        %v2237 = vsel %vm1696, %v2215, 0.0
        %2238 = vadd.xlane.f32.xlu0 %v2237
        %v2239 = vpop.xlane.xlu0 %2238
        %v2240 = vrcp.pop %v2218
        %v2241 = vrcp.pop %v2221
        %v2242 = vrcp.pop %v2224
        %v2243 = vrcp.pop %v2227
        %v2244 = vrcp.pop %v2230
        %v2245 = vrcp.pop %v2233
        %v2246 = vrcp.pop %v2236
        %v2247 = vrcp.pop %v2239
        %v2248 = vmul.f32 %v2201, %v2240
        %v2249 = vmul.f32 %v2203, %v2241
        %v2250 = vmul.f32 %v2205, %v2242
        %v2251 = vmul.f32 %v2207, %v2243
        %v2252 = vmul.f32 %v2209, %v2244
        %v2253 = vmul.f32 %v2211, %v2245
        %v2254 = vmul.f32 %v2213, %v2246
        %v2255 = vmul.f32 %v2215, %v2247
        %s2256 = scalar_lea.vmem %s605, 64 [#allocation19]
        %2257 = vst.msk [vmem:[%s2256] sm:$0xff] %vm1696, %v2248
        %2258 = vst.msk [vmem:[%s2256 + $0x8] sm:$0xff] %vm1696, %v2249
        %2259 = vst.msk [vmem:[%s2256 + $0x10] sm:$0xff] %vm1696, %v2250
        %2260 = vst.msk [vmem:[%s2256 + $0x18] sm:$0xff] %vm1696, %v2251
        %2261 = vst.msk [vmem:[%s2256 + $0x20] sm:$0xff] %vm1696, %v2252
        %2262 = vst.msk [vmem:[%s2256 + $0x28] sm:$0xff] %vm1696, %v2253
        %2263 = vst.msk [vmem:[%s2256 + $0x30] sm:$0xff] %vm1696, %v2254
        %2264 = vst.msk [vmem:[%s2256 + $0x38] sm:$0xff] %vm1696, %v2255
        %v2265 = vpack.c.bf16 %v2249, %v2248
        %v2266 = vpack.c.bf16 %v2251, %v2250
        %v2267 = vpack.c.bf16 %v2253, %v2252
        %v2268 = vpack.c.bf16 %v2255, %v2254
        %v2277 = vunpack.c.l.b16 %v2015
        %v2278 = vunpack.c.l.b16 %v2016
        %v2279 = vunpack.c.l.b16 %v2017
        %v2280 = vunpack.c.l.b16 %v2018
        %v2281 = vunpack.c.l.b16 %v2019
        %v2282 = vunpack.c.l.b16 %v2020
        %v2283 = vunpack.c.l.b16 %v2021
        %v2284 = vunpack.c.l.b16 %v2022
        %v2285 = vpack.c.b16 %v2278, %v2277
        %v2286 = vpack.c.b16 %v2280, %v2279
        %v2287 = vpack.c.b16 %v2282, %v2281
        %v2288 = vpack.c.b16 %v2284, %v2283
        %2289 = vrot.lane.b32.xlu0 %v2285, 64
        %v2290 = vpop.permute.xlu0 %2289
        %2291 = vrot.lane.b32.xlu0 %v2286, 64
        %v2292 = vpop.permute.xlu0 %2291
        %2293 = vrot.lane.b32.xlu0 %v2287, 64
        %v2294 = vpop.permute.xlu0 %2293
        %2295 = vrot.lane.b32.xlu0 %v2288, 64
        %v2296 = vpop.permute.xlu0 %2295
        %v2302 = vsel %vm1696, %v2265, 0
        %v2305 = vsel %vm1696, %v2266, 0
        %v2308 = vsel %vm1696, %v2267, 0
        %v2311 = vsel %vm1696, %v2268, 0
        %2313 = vmatprep.subr.bf16.mxu0 0
        %2314 = vmatpush1.bf16.msra.mxu0 0
        %2315 = vmatprep.subr.bf16.mxu0 0
        %2316 = vmatpush1.bf16.msra.mxu0 0
        %2317 = vmatprep.subr.bf16.mxu0 0
        %2318 = vmatpush1.bf16.msra.mxu0 0
        %2319 = vmatprep.subr.bf16.mxu0 0
        %2320 = vmatpush1.bf16.msra.mxu0 0
        %2321 = vmatprep.subr.bf16.mxu0 0
        %2322 = vmatpush1.bf16.msra.mxu0 %v2296
        %2323 = vmatprep.subr.bf16.mxu0 0
        %2324 = vmatpush1.bf16.msra.mxu0 %v2294
        %2325 = vmatprep.subr.bf16.mxu0 0
        %2326 = vmatpush1.bf16.msra.mxu0 %v2292
        %2327 = vmatprep.subr.bf16.mxu0 0
        %2328 = vmatpush1.bf16.msra.mxu0 %v2290
        %2329 = vmatprep.subr.bf16.mxu0 0
        %2330 = vmatpush2.bf16.msra.mxu0 0
        %2331 = vmatprep.subr.bf16.mxu0 0
        %2332 = vmatpush2.bf16.msra.mxu0 0
        %2333 = vmatprep.subr.bf16.mxu0 0
        %2334 = vmatpush2.bf16.msra.mxu0 0
        %2335 = vmatprep.subr.bf16.mxu0 0
        %2336 = vmatpush2.bf16.msra.mxu0 0
        %2337 = vmatprep.subr.bf16.mxu0 0
        %2338 = vmatpush2.bf16.msra.mxu0 0
        %2339 = vmatprep.subr.bf16.mxu0 0
        %2340 = vmatpush2.bf16.msra.mxu0 0
        %2341 = vmatprep.subr.bf16.mxu0 0
        %2342 = vmatpush2.bf16.msra.mxu0 0
        %2343 = vmatprep.subr.bf16.mxu0 0
        %2344 = vmatpush2.bf16.msra.mxu0 0
        %2345 = vmatprep.mubr.bf16.mxu0 0
        %2346 = vmatmul.mubr.bf16.gmra.mxu0 %v2302
        %v2347 = vpop.f32.mrf.mxu0
        %v2348 = vadd.f32 0.0, %v2347
        %v2349 = vpop.f32.mrf.mxu0
        %v2350 = vpop.f32.mrf.mxu0
        %v2351 = vadd.f32 0.0, %v2350
        %v2352 = vpop.f32.mrf.mxu0
        %2353 = vmatprep.mubr.bf16.mxu0 0
        %2354 = vmatmul.mubr.bf16.gmra.mxu0 %v2305
        %v2355 = vpop.f32.mrf.mxu0
        %v2356 = vadd.f32 0.0, %v2355
        %v2357 = vpop.f32.mrf.mxu0
        %v2358 = vpop.f32.mrf.mxu0
        %v2359 = vadd.f32 0.0, %v2358
        %v2360 = vpop.f32.mrf.mxu0
        %2361 = vmatprep.mubr.bf16.mxu0 0
        %2362 = vmatmul.mubr.bf16.gmra.mxu0 %v2308
        %v2363 = vpop.f32.mrf.mxu0
        %v2364 = vadd.f32 0.0, %v2363
        %v2365 = vpop.f32.mrf.mxu0
        %v2366 = vpop.f32.mrf.mxu0
        %v2367 = vadd.f32 0.0, %v2366
        %v2368 = vpop.f32.mrf.mxu0
        %2369 = vmatprep.mubr.bf16.mxu0 0
        %2370 = vmatmul.mubr.bf16.gmra.mxu0 %v2311
        %v2371 = vpop.f32.mrf.mxu0
        %v2372 = vadd.f32 0.0, %v2371
        %v2373 = vpop.f32.mrf.mxu0
        %v2374 = vpop.f32.mrf.mxu0
        %v2375 = vadd.f32 0.0, %v2374
        %v2376 = vpop.f32.mrf.mxu0
        %2377 = vdwg.mxu0
        %v2378 = vpack.c.bf16 %v2351, %v2348
        %v2379 = vpack.c.bf16 %v2359, %v2356
        %v2380 = vpack.c.bf16 %v2367, %v2364
        %v2381 = vpack.c.bf16 %v2375, %v2372
        %v2382 = vld [vmem:[#allocation8 + $0x40] sm:$0xff]
        %v2383 = vld [vmem:[#allocation8 + $0x48] sm:$0xff]
        %v2384 = vld [vmem:[#allocation8 + $0x50] sm:$0xff]
        %v2385 = vld [vmem:[#allocation8 + $0x58] sm:$0xff]
        %v2386 = vld [vmem:[#allocation8 + $0x60] sm:$0xff]
        %v2387 = vld [vmem:[#allocation8 + $0x68] sm:$0xff]
        %v2388 = vld [vmem:[#allocation8 + $0x70] sm:$0xff]
        %v2389 = vld [vmem:[#allocation8 + $0x78] sm:$0xff]
        %v2398 = vunpack.c.l.b16 %v2382
        %v2399 = vunpack.c.h.b16 %v2382
        %v2400 = vunpack.c.l.b16 %v2383
        %v2401 = vunpack.c.h.b16 %v2383
        %v2402 = vunpack.c.l.b16 %v2384
        %v2403 = vunpack.c.h.b16 %v2384
        %v2404 = vunpack.c.l.b16 %v2385
        %v2405 = vunpack.c.h.b16 %v2385
        %v2406 = vunpack.c.l.b16 %v2386
        %v2407 = vunpack.c.h.b16 %v2386
        %v2408 = vunpack.c.l.b16 %v2387
        %v2409 = vunpack.c.h.b16 %v2387
        %v2410 = vunpack.c.l.b16 %v2388
        %v2411 = vunpack.c.h.b16 %v2388
        %v2412 = vunpack.c.l.b16 %v2389
        %v2413 = vunpack.c.h.b16 %v2389
        %v2414 = vpack.c.b16 %v2400, %v2398
        %v2415 = vpack.c.b16 %v2401, %v2399
        %v2416 = vpack.c.b16 %v2404, %v2402
        %v2417 = vpack.c.b16 %v2405, %v2403
        %v2418 = vpack.c.b16 %v2408, %v2406
        %v2419 = vpack.c.b16 %v2409, %v2407
        %v2420 = vpack.c.b16 %v2412, %v2410
        %v2421 = vpack.c.b16 %v2413, %v2411
        %v2431 = vsel %vm1696, %v2378, 0
        %v2434 = vsel %vm1696, %v2379, 0
        %v2437 = vsel %vm1696, %v2380, 0
        %v2440 = vsel %vm1696, %v2381, 0
        %2442 = vmatprep.subr.bf16.mxu0 0
        %2443 = vmatpush1.bf16.msra.mxu0 0
        %2444 = vmatprep.subr.bf16.mxu0 0
        %2445 = vmatpush1.bf16.msra.mxu0 0
        %2446 = vmatprep.subr.bf16.mxu0 0
        %2447 = vmatpush1.bf16.msra.mxu0 0
        %2448 = vmatprep.subr.bf16.mxu0 0
        %2449 = vmatpush1.bf16.msra.mxu0 0
        %2450 = vmatprep.subr.bf16.mxu0 %v2421
        %2451 = vmatpush1.bf16.msra.mxu0 %v2420
        %2452 = vmatprep.subr.bf16.mxu0 %v2419
        %2453 = vmatpush1.bf16.msra.mxu0 %v2418
        %2454 = vmatprep.subr.bf16.mxu0 %v2417
        %2455 = vmatpush1.bf16.msra.mxu0 %v2416
        %2456 = vmatprep.subr.bf16.mxu0 %v2415
        %2457 = vmatpush1.bf16.msra.mxu0 %v2414
        %2458 = vmatprep.subr.bf16.mxu0 0
        %2459 = vmatpush2.bf16.msra.mxu0 0
        %2460 = vmatprep.subr.bf16.mxu0 0
        %2461 = vmatpush2.bf16.msra.mxu0 0
        %2462 = vmatprep.subr.bf16.mxu0 0
        %2463 = vmatpush2.bf16.msra.mxu0 0
        %2464 = vmatprep.subr.bf16.mxu0 0
        %2465 = vmatpush2.bf16.msra.mxu0 0
        %2466 = vmatprep.subr.bf16.mxu0 0
        %2467 = vmatpush2.bf16.msra.mxu0 0
        %2468 = vmatprep.subr.bf16.mxu0 0
        %2469 = vmatpush2.bf16.msra.mxu0 0
        %2470 = vmatprep.subr.bf16.mxu0 0
        %2471 = vmatpush2.bf16.msra.mxu0 0
        %2472 = vmatprep.subr.bf16.mxu0 0
        %2473 = vmatpush2.bf16.msra.mxu0 0
        %2474 = vmatprep.mubr.bf16.mxu0 0
        %2475 = vmatmul.mubr.bf16.gmra.mxu0 %v2431
        %v2476 = vpop.f32.mrf.mxu0
        %v2477 = vadd.f32 0.0, %v2476
        %v2478 = vpop.f32.mrf.mxu0
        %v2479 = vadd.f32 0.0, %v2478
        %v2480 = vpop.f32.mrf.mxu0
        %v2481 = vadd.f32 0.0, %v2480
        %v2482 = vpop.f32.mrf.mxu0
        %v2483 = vadd.f32 0.0, %v2482
        %2484 = vmatprep.mubr.bf16.mxu0 0
        %2485 = vmatmul.mubr.bf16.gmra.mxu0 %v2434
        %v2486 = vpop.f32.mrf.mxu0
        %v2487 = vadd.f32 0.0, %v2486
        %v2488 = vpop.f32.mrf.mxu0
        %v2489 = vadd.f32 0.0, %v2488
        %v2490 = vpop.f32.mrf.mxu0
        %v2491 = vadd.f32 0.0, %v2490
        %v2492 = vpop.f32.mrf.mxu0
        %v2493 = vadd.f32 0.0, %v2492
        %2494 = vmatprep.mubr.bf16.mxu0 0
        %2495 = vmatmul.mubr.bf16.gmra.mxu0 %v2437
        %v2496 = vpop.f32.mrf.mxu0
        %v2497 = vadd.f32 0.0, %v2496
        %v2498 = vpop.f32.mrf.mxu0
        %v2499 = vadd.f32 0.0, %v2498
        %v2500 = vpop.f32.mrf.mxu0
        %v2501 = vadd.f32 0.0, %v2500
        %v2502 = vpop.f32.mrf.mxu0
        %v2503 = vadd.f32 0.0, %v2502
        %2504 = vmatprep.mubr.bf16.mxu0 0
        %2505 = vmatmul.mubr.bf16.gmra.mxu0 %v2440
        %v2506 = vpop.f32.mrf.mxu0
        %v2507 = vadd.f32 0.0, %v2506
        %v2508 = vpop.f32.mrf.mxu0
        %v2509 = vadd.f32 0.0, %v2508
        %v2510 = vpop.f32.mrf.mxu0
        %v2511 = vadd.f32 0.0, %v2510
        %v2512 = vpop.f32.mrf.mxu0
        %v2513 = vadd.f32 0.0, %v2512
        %2514 = vdwg.mxu0
        %v2523 = vunpack.c.l.b16 %v1991
        %v2524 = vunpack.c.h.b16 %v1991
        %v2525 = vunpack.c.l.b16 %v1992
        %v2526 = vunpack.c.h.b16 %v1992
        %v2527 = vunpack.c.l.b16 %v1993
        %v2528 = vunpack.c.h.b16 %v1993
        %v2529 = vunpack.c.l.b16 %v1994
        %v2530 = vunpack.c.h.b16 %v1994
        %v2531 = vunpack.c.l.b16 %v1995
        %v2532 = vunpack.c.h.b16 %v1995
        %v2533 = vunpack.c.l.b16 %v1996
        %v2534 = vunpack.c.h.b16 %v1996
        %v2535 = vunpack.c.l.b16 %v1997
        %v2536 = vunpack.c.h.b16 %v1997
        %v2537 = vunpack.c.l.b16 %v1998
        %v2538 = vunpack.c.h.b16 %v1998
        %v2539 = vpack.c.b16 %v2525, %v2523
        %v2540 = vpack.c.b16 %v2526, %v2524
        %v2541 = vpack.c.b16 %v2529, %v2527
        %v2542 = vpack.c.b16 %v2530, %v2528
        %v2543 = vpack.c.b16 %v2533, %v2531
        %v2544 = vpack.c.b16 %v2534, %v2532
        %v2545 = vpack.c.b16 %v2537, %v2535
        %v2546 = vpack.c.b16 %v2538, %v2536
        %v2556 = vsel %vm1696, %v1987, 0
        %v2559 = vsel %vm1696, %v1988, 0
        %v2562 = vsel %vm1696, %v1989, 0
        %v2565 = vsel %vm1696, %v1990, 0
        %2567 = vmatprep.subr.bf16.mxu0 0
        %2568 = vmatpush1.bf16.msra.mxu0 0
        %2569 = vmatprep.subr.bf16.mxu0 0
        %2570 = vmatpush1.bf16.msra.mxu0 0
        %2571 = vmatprep.subr.bf16.mxu0 0
        %2572 = vmatpush1.bf16.msra.mxu0 0
        %2573 = vmatprep.subr.bf16.mxu0 0
        %2574 = vmatpush1.bf16.msra.mxu0 0
        %2575 = vmatprep.subr.bf16.mxu0 %v2546
        %2576 = vmatpush1.bf16.msra.mxu0 %v2545
        %2577 = vmatprep.subr.bf16.mxu0 %v2544
        %2578 = vmatpush1.bf16.msra.mxu0 %v2543
        %2579 = vmatprep.subr.bf16.mxu0 %v2542
        %2580 = vmatpush1.bf16.msra.mxu0 %v2541
        %2581 = vmatprep.subr.bf16.mxu0 %v2540
        %2582 = vmatpush1.bf16.msra.mxu0 %v2539
        %2583 = vmatprep.subr.bf16.mxu0 0
        %2584 = vmatpush2.bf16.msra.mxu0 0
        %2585 = vmatprep.subr.bf16.mxu0 0
        %2586 = vmatpush2.bf16.msra.mxu0 0
        %2587 = vmatprep.subr.bf16.mxu0 0
        %2588 = vmatpush2.bf16.msra.mxu0 0
        %2589 = vmatprep.subr.bf16.mxu0 0
        %2590 = vmatpush2.bf16.msra.mxu0 0
        %2591 = vmatprep.subr.bf16.mxu0 0
        %2592 = vmatpush2.bf16.msra.mxu0 0
        %2593 = vmatprep.subr.bf16.mxu0 0
        %2594 = vmatpush2.bf16.msra.mxu0 0
        %2595 = vmatprep.subr.bf16.mxu0 0
        %2596 = vmatpush2.bf16.msra.mxu0 0
        %2597 = vmatprep.subr.bf16.mxu0 0
        %2598 = vmatpush2.bf16.msra.mxu0 0
        %2599 = vmatprep.mubr.bf16.mxu0 0
        %2600 = vmatmul.mubr.bf16.gmra.mxu0 %v2556
        %v2601 = vpop.f32.mrf.mxu0
        %v2602 = vadd.f32 %v2477, %v2601
        %v2603 = vpop.f32.mrf.mxu0
        %v2604 = vadd.f32 %v2479, %v2603
        %v2605 = vpop.f32.mrf.mxu0
        %v2606 = vadd.f32 %v2481, %v2605
        %v2607 = vpop.f32.mrf.mxu0
        %v2608 = vadd.f32 %v2483, %v2607
        %2609 = vmatprep.mubr.bf16.mxu0 0
        %2610 = vmatmul.mubr.bf16.gmra.mxu0 %v2559
        %v2611 = vpop.f32.mrf.mxu0
        %v2612 = vadd.f32 %v2487, %v2611
        %v2613 = vpop.f32.mrf.mxu0
        %v2614 = vadd.f32 %v2489, %v2613
        %v2615 = vpop.f32.mrf.mxu0
        %v2616 = vadd.f32 %v2491, %v2615
        %v2617 = vpop.f32.mrf.mxu0
        %v2618 = vadd.f32 %v2493, %v2617
        %2619 = vmatprep.mubr.bf16.mxu0 0
        %2620 = vmatmul.mubr.bf16.gmra.mxu0 %v2562
        %v2621 = vpop.f32.mrf.mxu0
        %v2622 = vadd.f32 %v2497, %v2621
        %v2623 = vpop.f32.mrf.mxu0
        %v2624 = vadd.f32 %v2499, %v2623
        %v2625 = vpop.f32.mrf.mxu0
        %v2626 = vadd.f32 %v2501, %v2625
        %v2627 = vpop.f32.mrf.mxu0
        %v2628 = vadd.f32 %v2503, %v2627
        %2629 = vmatprep.mubr.bf16.mxu0 0
        %2630 = vmatmul.mubr.bf16.gmra.mxu0 %v2565
        %v2631 = vpop.f32.mrf.mxu0
        %v2632 = vadd.f32 %v2507, %v2631
        %v2633 = vpop.f32.mrf.mxu0
        %v2634 = vadd.f32 %v2509, %v2633
        %v2635 = vpop.f32.mrf.mxu0
        %v2636 = vadd.f32 %v2511, %v2635
        %v2637 = vpop.f32.mrf.mxu0
        %v2638 = vadd.f32 %v2513, %v2637
        %2639 = vdwg.mxu0
        %v2640 = vld [vmem:[#allocation2 + $0x4] sm:$0xf]
        %v2641 = vld [vmem:[#allocation2 + $0x1c] sm:$0xf]
        %v2642 = vld [vmem:[#allocation2 + $0x34] sm:$0xf]
        %v2643 = vld [vmem:[#allocation2 + $0x4c] sm:$0xf]
        %v2644 = vld [vmem:[#allocation2 + $0x64] sm:$0xf]
        %v2645 = vld [vmem:[#allocation2 + $0x7c] sm:$0xf]
        %v2646 = vld [vmem:[#allocation2 + $0x94] sm:$0xf]
        %v2647 = vld [vmem:[#allocation2 + $0xac] sm:$0xf]
        %v2648 = vld [vmem:[#allocation2 + $0xc] sm:$0xf]
        %v2649 = vld [vmem:[#allocation2 + $0x24] sm:$0xf]
        %v2650 = vld [vmem:[#allocation2 + $0x3c] sm:$0xf]
        %v2651 = vld [vmem:[#allocation2 + $0x54] sm:$0xf]
        %v2652 = vld [vmem:[#allocation2 + $0x6c] sm:$0xf]
        %v2653 = vld [vmem:[#allocation2 + $0x84] sm:$0xf]
        %v2654 = vld [vmem:[#allocation2 + $0x9c] sm:$0xf]
        %v2655 = vld [vmem:[#allocation2 + $0xb4] sm:$0xf]
        %v2656 = vld [vmem:[#allocation2 + $0x14] sm:$0xf]
        %v2657 = vld [vmem:[#allocation2 + $0x2c] sm:$0xf]
        %v2658 = vld [vmem:[#allocation2 + $0x44] sm:$0xf]
        %v2659 = vld [vmem:[#allocation2 + $0x5c] sm:$0xf]
        %v2660 = vld [vmem:[#allocation2 + $0x74] sm:$0xf]
        %v2661 = vld [vmem:[#allocation2 + $0x8c] sm:$0xf]
        %v2662 = vld [vmem:[#allocation2 + $0xa4] sm:$0xf]
        %v2663 = vld [vmem:[#allocation2 + $0xbc] sm:$0xf]
        %v2672 = vunpack.c.l.b16 %v2640
        %v2673 = vunpack.c.l.b16 %v2641
        %v2674 = vunpack.c.l.b16 %v2642
        %v2675 = vunpack.c.l.b16 %v2643
        %v2676 = vunpack.c.l.b16 %v2644
        %v2677 = vunpack.c.l.b16 %v2645
        %v2678 = vunpack.c.l.b16 %v2646
        %v2679 = vunpack.c.l.b16 %v2647
        %v2680 = vpack.c.b16 %v2673, %v2672
        %v2681 = vpack.c.b16 %v2675, %v2674
        %v2682 = vpack.c.b16 %v2677, %v2676
        %v2683 = vpack.c.b16 %v2679, %v2678
        %v2692 = vunpack.c.l.b16 %v2648
        %v2693 = vunpack.c.l.b16 %v2649
        %v2694 = vunpack.c.l.b16 %v2650
        %v2695 = vunpack.c.l.b16 %v2651
        %v2696 = vunpack.c.l.b16 %v2652
        %v2697 = vunpack.c.l.b16 %v2653
        %v2698 = vunpack.c.l.b16 %v2654
        %v2699 = vunpack.c.l.b16 %v2655
        %v2700 = vpack.c.b16 %v2693, %v2692
        %v2701 = vpack.c.b16 %v2695, %v2694
        %v2702 = vpack.c.b16 %v2697, %v2696
        %v2703 = vpack.c.b16 %v2699, %v2698
        %v2705 = vsel %vm1696, %v2680, 0
        %v2708 = vsel %vm1696, %v2681, 0
        %v2711 = vsel %vm1696, %v2682, 0
        %v2714 = vsel %vm1696, %v2683, 0
        %v2717 = vsel %vm1696, %v2700, 0
        %v2720 = vsel %vm1696, %v2701, 0
        %v2723 = vsel %vm1696, %v2702, 0
        %v2726 = vsel %vm1696, %v2703, 0
        %2728 = vmatprep.subr.bf16.mxu0 0
        %2729 = vmatpush1.bf16.xpose.msra.mxu0 0
        %2730 = vmatprep.subr.bf16.mxu0 0
        %2731 = vmatpush1.bf16.xpose.msra.mxu0 0
        %2732 = vmatprep.subr.bf16.mxu0 0
        %2733 = vmatpush1.bf16.xpose.msra.mxu0 0
        %2734 = vmatprep.subr.bf16.mxu0 0
        %2735 = vmatpush1.bf16.xpose.msra.mxu0 0
        %2736 = vmatprep.subr.bf16.mxu0 0
        %2737 = vmatpush1.bf16.xpose.msra.mxu0 %v2726
        %2738 = vmatprep.subr.bf16.mxu0 0
        %2739 = vmatpush1.bf16.xpose.msra.mxu0 %v2723
        %2740 = vmatprep.subr.bf16.mxu0 0
        %2741 = vmatpush1.bf16.xpose.msra.mxu0 %v2720
        %2742 = vmatprep.subr.bf16.mxu0 0
        %2743 = vmatpush1.bf16.xpose.msra.mxu0 %v2717
        %2744 = vmatprep.subr.bf16.mxu0 0
        %2745 = vmatpush2.bf16.xpose.msra.mxu0 0
        %2746 = vmatprep.subr.bf16.mxu0 0
        %2747 = vmatpush2.bf16.xpose.msra.mxu0 0
        %2748 = vmatprep.subr.bf16.mxu0 0
        %2749 = vmatpush2.bf16.xpose.msra.mxu0 0
        %2750 = vmatprep.subr.bf16.mxu0 0
        %2751 = vmatpush2.bf16.xpose.msra.mxu0 0
        %2752 = vmatprep.subr.bf16.mxu0 0
        %2753 = vmatpush2.bf16.xpose.msra.mxu0 0
        %2754 = vmatprep.subr.bf16.mxu0 0
        %2755 = vmatpush2.bf16.xpose.msra.mxu0 0
        %2756 = vmatprep.subr.bf16.mxu0 0
        %2757 = vmatpush2.bf16.xpose.msra.mxu0 0
        %2758 = vmatprep.subr.bf16.mxu0 0
        %2759 = vmatpush2.bf16.xpose.msra.mxu0 0
        %2760 = vmatprep.mubr.bf16.mxu0 0
        %2761 = vmatmul.mubr.bf16.gmra.mxu0 %v2705
        %v2762 = vpop.f32.mrf.mxu0
        %v2763 = vadd.f32 0.0, %v2762
        %v2764 = vpop.f32.mrf.mxu0
        %v2765 = vpop.f32.mrf.mxu0
        %v2766 = vadd.f32 0.0, %v2765
        %v2767 = vpop.f32.mrf.mxu0
        %2768 = vmatprep.mubr.bf16.mxu0 0
        %2769 = vmatmul.mubr.bf16.gmra.mxu0 %v2708
        %v2770 = vpop.f32.mrf.mxu0
        %v2771 = vadd.f32 0.0, %v2770
        %v2772 = vpop.f32.mrf.mxu0
        %v2773 = vpop.f32.mrf.mxu0
        %v2774 = vadd.f32 0.0, %v2773
        %v2775 = vpop.f32.mrf.mxu0
        %2776 = vmatprep.mubr.bf16.mxu0 0
        %2777 = vmatmul.mubr.bf16.gmra.mxu0 %v2711
        %v2778 = vpop.f32.mrf.mxu0
        %v2779 = vadd.f32 0.0, %v2778
        %v2780 = vpop.f32.mrf.mxu0
        %v2781 = vpop.f32.mrf.mxu0
        %v2782 = vadd.f32 0.0, %v2781
        %v2783 = vpop.f32.mrf.mxu0
        %2784 = vmatprep.mubr.bf16.mxu0 0
        %2785 = vmatmul.mubr.bf16.gmra.mxu0 %v2714
        %v2786 = vpop.f32.mrf.mxu0
        %v2787 = vadd.f32 0.0, %v2786
        %v2788 = vpop.f32.mrf.mxu0
        %v2789 = vpop.f32.mrf.mxu0
        %v2790 = vadd.f32 0.0, %v2789
        %v2791 = vpop.f32.mrf.mxu0
        %2792 = vdwg.mxu0
        %v2793 = vsel %vm1696, %v2763, -inf
        %2794 = vmax.xlane.f32.xlu0 %v2793
        %v2795 = vpop.xlane.xlu0 %2794
        %v2796 = vsel %vm1696, %v2766, -inf
        %2797 = vmax.xlane.f32.xlu0 %v2796
        %v2798 = vpop.xlane.xlu0 %2797
        %v2799 = vsel %vm1696, %v2771, -inf
        %2800 = vmax.xlane.f32.xlu0 %v2799
        %v2801 = vpop.xlane.xlu0 %2800
        %v2802 = vsel %vm1696, %v2774, -inf
        %2803 = vmax.xlane.f32.xlu0 %v2802
        %v2804 = vpop.xlane.xlu0 %2803
        %v2805 = vsel %vm1696, %v2779, -inf
        %2806 = vmax.xlane.f32.xlu0 %v2805
        %v2807 = vpop.xlane.xlu0 %2806
        %v2808 = vsel %vm1696, %v2782, -inf
        %2809 = vmax.xlane.f32.xlu0 %v2808
        %v2810 = vpop.xlane.xlu0 %2809
        %v2811 = vsel %vm1696, %v2787, -inf
        %2812 = vmax.xlane.f32.xlu0 %v2811
        %v2813 = vpop.xlane.xlu0 %2812
        %v2814 = vsel %vm1696, %v2790, -inf
        %2815 = vmax.xlane.f32.xlu0 %v2814
        %v2816 = vpop.xlane.xlu0 %2815
        %v2817 = vsub.f32 %v2763, %v2795
        %v2818 = vsub.f32 %v2766, %v2798
        %v2819 = vsub.f32 %v2771, %v2801
        %v2820 = vsub.f32 %v2774, %v2804
        %v2821 = vsub.f32 %v2779, %v2807
        %v2822 = vsub.f32 %v2782, %v2810
        %v2823 = vsub.f32 %v2787, %v2813
        %v2824 = vsub.f32 %v2790, %v2816
        %v2825 = vmul.f32 %v2817, 1.442695
        %v2826 = vpow.pop %v2825
        %v2827 = vmul.f32 %v2818, 1.442695
        %v2828 = vpow.pop %v2827
        %v2829 = vmul.f32 %v2819, 1.442695
        %v2830 = vpow.pop %v2829
        %v2831 = vmul.f32 %v2820, 1.442695
        %v2832 = vpow.pop %v2831
        %v2833 = vmul.f32 %v2821, 1.442695
        %v2834 = vpow.pop %v2833
        %v2835 = vmul.f32 %v2822, 1.442695
        %v2836 = vpow.pop %v2835
        %v2837 = vmul.f32 %v2823, 1.442695
        %v2838 = vpow.pop %v2837
        %v2839 = vmul.f32 %v2824, 1.442695
        %v2840 = vpow.pop %v2839
        %v2841 = vsel %vm1696, %v2826, 0.0
        %2842 = vadd.xlane.f32.xlu0 %v2841
        %v2843 = vpop.xlane.xlu0 %2842
        %v2844 = vsel %vm1696, %v2828, 0.0
        %2845 = vadd.xlane.f32.xlu0 %v2844
        %v2846 = vpop.xlane.xlu0 %2845
        %v2847 = vsel %vm1696, %v2830, 0.0
        %2848 = vadd.xlane.f32.xlu0 %v2847
        %v2849 = vpop.xlane.xlu0 %2848
        %v2850 = vsel %vm1696, %v2832, 0.0
        %2851 = vadd.xlane.f32.xlu0 %v2850
        %v2852 = vpop.xlane.xlu0 %2851
        %v2853 = vsel %vm1696, %v2834, 0.0
        %2854 = vadd.xlane.f32.xlu0 %v2853
        %v2855 = vpop.xlane.xlu0 %2854
        %v2856 = vsel %vm1696, %v2836, 0.0
        %2857 = vadd.xlane.f32.xlu0 %v2856
        %v2858 = vpop.xlane.xlu0 %2857
        %v2859 = vsel %vm1696, %v2838, 0.0
        %2860 = vadd.xlane.f32.xlu0 %v2859
        %v2861 = vpop.xlane.xlu0 %2860
        %v2862 = vsel %vm1696, %v2840, 0.0
        %2863 = vadd.xlane.f32.xlu0 %v2862
        %v2864 = vpop.xlane.xlu0 %2863
        %v2865 = vrcp.pop %v2843
        %v2866 = vrcp.pop %v2846
        %v2867 = vrcp.pop %v2849
        %v2868 = vrcp.pop %v2852
        %v2869 = vrcp.pop %v2855
        %v2870 = vrcp.pop %v2858
        %v2871 = vrcp.pop %v2861
        %v2872 = vrcp.pop %v2864
        %v2873 = vmul.f32 %v2826, %v2865
        %v2874 = vmul.f32 %v2828, %v2866
        %v2875 = vmul.f32 %v2830, %v2867
        %v2876 = vmul.f32 %v2832, %v2868
        %v2877 = vmul.f32 %v2834, %v2869
        %v2878 = vmul.f32 %v2836, %v2870
        %v2879 = vmul.f32 %v2838, %v2871
        %v2880 = vmul.f32 %v2840, %v2872
        %s2881 = scalar_lea.vmem %s605, 128 [#allocation19]
        %2882 = vst.msk [vmem:[%s2881] sm:$0xff] %vm1696, %v2873
        %2883 = vst.msk [vmem:[%s2881 + $0x8] sm:$0xff] %vm1696, %v2874
        %2884 = vst.msk [vmem:[%s2881 + $0x10] sm:$0xff] %vm1696, %v2875
        %2885 = vst.msk [vmem:[%s2881 + $0x18] sm:$0xff] %vm1696, %v2876
        %2886 = vst.msk [vmem:[%s2881 + $0x20] sm:$0xff] %vm1696, %v2877
        %2887 = vst.msk [vmem:[%s2881 + $0x28] sm:$0xff] %vm1696, %v2878
        %2888 = vst.msk [vmem:[%s2881 + $0x30] sm:$0xff] %vm1696, %v2879
        %2889 = vst.msk [vmem:[%s2881 + $0x38] sm:$0xff] %vm1696, %v2880
        %v2890 = vpack.c.bf16 %v2874, %v2873
        %v2891 = vpack.c.bf16 %v2876, %v2875
        %v2892 = vpack.c.bf16 %v2878, %v2877
        %v2893 = vpack.c.bf16 %v2880, %v2879
        %v2902 = vunpack.c.l.b16 %v2656
        %v2903 = vunpack.c.l.b16 %v2657
        %v2904 = vunpack.c.l.b16 %v2658
        %v2905 = vunpack.c.l.b16 %v2659
        %v2906 = vunpack.c.l.b16 %v2660
        %v2907 = vunpack.c.l.b16 %v2661
        %v2908 = vunpack.c.l.b16 %v2662
        %v2909 = vunpack.c.l.b16 %v2663
        %v2910 = vpack.c.b16 %v2903, %v2902
        %v2911 = vpack.c.b16 %v2905, %v2904
        %v2912 = vpack.c.b16 %v2907, %v2906
        %v2913 = vpack.c.b16 %v2909, %v2908
        %v2919 = vsel %vm1696, %v2890, 0
        %v2922 = vsel %vm1696, %v2891, 0
        %v2925 = vsel %vm1696, %v2892, 0
        %v2928 = vsel %vm1696, %v2893, 0
        %2930 = vmatprep.subr.bf16.mxu0 0
        %2931 = vmatpush1.bf16.msra.mxu0 0
        %2932 = vmatprep.subr.bf16.mxu0 0
        %2933 = vmatpush1.bf16.msra.mxu0 0
        %2934 = vmatprep.subr.bf16.mxu0 0
        %2935 = vmatpush1.bf16.msra.mxu0 0
        %2936 = vmatprep.subr.bf16.mxu0 0
        %2937 = vmatpush1.bf16.msra.mxu0 0
        %2938 = vmatprep.subr.bf16.mxu0 0
        %2939 = vmatpush1.bf16.msra.mxu0 %v2913
        %2940 = vmatprep.subr.bf16.mxu0 0
        %2941 = vmatpush1.bf16.msra.mxu0 %v2912
        %2942 = vmatprep.subr.bf16.mxu0 0
        %2943 = vmatpush1.bf16.msra.mxu0 %v2911
        %2944 = vmatprep.subr.bf16.mxu0 0
        %2945 = vmatpush1.bf16.msra.mxu0 %v2910
        %2946 = vmatprep.subr.bf16.mxu0 0
        %2947 = vmatpush2.bf16.msra.mxu0 0
        %2948 = vmatprep.subr.bf16.mxu0 0
        %2949 = vmatpush2.bf16.msra.mxu0 0
        %2950 = vmatprep.subr.bf16.mxu0 0
        %2951 = vmatpush2.bf16.msra.mxu0 0
        %2952 = vmatprep.subr.bf16.mxu0 0
        %2953 = vmatpush2.bf16.msra.mxu0 0
        %2954 = vmatprep.subr.bf16.mxu0 0
        %2955 = vmatpush2.bf16.msra.mxu0 0
        %2956 = vmatprep.subr.bf16.mxu0 0
        %2957 = vmatpush2.bf16.msra.mxu0 0
        %2958 = vmatprep.subr.bf16.mxu0 0
        %2959 = vmatpush2.bf16.msra.mxu0 0
        %2960 = vmatprep.subr.bf16.mxu0 0
        %2961 = vmatpush2.bf16.msra.mxu0 0
        %2962 = vmatprep.mubr.bf16.mxu0 0
        %2963 = vmatmul.mubr.bf16.gmra.mxu0 %v2919
        %v2964 = vpop.f32.mrf.mxu0
        %v2965 = vadd.f32 0.0, %v2964
        %v2966 = vpop.f32.mrf.mxu0
        %v2967 = vpop.f32.mrf.mxu0
        %v2968 = vadd.f32 0.0, %v2967
        %v2969 = vpop.f32.mrf.mxu0
        %2970 = vmatprep.mubr.bf16.mxu0 0
        %2971 = vmatmul.mubr.bf16.gmra.mxu0 %v2922
        %v2972 = vpop.f32.mrf.mxu0
        %v2973 = vadd.f32 0.0, %v2972
        %v2974 = vpop.f32.mrf.mxu0
        %v2975 = vpop.f32.mrf.mxu0
        %v2976 = vadd.f32 0.0, %v2975
        %v2977 = vpop.f32.mrf.mxu0
        %2978 = vmatprep.mubr.bf16.mxu0 0
        %2979 = vmatmul.mubr.bf16.gmra.mxu0 %v2925
        %v2980 = vpop.f32.mrf.mxu0
        %v2981 = vadd.f32 0.0, %v2980
        %v2982 = vpop.f32.mrf.mxu0
        %v2983 = vpop.f32.mrf.mxu0
        %v2984 = vadd.f32 0.0, %v2983
        %v2985 = vpop.f32.mrf.mxu0
        %2986 = vmatprep.mubr.bf16.mxu0 0
        %2987 = vmatmul.mubr.bf16.gmra.mxu0 %v2928
        %v2988 = vpop.f32.mrf.mxu0
        %v2989 = vadd.f32 0.0, %v2988
        %v2990 = vpop.f32.mrf.mxu0
        %v2991 = vpop.f32.mrf.mxu0
        %v2992 = vadd.f32 0.0, %v2991
        %v2993 = vpop.f32.mrf.mxu0
        %2994 = vdwg.mxu0
        %v2995 = vpack.c.bf16 %v2968, %v2965
        %v2996 = vpack.c.bf16 %v2976, %v2973
        %v2997 = vpack.c.bf16 %v2984, %v2981
        %v2998 = vpack.c.bf16 %v2992, %v2989
        %v2999 = vld [vmem:[#allocation8 + $0x80] sm:$0xff]
        %v3000 = vld [vmem:[#allocation8 + $0x88] sm:$0xff]
        %v3001 = vld [vmem:[#allocation8 + $0x90] sm:$0xff]
        %v3002 = vld [vmem:[#allocation8 + $0x98] sm:$0xff]
        %v3003 = vld [vmem:[#allocation8 + $0xa0] sm:$0xff]
        %v3004 = vld [vmem:[#allocation8 + $0xa8] sm:$0xff]
        %v3005 = vld [vmem:[#allocation8 + $0xb0] sm:$0xff]
        %v3006 = vld [vmem:[#allocation8 + $0xb8] sm:$0xff]
        %v3015 = vunpack.c.l.b16 %v2999
        %v3016 = vunpack.c.h.b16 %v2999
        %v3017 = vunpack.c.l.b16 %v3000
        %v3018 = vunpack.c.h.b16 %v3000
        %v3019 = vunpack.c.l.b16 %v3001
        %v3020 = vunpack.c.h.b16 %v3001
        %v3021 = vunpack.c.l.b16 %v3002
        %v3022 = vunpack.c.h.b16 %v3002
        %v3023 = vunpack.c.l.b16 %v3003
        %v3024 = vunpack.c.h.b16 %v3003
        %v3025 = vunpack.c.l.b16 %v3004
        %v3026 = vunpack.c.h.b16 %v3004
        %v3027 = vunpack.c.l.b16 %v3005
        %v3028 = vunpack.c.h.b16 %v3005
        %v3029 = vunpack.c.l.b16 %v3006
        %v3030 = vunpack.c.h.b16 %v3006
        %v3031 = vpack.c.b16 %v3017, %v3015
        %v3032 = vpack.c.b16 %v3018, %v3016
        %v3033 = vpack.c.b16 %v3021, %v3019
        %v3034 = vpack.c.b16 %v3022, %v3020
        %v3035 = vpack.c.b16 %v3025, %v3023
        %v3036 = vpack.c.b16 %v3026, %v3024
        %v3037 = vpack.c.b16 %v3029, %v3027
        %v3038 = vpack.c.b16 %v3030, %v3028
        %v3048 = vsel %vm1696, %v2995, 0
        %v3051 = vsel %vm1696, %v2996, 0
        %v3054 = vsel %vm1696, %v2997, 0
        %v3057 = vsel %vm1696, %v2998, 0
        %3059 = vmatprep.subr.bf16.mxu0 0
        %3060 = vmatpush1.bf16.msra.mxu0 0
        %3061 = vmatprep.subr.bf16.mxu0 0
        %3062 = vmatpush1.bf16.msra.mxu0 0
        %3063 = vmatprep.subr.bf16.mxu0 0
        %3064 = vmatpush1.bf16.msra.mxu0 0
        %3065 = vmatprep.subr.bf16.mxu0 0
        %3066 = vmatpush1.bf16.msra.mxu0 0
        %3067 = vmatprep.subr.bf16.mxu0 %v3038
        %3068 = vmatpush1.bf16.msra.mxu0 %v3037
        %3069 = vmatprep.subr.bf16.mxu0 %v3036
        %3070 = vmatpush1.bf16.msra.mxu0 %v3035
        %3071 = vmatprep.subr.bf16.mxu0 %v3034
        %3072 = vmatpush1.bf16.msra.mxu0 %v3033
        %3073 = vmatprep.subr.bf16.mxu0 %v3032
        %3074 = vmatpush1.bf16.msra.mxu0 %v3031
        %3075 = vmatprep.subr.bf16.mxu0 0
        %3076 = vmatpush2.bf16.msra.mxu0 0
        %3077 = vmatprep.subr.bf16.mxu0 0
        %3078 = vmatpush2.bf16.msra.mxu0 0
        %3079 = vmatprep.subr.bf16.mxu0 0
        %3080 = vmatpush2.bf16.msra.mxu0 0
        %3081 = vmatprep.subr.bf16.mxu0 0
        %3082 = vmatpush2.bf16.msra.mxu0 0
        %3083 = vmatprep.subr.bf16.mxu0 0
        %3084 = vmatpush2.bf16.msra.mxu0 0
        %3085 = vmatprep.subr.bf16.mxu0 0
        %3086 = vmatpush2.bf16.msra.mxu0 0
        %3087 = vmatprep.subr.bf16.mxu0 0
        %3088 = vmatpush2.bf16.msra.mxu0 0
        %3089 = vmatprep.subr.bf16.mxu0 0
        %3090 = vmatpush2.bf16.msra.mxu0 0
        %3091 = vmatprep.mubr.bf16.mxu0 0
        %3092 = vmatmul.mubr.bf16.gmra.mxu0 %v3048
        %v3093 = vpop.f32.mrf.mxu0
        %v3094 = vadd.f32 0.0, %v3093
        %v3095 = vpop.f32.mrf.mxu0
        %v3096 = vadd.f32 0.0, %v3095
        %v3097 = vpop.f32.mrf.mxu0
        %v3098 = vadd.f32 0.0, %v3097
        %v3099 = vpop.f32.mrf.mxu0
        %v3100 = vadd.f32 0.0, %v3099
        %3101 = vmatprep.mubr.bf16.mxu0 0
        %3102 = vmatmul.mubr.bf16.gmra.mxu0 %v3051
        %v3103 = vpop.f32.mrf.mxu0
        %v3104 = vadd.f32 0.0, %v3103
        %v3105 = vpop.f32.mrf.mxu0
        %v3106 = vadd.f32 0.0, %v3105
        %v3107 = vpop.f32.mrf.mxu0
        %v3108 = vadd.f32 0.0, %v3107
        %v3109 = vpop.f32.mrf.mxu0
        %v3110 = vadd.f32 0.0, %v3109
        %3111 = vmatprep.mubr.bf16.mxu0 0
        %3112 = vmatmul.mubr.bf16.gmra.mxu0 %v3054
        %v3113 = vpop.f32.mrf.mxu0
        %v3114 = vadd.f32 0.0, %v3113
        %v3115 = vpop.f32.mrf.mxu0
        %v3116 = vadd.f32 0.0, %v3115
        %v3117 = vpop.f32.mrf.mxu0
        %v3118 = vadd.f32 0.0, %v3117
        %v3119 = vpop.f32.mrf.mxu0
        %v3120 = vadd.f32 0.0, %v3119
        %3121 = vmatprep.mubr.bf16.mxu0 0
        %3122 = vmatmul.mubr.bf16.gmra.mxu0 %v3057
        %v3123 = vpop.f32.mrf.mxu0
        %v3124 = vadd.f32 0.0, %v3123
        %v3125 = vpop.f32.mrf.mxu0
        %v3126 = vadd.f32 0.0, %v3125
        %v3127 = vpop.f32.mrf.mxu0
        %v3128 = vadd.f32 0.0, %v3127
        %v3129 = vpop.f32.mrf.mxu0
        %v3130 = vadd.f32 0.0, %v3129
        %3131 = vdwg.mxu0
        %v3132 = vadd.f32 %v2602, %v3094
        %v3133 = vadd.f32 %v2604, %v3096
        %v3134 = vadd.f32 %v2606, %v3098
        %v3135 = vadd.f32 %v2608, %v3100
        %v3136 = vadd.f32 %v2612, %v3104
        %v3137 = vadd.f32 %v2614, %v3106
        %v3138 = vadd.f32 %v2616, %v3108
        %v3139 = vadd.f32 %v2618, %v3110
        %v3140 = vadd.f32 %v2622, %v3114
        %v3141 = vadd.f32 %v2624, %v3116
        %v3142 = vadd.f32 %v2626, %v3118
        %v3143 = vadd.f32 %v2628, %v3120
        %v3144 = vadd.f32 %v2632, %v3124
        %v3145 = vadd.f32 %v2634, %v3126
        %v3146 = vadd.f32 %v2636, %v3128
        %v3147 = vadd.f32 %v2638, %v3130
        %v3148 = vld [vmem:[#allocation2 + $0x4] sm:$0xf]
        %v3149 = vld [vmem:[#allocation2 + $0x1c] sm:$0xf]
        %v3150 = vld [vmem:[#allocation2 + $0x34] sm:$0xf]
        %v3151 = vld [vmem:[#allocation2 + $0x4c] sm:$0xf]
        %v3152 = vld [vmem:[#allocation2 + $0x64] sm:$0xf]
        %v3153 = vld [vmem:[#allocation2 + $0x7c] sm:$0xf]
        %v3154 = vld [vmem:[#allocation2 + $0x94] sm:$0xf]
        %v3155 = vld [vmem:[#allocation2 + $0xac] sm:$0xf]
        %v3156 = vld [vmem:[#allocation2 + $0xc] sm:$0xf]
        %v3157 = vld [vmem:[#allocation2 + $0x24] sm:$0xf]
        %v3158 = vld [vmem:[#allocation2 + $0x3c] sm:$0xf]
        %v3159 = vld [vmem:[#allocation2 + $0x54] sm:$0xf]
        %v3160 = vld [vmem:[#allocation2 + $0x6c] sm:$0xf]
        %v3161 = vld [vmem:[#allocation2 + $0x84] sm:$0xf]
        %v3162 = vld [vmem:[#allocation2 + $0x9c] sm:$0xf]
        %v3163 = vld [vmem:[#allocation2 + $0xb4] sm:$0xf]
        %v3164 = vld [vmem:[#allocation2 + $0x14] sm:$0xf]
        %v3165 = vld [vmem:[#allocation2 + $0x2c] sm:$0xf]
        %v3166 = vld [vmem:[#allocation2 + $0x44] sm:$0xf]
        %v3167 = vld [vmem:[#allocation2 + $0x5c] sm:$0xf]
        %v3168 = vld [vmem:[#allocation2 + $0x74] sm:$0xf]
        %v3169 = vld [vmem:[#allocation2 + $0x8c] sm:$0xf]
        %v3170 = vld [vmem:[#allocation2 + $0xa4] sm:$0xf]
        %v3171 = vld [vmem:[#allocation2 + $0xbc] sm:$0xf]
        %v3180 = vunpack.c.l.b16 %v3148
        %v3181 = vunpack.c.l.b16 %v3149
        %v3182 = vunpack.c.l.b16 %v3150
        %v3183 = vunpack.c.l.b16 %v3151
        %v3184 = vunpack.c.l.b16 %v3152
        %v3185 = vunpack.c.l.b16 %v3153
        %v3186 = vunpack.c.l.b16 %v3154
        %v3187 = vunpack.c.l.b16 %v3155
        %v3188 = vpack.c.b16 %v3181, %v3180
        %v3189 = vpack.c.b16 %v3183, %v3182
        %v3190 = vpack.c.b16 %v3185, %v3184
        %v3191 = vpack.c.b16 %v3187, %v3186
        %3192 = vrot.lane.b32.xlu0 %v3188, 64
        %v3193 = vpop.permute.xlu0 %3192
        %3194 = vrot.lane.b32.xlu0 %v3189, 64
        %v3195 = vpop.permute.xlu0 %3194
        %3196 = vrot.lane.b32.xlu0 %v3190, 64
        %v3197 = vpop.permute.xlu0 %3196
        %3198 = vrot.lane.b32.xlu0 %v3191, 64
        %v3199 = vpop.permute.xlu0 %3198
        %v3208 = vunpack.c.l.b16 %v3156
        %v3209 = vunpack.c.l.b16 %v3157
        %v3210 = vunpack.c.l.b16 %v3158
        %v3211 = vunpack.c.l.b16 %v3159
        %v3212 = vunpack.c.l.b16 %v3160
        %v3213 = vunpack.c.l.b16 %v3161
        %v3214 = vunpack.c.l.b16 %v3162
        %v3215 = vunpack.c.l.b16 %v3163
        %v3216 = vpack.c.b16 %v3209, %v3208
        %v3217 = vpack.c.b16 %v3211, %v3210
        %v3218 = vpack.c.b16 %v3213, %v3212
        %v3219 = vpack.c.b16 %v3215, %v3214
        %3220 = vrot.lane.b32.xlu0 %v3216, 64
        %v3221 = vpop.permute.xlu0 %3220
        %3222 = vrot.lane.b32.xlu0 %v3217, 64
        %v3223 = vpop.permute.xlu0 %3222
        %3224 = vrot.lane.b32.xlu0 %v3218, 64
        %v3225 = vpop.permute.xlu0 %3224
        %3226 = vrot.lane.b32.xlu0 %v3219, 64
        %v3227 = vpop.permute.xlu0 %3226
        %v3229 = vsel %vm1696, %v3193, 0
        %v3232 = vsel %vm1696, %v3195, 0
        %v3235 = vsel %vm1696, %v3197, 0
        %v3238 = vsel %vm1696, %v3199, 0
        %v3241 = vsel %vm1696, %v3221, 0
        %v3244 = vsel %vm1696, %v3223, 0
        %v3247 = vsel %vm1696, %v3225, 0
        %v3250 = vsel %vm1696, %v3227, 0
        %3252 = vmatprep.subr.bf16.mxu0 0
        %3253 = vmatpush1.bf16.xpose.msra.mxu0 0
        %3254 = vmatprep.subr.bf16.mxu0 0
        %3255 = vmatpush1.bf16.xpose.msra.mxu0 0
        %3256 = vmatprep.subr.bf16.mxu0 0
        %3257 = vmatpush1.bf16.xpose.msra.mxu0 0
        %3258 = vmatprep.subr.bf16.mxu0 0
        %3259 = vmatpush1.bf16.xpose.msra.mxu0 0
        %3260 = vmatprep.subr.bf16.mxu0 0
        %3261 = vmatpush1.bf16.xpose.msra.mxu0 %v3250
        %3262 = vmatprep.subr.bf16.mxu0 0
        %3263 = vmatpush1.bf16.xpose.msra.mxu0 %v3247
        %3264 = vmatprep.subr.bf16.mxu0 0
        %3265 = vmatpush1.bf16.xpose.msra.mxu0 %v3244
        %3266 = vmatprep.subr.bf16.mxu0 0
        %3267 = vmatpush1.bf16.xpose.msra.mxu0 %v3241
        %3268 = vmatprep.subr.bf16.mxu0 0
        %3269 = vmatpush2.bf16.xpose.msra.mxu0 0
        %3270 = vmatprep.subr.bf16.mxu0 0
        %3271 = vmatpush2.bf16.xpose.msra.mxu0 0
        %3272 = vmatprep.subr.bf16.mxu0 0
        %3273 = vmatpush2.bf16.xpose.msra.mxu0 0
        %3274 = vmatprep.subr.bf16.mxu0 0
        %3275 = vmatpush2.bf16.xpose.msra.mxu0 0
        %3276 = vmatprep.subr.bf16.mxu0 0
        %3277 = vmatpush2.bf16.xpose.msra.mxu0 0
        %3278 = vmatprep.subr.bf16.mxu0 0
        %3279 = vmatpush2.bf16.xpose.msra.mxu0 0
        %3280 = vmatprep.subr.bf16.mxu0 0
        %3281 = vmatpush2.bf16.xpose.msra.mxu0 0
        %3282 = vmatprep.subr.bf16.mxu0 0
        %3283 = vmatpush2.bf16.xpose.msra.mxu0 0
        %3284 = vmatprep.mubr.bf16.mxu0 0
        %3285 = vmatmul.mubr.bf16.gmra.mxu0 %v3229
        %v3286 = vpop.f32.mrf.mxu0
        %v3287 = vadd.f32 0.0, %v3286
        %v3288 = vpop.f32.mrf.mxu0
        %v3289 = vpop.f32.mrf.mxu0
        %v3290 = vadd.f32 0.0, %v3289
        %v3291 = vpop.f32.mrf.mxu0
        %3292 = vmatprep.mubr.bf16.mxu0 0
        %3293 = vmatmul.mubr.bf16.gmra.mxu0 %v3232
        %v3294 = vpop.f32.mrf.mxu0
        %v3295 = vadd.f32 0.0, %v3294
        %v3296 = vpop.f32.mrf.mxu0
        %v3297 = vpop.f32.mrf.mxu0
        %v3298 = vadd.f32 0.0, %v3297
        %v3299 = vpop.f32.mrf.mxu0
        %3300 = vmatprep.mubr.bf16.mxu0 0
        %3301 = vmatmul.mubr.bf16.gmra.mxu0 %v3235
        %v3302 = vpop.f32.mrf.mxu0
        %v3303 = vadd.f32 0.0, %v3302
        %v3304 = vpop.f32.mrf.mxu0
        %v3305 = vpop.f32.mrf.mxu0
        %v3306 = vadd.f32 0.0, %v3305
        %v3307 = vpop.f32.mrf.mxu0
        %3308 = vmatprep.mubr.bf16.mxu0 0
        %3309 = vmatmul.mubr.bf16.gmra.mxu0 %v3238
        %v3310 = vpop.f32.mrf.mxu0
        %v3311 = vadd.f32 0.0, %v3310
        %v3312 = vpop.f32.mrf.mxu0
        %v3313 = vpop.f32.mrf.mxu0
        %v3314 = vadd.f32 0.0, %v3313
        %v3315 = vpop.f32.mrf.mxu0
        %3316 = vdwg.mxu0
        %v3317 = vsel %vm1696, %v3287, -inf
        %3318 = vmax.xlane.f32.xlu0 %v3317
        %v3319 = vpop.xlane.xlu0 %3318
        %v3320 = vsel %vm1696, %v3290, -inf
        %3321 = vmax.xlane.f32.xlu0 %v3320
        %v3322 = vpop.xlane.xlu0 %3321
        %v3323 = vsel %vm1696, %v3295, -inf
        %3324 = vmax.xlane.f32.xlu0 %v3323
        %v3325 = vpop.xlane.xlu0 %3324
        %v3326 = vsel %vm1696, %v3298, -inf
        %3327 = vmax.xlane.f32.xlu0 %v3326
        %v3328 = vpop.xlane.xlu0 %3327
        %v3329 = vsel %vm1696, %v3303, -inf
        %3330 = vmax.xlane.f32.xlu0 %v3329
        %v3331 = vpop.xlane.xlu0 %3330
        %v3332 = vsel %vm1696, %v3306, -inf
        %3333 = vmax.xlane.f32.xlu0 %v3332
        %v3334 = vpop.xlane.xlu0 %3333
        %v3335 = vsel %vm1696, %v3311, -inf
        %3336 = vmax.xlane.f32.xlu0 %v3335
        %v3337 = vpop.xlane.xlu0 %3336
        %v3338 = vsel %vm1696, %v3314, -inf
        %3339 = vmax.xlane.f32.xlu0 %v3338
        %v3340 = vpop.xlane.xlu0 %3339
        %v3341 = vsub.f32 %v3287, %v3319
        %v3342 = vsub.f32 %v3290, %v3322
        %v3343 = vsub.f32 %v3295, %v3325
        %v3344 = vsub.f32 %v3298, %v3328
        %v3345 = vsub.f32 %v3303, %v3331
        %v3346 = vsub.f32 %v3306, %v3334
        %v3347 = vsub.f32 %v3311, %v3337
        %v3348 = vsub.f32 %v3314, %v3340
        %v3349 = vmul.f32 %v3341, 1.442695
        %v3350 = vpow.pop %v3349
        %v3351 = vmul.f32 %v3342, 1.442695
        %v3352 = vpow.pop %v3351
        %v3353 = vmul.f32 %v3343, 1.442695
        %v3354 = vpow.pop %v3353
        %v3355 = vmul.f32 %v3344, 1.442695
        %v3356 = vpow.pop %v3355
        %v3357 = vmul.f32 %v3345, 1.442695
        %v3358 = vpow.pop %v3357
        %v3359 = vmul.f32 %v3346, 1.442695
        %v3360 = vpow.pop %v3359
        %v3361 = vmul.f32 %v3347, 1.442695
        %v3362 = vpow.pop %v3361
        %v3363 = vmul.f32 %v3348, 1.442695
        %v3364 = vpow.pop %v3363
        %v3365 = vsel %vm1696, %v3350, 0.0
        %3366 = vadd.xlane.f32.xlu0 %v3365
        %v3367 = vpop.xlane.xlu0 %3366
        %v3368 = vsel %vm1696, %v3352, 0.0
        %3369 = vadd.xlane.f32.xlu0 %v3368
        %v3370 = vpop.xlane.xlu0 %3369
        %v3371 = vsel %vm1696, %v3354, 0.0
        %3372 = vadd.xlane.f32.xlu0 %v3371
        %v3373 = vpop.xlane.xlu0 %3372
        %v3374 = vsel %vm1696, %v3356, 0.0
        %3375 = vadd.xlane.f32.xlu0 %v3374
        %v3376 = vpop.xlane.xlu0 %3375
        %v3377 = vsel %vm1696, %v3358, 0.0
        %3378 = vadd.xlane.f32.xlu0 %v3377
        %v3379 = vpop.xlane.xlu0 %3378
        %v3380 = vsel %vm1696, %v3360, 0.0
        %3381 = vadd.xlane.f32.xlu0 %v3380
        %v3382 = vpop.xlane.xlu0 %3381
        %v3383 = vsel %vm1696, %v3362, 0.0
        %3384 = vadd.xlane.f32.xlu0 %v3383
        %v3385 = vpop.xlane.xlu0 %3384
        %v3386 = vsel %vm1696, %v3364, 0.0
        %3387 = vadd.xlane.f32.xlu0 %v3386
        %v3388 = vpop.xlane.xlu0 %3387
        %v3389 = vrcp.pop %v3367
        %v3390 = vrcp.pop %v3370
        %v3391 = vrcp.pop %v3373
        %v3392 = vrcp.pop %v3376
        %v3393 = vrcp.pop %v3379
        %v3394 = vrcp.pop %v3382
        %v3395 = vrcp.pop %v3385
        %v3396 = vrcp.pop %v3388
        %v3397 = vmul.f32 %v3350, %v3389
        %v3398 = vmul.f32 %v3352, %v3390
        %v3399 = vmul.f32 %v3354, %v3391
        %v3400 = vmul.f32 %v3356, %v3392
        %v3401 = vmul.f32 %v3358, %v3393
        %v3402 = vmul.f32 %v3360, %v3394
        %v3403 = vmul.f32 %v3362, %v3395
        %v3404 = vmul.f32 %v3364, %v3396
        %s3405 = scalar_lea.vmem %s605, 192 [#allocation19]
        %3406 = vst.msk [vmem:[%s3405] sm:$0xff] %vm1696, %v3397
        %3407 = vst.msk [vmem:[%s3405 + $0x8] sm:$0xff] %vm1696, %v3398
        %3408 = vst.msk [vmem:[%s3405 + $0x10] sm:$0xff] %vm1696, %v3399
        %3409 = vst.msk [vmem:[%s3405 + $0x18] sm:$0xff] %vm1696, %v3400
        %3410 = vst.msk [vmem:[%s3405 + $0x20] sm:$0xff] %vm1696, %v3401
        %3411 = vst.msk [vmem:[%s3405 + $0x28] sm:$0xff] %vm1696, %v3402
        %3412 = vst.msk [vmem:[%s3405 + $0x30] sm:$0xff] %vm1696, %v3403
        %3413 = vst.msk [vmem:[%s3405 + $0x38] sm:$0xff] %vm1696, %v3404
        %v3414 = vpack.c.bf16 %v3398, %v3397
        %v3415 = vpack.c.bf16 %v3400, %v3399
        %v3416 = vpack.c.bf16 %v3402, %v3401
        %v3417 = vpack.c.bf16 %v3404, %v3403
        %v3426 = vunpack.c.l.b16 %v3164
        %v3427 = vunpack.c.l.b16 %v3165
        %v3428 = vunpack.c.l.b16 %v3166
        %v3429 = vunpack.c.l.b16 %v3167
        %v3430 = vunpack.c.l.b16 %v3168
        %v3431 = vunpack.c.l.b16 %v3169
        %v3432 = vunpack.c.l.b16 %v3170
        %v3433 = vunpack.c.l.b16 %v3171
        %v3434 = vpack.c.b16 %v3427, %v3426
        %v3435 = vpack.c.b16 %v3429, %v3428
        %v3436 = vpack.c.b16 %v3431, %v3430
        %v3437 = vpack.c.b16 %v3433, %v3432
        %3438 = vrot.lane.b32.xlu0 %v3434, 64
        %v3439 = vpop.permute.xlu0 %3438
        %3440 = vrot.lane.b32.xlu0 %v3435, 64
        %v3441 = vpop.permute.xlu0 %3440
        %3442 = vrot.lane.b32.xlu0 %v3436, 64
        %v3443 = vpop.permute.xlu0 %3442
        %3444 = vrot.lane.b32.xlu0 %v3437, 64
        %v3445 = vpop.permute.xlu0 %3444
        %v3451 = vsel %vm1696, %v3414, 0
        %v3454 = vsel %vm1696, %v3415, 0
        %v3457 = vsel %vm1696, %v3416, 0
        %v3460 = vsel %vm1696, %v3417, 0
        %3462 = vmatprep.subr.bf16.mxu0 0
        %3463 = vmatpush1.bf16.msra.mxu0 0
        %3464 = vmatprep.subr.bf16.mxu0 0
        %3465 = vmatpush1.bf16.msra.mxu0 0
        %3466 = vmatprep.subr.bf16.mxu0 0
        %3467 = vmatpush1.bf16.msra.mxu0 0
        %3468 = vmatprep.subr.bf16.mxu0 0
        %3469 = vmatpush1.bf16.msra.mxu0 0
        %3470 = vmatprep.subr.bf16.mxu0 0
        %3471 = vmatpush1.bf16.msra.mxu0 %v3445
        %3472 = vmatprep.subr.bf16.mxu0 0
        %3473 = vmatpush1.bf16.msra.mxu0 %v3443
        %3474 = vmatprep.subr.bf16.mxu0 0
        %3475 = vmatpush1.bf16.msra.mxu0 %v3441
        %3476 = vmatprep.subr.bf16.mxu0 0
        %3477 = vmatpush1.bf16.msra.mxu0 %v3439
        %3478 = vmatprep.subr.bf16.mxu0 0
        %3479 = vmatpush2.bf16.msra.mxu0 0
        %3480 = vmatprep.subr.bf16.mxu0 0
        %3481 = vmatpush2.bf16.msra.mxu0 0
        %3482 = vmatprep.subr.bf16.mxu0 0
        %3483 = vmatpush2.bf16.msra.mxu0 0
        %3484 = vmatprep.subr.bf16.mxu0 0
        %3485 = vmatpush2.bf16.msra.mxu0 0
        %3486 = vmatprep.subr.bf16.mxu0 0
        %3487 = vmatpush2.bf16.msra.mxu0 0
        %3488 = vmatprep.subr.bf16.mxu0 0
        %3489 = vmatpush2.bf16.msra.mxu0 0
        %3490 = vmatprep.subr.bf16.mxu0 0
        %3491 = vmatpush2.bf16.msra.mxu0 0
        %3492 = vmatprep.subr.bf16.mxu0 0
        %3493 = vmatpush2.bf16.msra.mxu0 0
        %3494 = vmatprep.mubr.bf16.mxu0 0
        %3495 = vmatmul.mubr.bf16.gmra.mxu0 %v3451
        %v3496 = vpop.f32.mrf.mxu0
        %v3497 = vadd.f32 0.0, %v3496
        %v3498 = vpop.f32.mrf.mxu0
        %v3499 = vpop.f32.mrf.mxu0
        %v3500 = vadd.f32 0.0, %v3499
        %v3501 = vpop.f32.mrf.mxu0
        %3502 = vmatprep.mubr.bf16.mxu0 0
        %3503 = vmatmul.mubr.bf16.gmra.mxu0 %v3454
        %v3504 = vpop.f32.mrf.mxu0
        %v3505 = vadd.f32 0.0, %v3504
        %v3506 = vpop.f32.mrf.mxu0
        %v3507 = vpop.f32.mrf.mxu0
        %v3508 = vadd.f32 0.0, %v3507
        %v3509 = vpop.f32.mrf.mxu0
        %3510 = vmatprep.mubr.bf16.mxu0 0
        %3511 = vmatmul.mubr.bf16.gmra.mxu0 %v3457
        %v3512 = vpop.f32.mrf.mxu0
        %v3513 = vadd.f32 0.0, %v3512
        %v3514 = vpop.f32.mrf.mxu0
        %v3515 = vpop.f32.mrf.mxu0
        %v3516 = vadd.f32 0.0, %v3515
        %v3517 = vpop.f32.mrf.mxu0
        %3518 = vmatprep.mubr.bf16.mxu0 0
        %3519 = vmatmul.mubr.bf16.gmra.mxu0 %v3460
        %v3520 = vpop.f32.mrf.mxu0
        %v3521 = vadd.f32 0.0, %v3520
        %v3522 = vpop.f32.mrf.mxu0
        %v3523 = vpop.f32.mrf.mxu0
        %v3524 = vadd.f32 0.0, %v3523
        %v3525 = vpop.f32.mrf.mxu0
        %3526 = vdwg.mxu0
        %v3527 = vpack.c.bf16 %v3500, %v3497
        %v3528 = vpack.c.bf16 %v3508, %v3505
        %v3529 = vpack.c.bf16 %v3516, %v3513
        %v3530 = vpack.c.bf16 %v3524, %v3521
        %v3531 = vld [vmem:[#allocation8 + $0xc0] sm:$0xff]
        %v3532 = vld [vmem:[#allocation8 + $0xc8] sm:$0xff]
        %v3533 = vld [vmem:[#allocation8 + $0xd0] sm:$0xff]
        %v3534 = vld [vmem:[#allocation8 + $0xd8] sm:$0xff]
        %v3535 = vld [vmem:[#allocation8 + $0xe0] sm:$0xff]
        %v3536 = vld [vmem:[#allocation8 + $0xe8] sm:$0xff]
        %v3537 = vld [vmem:[#allocation8 + $0xf0] sm:$0xff]
        %v3538 = vld [vmem:[#allocation8 + $0xf8] sm:$0xff]
        %v3547 = vunpack.c.l.b16 %v3531
        %v3548 = vunpack.c.h.b16 %v3531
        %v3549 = vunpack.c.l.b16 %v3532
        %v3550 = vunpack.c.h.b16 %v3532
        %v3551 = vunpack.c.l.b16 %v3533
        %v3552 = vunpack.c.h.b16 %v3533
        %v3553 = vunpack.c.l.b16 %v3534
        %v3554 = vunpack.c.h.b16 %v3534
        %v3555 = vunpack.c.l.b16 %v3535
        %v3556 = vunpack.c.h.b16 %v3535
        %v3557 = vunpack.c.l.b16 %v3536
        %v3558 = vunpack.c.h.b16 %v3536
        %v3559 = vunpack.c.l.b16 %v3537
        %v3560 = vunpack.c.h.b16 %v3537
        %v3561 = vunpack.c.l.b16 %v3538
        %v3562 = vunpack.c.h.b16 %v3538
        %v3563 = vpack.c.b16 %v3549, %v3547
        %v3564 = vpack.c.b16 %v3550, %v3548
        %v3565 = vpack.c.b16 %v3553, %v3551
        %v3566 = vpack.c.b16 %v3554, %v3552
        %v3567 = vpack.c.b16 %v3557, %v3555
        %v3568 = vpack.c.b16 %v3558, %v3556
        %v3569 = vpack.c.b16 %v3561, %v3559
        %v3570 = vpack.c.b16 %v3562, %v3560
        %v3580 = vsel %vm1696, %v3527, 0
        %v3583 = vsel %vm1696, %v3528, 0
        %v3586 = vsel %vm1696, %v3529, 0
        %v3589 = vsel %vm1696, %v3530, 0
        %3591 = vmatprep.subr.bf16.mxu0 0
        %3592 = vmatpush1.bf16.msra.mxu0 0
        %3593 = vmatprep.subr.bf16.mxu0 0
        %3594 = vmatpush1.bf16.msra.mxu0 0
        %3595 = vmatprep.subr.bf16.mxu0 0
        %3596 = vmatpush1.bf16.msra.mxu0 0
        %3597 = vmatprep.subr.bf16.mxu0 0
        %3598 = vmatpush1.bf16.msra.mxu0 0
        %3599 = vmatprep.subr.bf16.mxu0 %v3570
        %3600 = vmatpush1.bf16.msra.mxu0 %v3569
        %3601 = vmatprep.subr.bf16.mxu0 %v3568
        %3602 = vmatpush1.bf16.msra.mxu0 %v3567
        %3603 = vmatprep.subr.bf16.mxu0 %v3566
        %3604 = vmatpush1.bf16.msra.mxu0 %v3565
        %3605 = vmatprep.subr.bf16.mxu0 %v3564
        %3606 = vmatpush1.bf16.msra.mxu0 %v3563
        %3607 = vmatprep.subr.bf16.mxu0 0
        %3608 = vmatpush2.bf16.msra.mxu0 0
        %3609 = vmatprep.subr.bf16.mxu0 0
        %3610 = vmatpush2.bf16.msra.mxu0 0
        %3611 = vmatprep.subr.bf16.mxu0 0
        %3612 = vmatpush2.bf16.msra.mxu0 0
        %3613 = vmatprep.subr.bf16.mxu0 0
        %3614 = vmatpush2.bf16.msra.mxu0 0
        %3615 = vmatprep.subr.bf16.mxu0 0
        %3616 = vmatpush2.bf16.msra.mxu0 0
        %3617 = vmatprep.subr.bf16.mxu0 0
        %3618 = vmatpush2.bf16.msra.mxu0 0
        %3619 = vmatprep.subr.bf16.mxu0 0
        %3620 = vmatpush2.bf16.msra.mxu0 0
        %3621 = vmatprep.subr.bf16.mxu0 0
        %3622 = vmatpush2.bf16.msra.mxu0 0
        %3623 = vmatprep.mubr.bf16.mxu0 0
        %3624 = vmatmul.mubr.bf16.gmra.mxu0 %v3580
        %v3625 = vpop.f32.mrf.mxu0
        %v3626 = vadd.f32 0.0, %v3625
        %v3627 = vpop.f32.mrf.mxu0
        %v3628 = vadd.f32 0.0, %v3627
        %v3629 = vpop.f32.mrf.mxu0
        %v3630 = vadd.f32 0.0, %v3629
        %v3631 = vpop.f32.mrf.mxu0
        %v3632 = vadd.f32 0.0, %v3631
        %3633 = vmatprep.mubr.bf16.mxu0 0
        %3634 = vmatmul.mubr.bf16.gmra.mxu0 %v3583
        %v3635 = vpop.f32.mrf.mxu0
        %v3636 = vadd.f32 0.0, %v3635
        %v3637 = vpop.f32.mrf.mxu0
        %v3638 = vadd.f32 0.0, %v3637
        %v3639 = vpop.f32.mrf.mxu0
        %v3640 = vadd.f32 0.0, %v3639
        %v3641 = vpop.f32.mrf.mxu0
        %v3642 = vadd.f32 0.0, %v3641
        %3643 = vmatprep.mubr.bf16.mxu0 0
        %3644 = vmatmul.mubr.bf16.gmra.mxu0 %v3586
        %v3645 = vpop.f32.mrf.mxu0
        %v3646 = vadd.f32 0.0, %v3645
        %v3647 = vpop.f32.mrf.mxu0
        %v3648 = vadd.f32 0.0, %v3647
        %v3649 = vpop.f32.mrf.mxu0
        %v3650 = vadd.f32 0.0, %v3649
        %v3651 = vpop.f32.mrf.mxu0
        %v3652 = vadd.f32 0.0, %v3651
        %3653 = vmatprep.mubr.bf16.mxu0 0
        %3654 = vmatmul.mubr.bf16.gmra.mxu0 %v3589
        %v3655 = vpop.f32.mrf.mxu0
        %v3656 = vadd.f32 0.0, %v3655
        %v3657 = vpop.f32.mrf.mxu0
        %v3658 = vadd.f32 0.0, %v3657
        %v3659 = vpop.f32.mrf.mxu0
        %v3660 = vadd.f32 0.0, %v3659
        %v3661 = vpop.f32.mrf.mxu0
        %v3662 = vadd.f32 0.0, %v3661
        %3663 = vdwg.mxu0
        %v3664 = vadd.f32 %v3132, %v3626
        %v3665 = vadd.f32 %v3133, %v3628
        %v3666 = vadd.f32 %v3134, %v3630
        %v3667 = vadd.f32 %v3135, %v3632
        %v3668 = vadd.f32 %v3136, %v3636
        %v3669 = vadd.f32 %v3137, %v3638
        %v3670 = vadd.f32 %v3138, %v3640
        %v3671 = vadd.f32 %v3139, %v3642
        %v3672 = vadd.f32 %v3140, %v3646
        %v3673 = vadd.f32 %v3141, %v3648
        %v3674 = vadd.f32 %v3142, %v3650
        %v3675 = vadd.f32 %v3143, %v3652
        %v3676 = vadd.f32 %v3144, %v3656
        %v3677 = vadd.f32 %v3145, %v3658
        %v3678 = vadd.f32 %v3146, %v3660
        %v3679 = vadd.f32 %v3147, %v3662
        %v3680 = vld [vmem:[#allocation9] sm:$0x3]
        %v3682 = vlaneseq
        %v3683 = vshrl.u32 %v3682, 7
        %v3684 = vsub.s32 0, %v3683
        %v3685 = vrot.slane %v3680, %v3684
        %v3686 = vlaneseq
        %v3687 = vshrl.u32 %v3686, 7
        %v3688 = vsub.s32 1, %v3687
        %v3689 = vrot.slane %v3680, %v3688
        %v3692 = vadd.f32 %v3664, %v3685
        %v3693 = vadd.f32 %v3665, %v3689
        %v3694 = vadd.f32 %v3666, %v3685
        %v3695 = vadd.f32 %v3667, %v3689
        %v3696 = vadd.f32 %v3668, %v3685
        %v3697 = vadd.f32 %v3669, %v3689
        %v3698 = vadd.f32 %v3670, %v3685
        %v3699 = vadd.f32 %v3671, %v3689
        %v3700 = vadd.f32 %v3672, %v3685
        %v3701 = vadd.f32 %v3673, %v3689
        %v3702 = vadd.f32 %v3674, %v3685
        %v3703 = vadd.f32 %v3675, %v3689
        %v3704 = vadd.f32 %v3676, %v3685
        %v3705 = vadd.f32 %v3677, %v3689
        %v3706 = vadd.f32 %v3678, %v3685
        %v3707 = vadd.f32 %v3679, %v3689
        %v3708 = vadd.f32 %v3692, %v609
        %v3709 = vadd.f32 %v3693, %v610
        %v3710 = vadd.f32 %v3694, %v611
        %v3711 = vadd.f32 %v3695, %v612
        %v3712 = vadd.f32 %v3696, %v613
        %v3713 = vadd.f32 %v3697, %v614
        %v3714 = vadd.f32 %v3698, %v615
        %v3715 = vadd.f32 %v3699, %v616
        %v3716 = vadd.f32 %v3700, %v617
        %v3717 = vadd.f32 %v3701, %v618
        %v3718 = vadd.f32 %v3702, %v619
        %v3719 = vadd.f32 %v3703, %v620
        %v3720 = vadd.f32 %v3704, %v621
        %v3721 = vadd.f32 %v3705, %v622
        %v3722 = vadd.f32 %v3706, %v623
        %v3723 = vadd.f32 %v3707, %v624
        %v3724 = vld [vmem:[%s5] sm:$0x3]
        %v3725 = vld [vmem:[#allocation11] sm:$0x3]
        %v3726 = vadd.f32 %v3708, %v3709
        %3727 = vadd.xlane.f32.xlu0 %v3726
        %v3728 = vpop.xlane.xlu0 %3727
        %v3729 = vadd.f32 %v3710, %v3711
        %3730 = vadd.xlane.f32.xlu0 %v3729
        %v3731 = vpop.xlane.xlu0 %3730
        %v3732 = vadd.f32 %v3712, %v3713
        %3733 = vadd.xlane.f32.xlu0 %v3732
        %v3734 = vpop.xlane.xlu0 %3733
        %v3735 = vadd.f32 %v3714, %v3715
        %3736 = vadd.xlane.f32.xlu0 %v3735
        %v3737 = vpop.xlane.xlu0 %3736
        %v3738 = vadd.f32 %v3716, %v3717
        %3739 = vadd.xlane.f32.xlu0 %v3738
        %v3740 = vpop.xlane.xlu0 %3739
        %v3741 = vadd.f32 %v3718, %v3719
        %3742 = vadd.xlane.f32.xlu0 %v3741
        %v3743 = vpop.xlane.xlu0 %3742
        %v3744 = vadd.f32 %v3720, %v3721
        %3745 = vadd.xlane.f32.xlu0 %v3744
        %v3746 = vpop.xlane.xlu0 %3745
        %v3747 = vadd.f32 %v3722, %v3723
        %3748 = vadd.xlane.f32.xlu0 %v3747
        %v3749 = vpop.xlane.xlu0 %3748
        %v3750 = vrcp.pop 256.0
        %v3751 = vmul.f32 %v3728, %v3750
        %v3752 = vmul.f32 %v3731, %v3750
        %v3753 = vmul.f32 %v3734, %v3750
        %v3754 = vmul.f32 %v3737, %v3750
        %v3755 = vmul.f32 %v3740, %v3750
        %v3756 = vmul.f32 %v3743, %v3750
        %v3757 = vmul.f32 %v3746, %v3750
        %v3758 = vmul.f32 %v3749, %v3750
        %v3759 = vsub.f32 %v3708, %v3751
        %v3760 = vsub.f32 %v3709, %v3751
        %v3761 = vsub.f32 %v3710, %v3752
        %v3762 = vsub.f32 %v3711, %v3752
        %v3763 = vsub.f32 %v3712, %v3753
        %v3764 = vsub.f32 %v3713, %v3753
        %v3765 = vsub.f32 %v3714, %v3754
        %v3766 = vsub.f32 %v3715, %v3754
        %v3767 = vsub.f32 %v3716, %v3755
        %v3768 = vsub.f32 %v3717, %v3755
        %v3769 = vsub.f32 %v3718, %v3756
        %v3770 = vsub.f32 %v3719, %v3756
        %v3771 = vsub.f32 %v3720, %v3757
        %v3772 = vsub.f32 %v3721, %v3757
        %v3773 = vsub.f32 %v3722, %v3758
        %v3774 = vsub.f32 %v3723, %v3758
        %v3775 = vmul.f32 %v3759, %v3759
        %v3776 = vmul.f32 %v3760, %v3760
        %v3777 = vmul.f32 %v3761, %v3761
        %v3778 = vmul.f32 %v3762, %v3762
        %v3779 = vmul.f32 %v3763, %v3763
        %v3780 = vmul.f32 %v3764, %v3764
        %v3781 = vmul.f32 %v3765, %v3765
        %v3782 = vmul.f32 %v3766, %v3766
        %v3783 = vmul.f32 %v3767, %v3767
        %v3784 = vmul.f32 %v3768, %v3768
        %v3785 = vmul.f32 %v3769, %v3769
        %v3786 = vmul.f32 %v3770, %v3770
        %v3787 = vmul.f32 %v3771, %v3771
        %v3788 = vmul.f32 %v3772, %v3772
        %v3789 = vmul.f32 %v3773, %v3773
        %v3790 = vmul.f32 %v3774, %v3774
        %v3791 = vadd.f32 %v3775, %v3776
        %3792 = vadd.xlane.f32.xlu0 %v3791
        %v3793 = vpop.xlane.xlu0 %3792
        %v3794 = vadd.f32 %v3777, %v3778
        %3795 = vadd.xlane.f32.xlu0 %v3794
        %v3796 = vpop.xlane.xlu0 %3795
        %v3797 = vadd.f32 %v3779, %v3780
        %3798 = vadd.xlane.f32.xlu0 %v3797
        %v3799 = vpop.xlane.xlu0 %3798
        %v3800 = vadd.f32 %v3781, %v3782
        %3801 = vadd.xlane.f32.xlu0 %v3800
        %v3802 = vpop.xlane.xlu0 %3801
        %v3803 = vadd.f32 %v3783, %v3784
        %3804 = vadd.xlane.f32.xlu0 %v3803
        %v3805 = vpop.xlane.xlu0 %3804
        %v3806 = vadd.f32 %v3785, %v3786
        %3807 = vadd.xlane.f32.xlu0 %v3806
        %v3808 = vpop.xlane.xlu0 %3807
        %v3809 = vadd.f32 %v3787, %v3788
        %3810 = vadd.xlane.f32.xlu0 %v3809
        %v3811 = vpop.xlane.xlu0 %3810
        %v3812 = vadd.f32 %v3789, %v3790
        %3813 = vadd.xlane.f32.xlu0 %v3812
        %v3814 = vpop.xlane.xlu0 %3813
        %v3815 = vmul.f32 %v3793, %v3750
        %v3816 = vmul.f32 %v3796, %v3750
        %v3817 = vmul.f32 %v3799, %v3750
        %v3818 = vmul.f32 %v3802, %v3750
        %v3819 = vmul.f32 %v3805, %v3750
        %v3820 = vmul.f32 %v3808, %v3750
        %v3821 = vmul.f32 %v3811, %v3750
        %v3822 = vmul.f32 %v3814, %v3750
        %v3823 = vadd.f32 %v3815, 1e-05
        %v3824 = vadd.f32 %v3816, 1e-05
        %v3825 = vadd.f32 %v3817, 1e-05
        %v3826 = vadd.f32 %v3818, 1e-05
        %v3827 = vadd.f32 %v3819, 1e-05
        %v3828 = vadd.f32 %v3820, 1e-05
        %v3829 = vadd.f32 %v3821, 1e-05
        %v3830 = vadd.f32 %v3822, 1e-05
        %v3831 = vrsqrt.pop %v3823
        %v3832 = vrsqrt.pop %v3824
        %v3833 = vrsqrt.pop %v3825
        %v3834 = vrsqrt.pop %v3826
        %v3835 = vrsqrt.pop %v3827
        %v3836 = vrsqrt.pop %v3828
        %v3837 = vrsqrt.pop %v3829
        %v3838 = vrsqrt.pop %v3830
        %v3839 = vmul.f32 %v3759, %v3831
        %v3840 = vmul.f32 %v3760, %v3831
        %v3841 = vmul.f32 %v3761, %v3832
        %v3842 = vmul.f32 %v3762, %v3832
        %v3843 = vmul.f32 %v3763, %v3833
        %v3844 = vmul.f32 %v3764, %v3833
        %v3845 = vmul.f32 %v3765, %v3834
        %v3846 = vmul.f32 %v3766, %v3834
        %v3847 = vmul.f32 %v3767, %v3835
        %v3848 = vmul.f32 %v3768, %v3835
        %v3849 = vmul.f32 %v3769, %v3836
        %v3850 = vmul.f32 %v3770, %v3836
        %v3851 = vmul.f32 %v3771, %v3837
        %v3852 = vmul.f32 %v3772, %v3837
        %v3853 = vmul.f32 %v3773, %v3838
        %v3854 = vmul.f32 %v3774, %v3838
        %v3856 = vlaneseq
        %v3857 = vshrl.u32 %v3856, 7
        %v3858 = vsub.s32 0, %v3857
        %v3859 = vrot.slane %v3724, %v3858
        %v3860 = vlaneseq
        %v3861 = vshrl.u32 %v3860, 7
        %v3862 = vsub.s32 1, %v3861
        %v3863 = vrot.slane %v3724, %v3862
        %v3866 = vmul.f32 %v3839, %v3859
        %v3867 = vmul.f32 %v3840, %v3863
        %v3868 = vmul.f32 %v3841, %v3859
        %v3869 = vmul.f32 %v3842, %v3863
        %v3870 = vmul.f32 %v3843, %v3859
        %v3871 = vmul.f32 %v3844, %v3863
        %v3872 = vmul.f32 %v3845, %v3859
        %v3873 = vmul.f32 %v3846, %v3863
        %v3874 = vmul.f32 %v3847, %v3859
        %v3875 = vmul.f32 %v3848, %v3863
        %v3876 = vmul.f32 %v3849, %v3859
        %v3877 = vmul.f32 %v3850, %v3863
        %v3878 = vmul.f32 %v3851, %v3859
        %v3879 = vmul.f32 %v3852, %v3863
        %v3880 = vmul.f32 %v3853, %v3859
        %v3881 = vmul.f32 %v3854, %v3863
        %v3883 = vlaneseq
        %v3884 = vshrl.u32 %v3883, 7
        %v3885 = vsub.s32 0, %v3884
        %v3886 = vrot.slane %v3725, %v3885
        %v3887 = vlaneseq
        %v3888 = vshrl.u32 %v3887, 7
        %v3889 = vsub.s32 1, %v3888
        %v3890 = vrot.slane %v3725, %v3889
        %v3893 = vadd.f32 %v3866, %v3886
        %v3894 = vadd.f32 %v3867, %v3890
        %v3895 = vadd.f32 %v3868, %v3886
        %v3896 = vadd.f32 %v3869, %v3890
        %v3897 = vadd.f32 %v3870, %v3886
        %v3898 = vadd.f32 %v3871, %v3890
        %v3899 = vadd.f32 %v3872, %v3886
        %v3900 = vadd.f32 %v3873, %v3890
        %v3901 = vadd.f32 %v3874, %v3886
        %v3902 = vadd.f32 %v3875, %v3890
        %v3903 = vadd.f32 %v3876, %v3886
        %v3904 = vadd.f32 %v3877, %v3890
        %v3905 = vadd.f32 %v3878, %v3886
        %v3906 = vadd.f32 %v3879, %v3890
        %v3907 = vadd.f32 %v3880, %v3886
        %v3908 = vadd.f32 %v3881, %v3890
        %v3909 = vpack.c.bf16 %v3895, %v3893
        %v3910 = vpack.c.bf16 %v3896, %v3894
        %v3911 = vpack.c.bf16 %v3899, %v3897
        %v3912 = vpack.c.bf16 %v3900, %v3898
        %v3913 = vpack.c.bf16 %v3903, %v3901
        %v3914 = vpack.c.bf16 %v3904, %v3902
        %v3915 = vpack.c.bf16 %v3907, %v3905
        %v3916 = vpack.c.bf16 %v3908, %v3906
        %v3917 = vld [vmem:[#allocation17] sm:$0x3]
        %v3919 = vlaneseq
        %v3920 = vshrl.u32 %v3919, 7
        %v3921 = vsub.s32 0, %v3920
        %v3922 = vrot.slane %v3917, %v3921
        %v3923 = vlaneseq
        %v3924 = vshrl.u32 %v3923, 7
        %v3925 = vsub.s32 1, %v3924
        %v3926 = vrot.slane %v3917, %v3925
        %v3929 = vadd.f32 %v3893, %v3922
        %v3930 = vadd.f32 %v3894, %v3926
        %v3931 = vadd.f32 %v3895, %v3922
        %v3932 = vadd.f32 %v3896, %v3926
        %v3933 = vadd.f32 %v3897, %v3922
        %v3934 = vadd.f32 %v3898, %v3926
        %v3935 = vadd.f32 %v3899, %v3922
        %v3936 = vadd.f32 %v3900, %v3926
        %v3937 = vadd.f32 %v3901, %v3922
        %v3938 = vadd.f32 %v3902, %v3926
        %v3939 = vadd.f32 %v3903, %v3922
        %v3940 = vadd.f32 %v3904, %v3926
        %v3941 = vadd.f32 %v3905, %v3922
        %v3942 = vadd.f32 %v3906, %v3926
        %v3943 = vadd.f32 %v3907, %v3922
        %v3944 = vadd.f32 %v3908, %v3926
        %v3945 = vld [vmem:[#allocation12] sm:$0xff]
        %v3946 = vld [vmem:[#allocation12 + $0x10] sm:$0xff]
        %v3947 = vld [vmem:[#allocation12 + $0x20] sm:$0xff]
        %v3948 = vld [vmem:[#allocation12 + $0x30] sm:$0xff]
        %v3949 = vld [vmem:[#allocation12 + $0x40] sm:$0xff]
        %v3950 = vld [vmem:[#allocation12 + $0x50] sm:$0xff]
        %v3951 = vld [vmem:[#allocation12 + $0x60] sm:$0xff]
        %v3952 = vld [vmem:[#allocation12 + $0x70] sm:$0xff]
        %v3953 = vld [vmem:[#allocation12 + $0x80] sm:$0xff]
        %v3954 = vld [vmem:[#allocation12 + $0x90] sm:$0xff]
        %v3955 = vld [vmem:[#allocation12 + $0xa0] sm:$0xff]
        %v3956 = vld [vmem:[#allocation12 + $0xb0] sm:$0xff]
        %v3957 = vld [vmem:[#allocation12 + $0xc0] sm:$0xff]
        %v3958 = vld [vmem:[#allocation12 + $0xd0] sm:$0xff]
        %v3959 = vld [vmem:[#allocation12 + $0xe0] sm:$0xff]
        %v3960 = vld [vmem:[#allocation12 + $0xf0] sm:$0xff]
        %v3961 = vld [vmem:[#allocation12 + $0x100] sm:$0xff]
        %v3962 = vld [vmem:[#allocation12 + $0x110] sm:$0xff]
        %v3963 = vld [vmem:[#allocation12 + $0x120] sm:$0xff]
        %v3964 = vld [vmem:[#allocation12 + $0x130] sm:$0xff]
        %v3965 = vld [vmem:[#allocation12 + $0x140] sm:$0xff]
        %v3966 = vld [vmem:[#allocation12 + $0x150] sm:$0xff]
        %v3967 = vld [vmem:[#allocation12 + $0x160] sm:$0xff]
        %v3968 = vld [vmem:[#allocation12 + $0x170] sm:$0xff]
        %v3969 = vld [vmem:[#allocation12 + $0x180] sm:$0xff]
        %v3970 = vld [vmem:[#allocation12 + $0x190] sm:$0xff]
        %v3971 = vld [vmem:[#allocation12 + $0x1a0] sm:$0xff]
        %v3972 = vld [vmem:[#allocation12 + $0x1b0] sm:$0xff]
        %v3973 = vld [vmem:[#allocation12 + $0x1c0] sm:$0xff]
        %v3974 = vld [vmem:[#allocation12 + $0x1d0] sm:$0xff]
        %v3975 = vld [vmem:[#allocation12 + $0x1e0] sm:$0xff]
        %v3976 = vld [vmem:[#allocation12 + $0x1f0] sm:$0xff]
        %v3977 = vld [vmem:[#allocation14] sm:$0x3]
        %v3979 = vlaneseq
        %v3980 = vshrl.u32 %v3979, 7
        %v3981 = vsub.s32 0, %v3980
        %v3982 = vrot.slane %v3977, %v3981
        %v3983 = vlaneseq
        %v3984 = vshrl.u32 %v3983, 7
        %v3985 = vsub.s32 1, %v3984
        %v3986 = vrot.slane %v3977, %v3985
        %v4021 = vunpack.c.l.b16 %v3945
        %v4022 = vunpack.c.h.b16 %v3945
        %v4023 = vunpack.c.l.b16 %v3946
        %v4024 = vunpack.c.h.b16 %v3946
        %v4025 = vunpack.c.l.b16 %v3947
        %v4026 = vunpack.c.h.b16 %v3947
        %v4027 = vunpack.c.l.b16 %v3948
        %v4028 = vunpack.c.h.b16 %v3948
        %v4029 = vunpack.c.l.b16 %v3949
        %v4030 = vunpack.c.h.b16 %v3949
        %v4031 = vunpack.c.l.b16 %v3950
        %v4032 = vunpack.c.h.b16 %v3950
        %v4033 = vunpack.c.l.b16 %v3951
        %v4034 = vunpack.c.h.b16 %v3951
        %v4035 = vunpack.c.l.b16 %v3952
        %v4036 = vunpack.c.h.b16 %v3952
        %v4037 = vunpack.c.l.b16 %v3953
        %v4038 = vunpack.c.h.b16 %v3953
        %v4039 = vunpack.c.l.b16 %v3954
        %v4040 = vunpack.c.h.b16 %v3954
        %v4041 = vunpack.c.l.b16 %v3955
        %v4042 = vunpack.c.h.b16 %v3955
        %v4043 = vunpack.c.l.b16 %v3956
        %v4044 = vunpack.c.h.b16 %v3956
        %v4045 = vunpack.c.l.b16 %v3957
        %v4046 = vunpack.c.h.b16 %v3957
        %v4047 = vunpack.c.l.b16 %v3958
        %v4048 = vunpack.c.h.b16 %v3958
        %v4049 = vunpack.c.l.b16 %v3959
        %v4050 = vunpack.c.h.b16 %v3959
        %v4051 = vunpack.c.l.b16 %v3960
        %v4052 = vunpack.c.h.b16 %v3960
        %v4053 = vunpack.c.l.b16 %v3961
        %v4054 = vunpack.c.h.b16 %v3961
        %v4055 = vunpack.c.l.b16 %v3962
        %v4056 = vunpack.c.h.b16 %v3962
        %v4057 = vunpack.c.l.b16 %v3963
        %v4058 = vunpack.c.h.b16 %v3963
        %v4059 = vunpack.c.l.b16 %v3964
        %v4060 = vunpack.c.h.b16 %v3964
        %v4061 = vunpack.c.l.b16 %v3965
        %v4062 = vunpack.c.h.b16 %v3965
        %v4063 = vunpack.c.l.b16 %v3966
        %v4064 = vunpack.c.h.b16 %v3966
        %v4065 = vunpack.c.l.b16 %v3967
        %v4066 = vunpack.c.h.b16 %v3967
        %v4067 = vunpack.c.l.b16 %v3968
        %v4068 = vunpack.c.h.b16 %v3968
        %v4069 = vunpack.c.l.b16 %v3969
        %v4070 = vunpack.c.h.b16 %v3969
        %v4071 = vunpack.c.l.b16 %v3970
        %v4072 = vunpack.c.h.b16 %v3970
        %v4073 = vunpack.c.l.b16 %v3971
        %v4074 = vunpack.c.h.b16 %v3971
        %v4075 = vunpack.c.l.b16 %v3972
        %v4076 = vunpack.c.h.b16 %v3972
        %v4077 = vunpack.c.l.b16 %v3973
        %v4078 = vunpack.c.h.b16 %v3973
        %v4079 = vunpack.c.l.b16 %v3974
        %v4080 = vunpack.c.h.b16 %v3974
        %v4081 = vunpack.c.l.b16 %v3975
        %v4082 = vunpack.c.h.b16 %v3975
        %v4083 = vunpack.c.l.b16 %v3976
        %v4084 = vunpack.c.h.b16 %v3976
        %v4085 = vpack.c.b16 %v4023, %v4021
        %v4086 = vpack.c.b16 %v4024, %v4022
        %v4087 = vpack.c.b16 %v4027, %v4025
        %v4088 = vpack.c.b16 %v4028, %v4026
        %v4089 = vpack.c.b16 %v4031, %v4029
        %v4090 = vpack.c.b16 %v4032, %v4030
        %v4091 = vpack.c.b16 %v4035, %v4033
        %v4092 = vpack.c.b16 %v4036, %v4034
        %v4093 = vpack.c.b16 %v4039, %v4037
        %v4094 = vpack.c.b16 %v4040, %v4038
        %v4095 = vpack.c.b16 %v4043, %v4041
        %v4096 = vpack.c.b16 %v4044, %v4042
        %v4097 = vpack.c.b16 %v4047, %v4045
        %v4098 = vpack.c.b16 %v4048, %v4046
        %v4099 = vpack.c.b16 %v4051, %v4049
        %v4100 = vpack.c.b16 %v4052, %v4050
        %v4101 = vpack.c.b16 %v4055, %v4053
        %v4102 = vpack.c.b16 %v4056, %v4054
        %v4103 = vpack.c.b16 %v4059, %v4057
        %v4104 = vpack.c.b16 %v4060, %v4058
        %v4105 = vpack.c.b16 %v4063, %v4061
        %v4106 = vpack.c.b16 %v4064, %v4062
        %v4107 = vpack.c.b16 %v4067, %v4065
        %v4108 = vpack.c.b16 %v4068, %v4066
        %v4109 = vpack.c.b16 %v4071, %v4069
        %v4110 = vpack.c.b16 %v4072, %v4070
        %v4111 = vpack.c.b16 %v4075, %v4073
        %v4112 = vpack.c.b16 %v4076, %v4074
        %v4113 = vpack.c.b16 %v4079, %v4077
        %v4114 = vpack.c.b16 %v4080, %v4078
        %v4115 = vpack.c.b16 %v4083, %v4081
        %v4116 = vpack.c.b16 %v4084, %v4082
        %4149 = vmatprep.subr.bf16.mxu0 %v4100
        %4150 = vmatpush1.bf16.msra.mxu0 %v4099
        %4151 = vmatprep.subr.bf16.mxu0 %v4098
        %4152 = vmatpush1.bf16.msra.mxu0 %v4097
        %4153 = vmatprep.subr.bf16.mxu0 %v4096
        %4154 = vmatpush1.bf16.msra.mxu0 %v4095
        %4155 = vmatprep.subr.bf16.mxu0 %v4094
        %4156 = vmatpush1.bf16.msra.mxu0 %v4093
        %4157 = vmatprep.subr.bf16.mxu0 %v4092
        %4158 = vmatpush1.bf16.msra.mxu0 %v4091
        %4159 = vmatprep.subr.bf16.mxu0 %v4090
        %4160 = vmatpush1.bf16.msra.mxu0 %v4089
        %4161 = vmatprep.subr.bf16.mxu0 %v4088
        %4162 = vmatpush1.bf16.msra.mxu0 %v4087
        %4163 = vmatprep.subr.bf16.mxu0 %v4086
        %4164 = vmatpush1.bf16.msra.mxu0 %v4085
        %4165 = vmatprep.subr.bf16.mxu0 %v4116
        %4166 = vmatpush2.bf16.msra.mxu0 %v4115
        %4167 = vmatprep.subr.bf16.mxu0 %v4114
        %4168 = vmatpush2.bf16.msra.mxu0 %v4113
        %4169 = vmatprep.subr.bf16.mxu0 %v4112
        %4170 = vmatpush2.bf16.msra.mxu0 %v4111
        %4171 = vmatprep.subr.bf16.mxu0 %v4110
        %4172 = vmatpush2.bf16.msra.mxu0 %v4109
        %4173 = vmatprep.subr.bf16.mxu0 %v4108
        %4174 = vmatpush2.bf16.msra.mxu0 %v4107
        %4175 = vmatprep.subr.bf16.mxu0 %v4106
        %4176 = vmatpush2.bf16.msra.mxu0 %v4105
        %4177 = vmatprep.subr.bf16.mxu0 %v4104
        %4178 = vmatpush2.bf16.msra.mxu0 %v4103
        %4179 = vmatprep.subr.bf16.mxu0 %v4102
        %4180 = vmatpush2.bf16.msra.mxu0 %v4101
        %4181 = vmatprep.mubr.bf16.mxu0 %v3910
        %4182 = vmatmul.mubr.bf16.gmra.mxu0 %v3909
        %v4183 = vpop.f32.mrf.mxu0
        %v4184 = vadd.f32 %v3982, %v4183
        %v4185 = vpop.f32.mrf.mxu0
        %v4186 = vadd.f32 %v3986, %v4185
        %v4187 = vpop.f32.mrf.mxu0
        %v4188 = vadd.f32 %v3982, %v4187
        %v4189 = vpop.f32.mrf.mxu0
        %v4190 = vadd.f32 %v3986, %v4189
        %4191 = vmatprep.mubr.bf16.mxu0 %v3912
        %4192 = vmatmul.mubr.bf16.gmra.mxu0 %v3911
        %v4193 = vpop.f32.mrf.mxu0
        %v4194 = vadd.f32 %v3982, %v4193
        %v4195 = vpop.f32.mrf.mxu0
        %v4196 = vadd.f32 %v3986, %v4195
        %v4197 = vpop.f32.mrf.mxu0
        %v4198 = vadd.f32 %v3982, %v4197
        %v4199 = vpop.f32.mrf.mxu0
        %v4200 = vadd.f32 %v3986, %v4199
        %4201 = vmatprep.mubr.bf16.mxu0 %v3914
        %4202 = vmatmul.mubr.bf16.gmra.mxu0 %v3913
        %v4203 = vpop.f32.mrf.mxu0
        %v4204 = vadd.f32 %v3982, %v4203
        %v4205 = vpop.f32.mrf.mxu0
        %v4206 = vadd.f32 %v3986, %v4205
        %v4207 = vpop.f32.mrf.mxu0
        %v4208 = vadd.f32 %v3982, %v4207
        %v4209 = vpop.f32.mrf.mxu0
        %v4210 = vadd.f32 %v3986, %v4209
        %4211 = vmatprep.mubr.bf16.mxu0 %v3916
        %4212 = vmatmul.mubr.bf16.gmra.mxu0 %v3915
        %v4213 = vpop.f32.mrf.mxu0
        %v4214 = vadd.f32 %v3982, %v4213
        %v4215 = vpop.f32.mrf.mxu0
        %v4216 = vadd.f32 %v3986, %v4215
        %v4217 = vpop.f32.mrf.mxu0
        %v4218 = vadd.f32 %v3982, %v4217
        %v4219 = vpop.f32.mrf.mxu0
        %v4220 = vadd.f32 %v3986, %v4219
        %4221 = vdwg.mxu0
        %v4222 = vmax.f32 %v4184, 0.0
        %v4223 = vmax.f32 %v4186, 0.0
        %v4224 = vmax.f32 %v4188, 0.0
        %v4225 = vmax.f32 %v4190, 0.0
        %v4226 = vmax.f32 %v4194, 0.0
        %v4227 = vmax.f32 %v4196, 0.0
        %v4228 = vmax.f32 %v4198, 0.0
        %v4229 = vmax.f32 %v4200, 0.0
        %v4230 = vmax.f32 %v4204, 0.0
        %v4231 = vmax.f32 %v4206, 0.0
        %v4232 = vmax.f32 %v4208, 0.0
        %v4233 = vmax.f32 %v4210, 0.0
        %v4234 = vmax.f32 %v4214, 0.0
        %v4235 = vmax.f32 %v4216, 0.0
        %v4236 = vmax.f32 %v4218, 0.0
        %v4237 = vmax.f32 %v4220, 0.0
        %v4238 = vpack.c.bf16 %v4224, %v4222
        %v4239 = vpack.c.bf16 %v4225, %v4223
        %v4240 = vpack.c.bf16 %v4228, %v4226
        %v4241 = vpack.c.bf16 %v4229, %v4227
        %v4242 = vpack.c.bf16 %v4232, %v4230
        %v4243 = vpack.c.bf16 %v4233, %v4231
        %v4244 = vpack.c.bf16 %v4236, %v4234
        %v4245 = vpack.c.bf16 %v4237, %v4235
        %v4246 = vld [vmem:[#allocation15] sm:$0xff]
        %v4247 = vld [vmem:[#allocation15 + $0x8] sm:$0xff]
        %v4248 = vld [vmem:[#allocation15 + $0x10] sm:$0xff]
        %v4249 = vld [vmem:[#allocation15 + $0x18] sm:$0xff]
        %v4250 = vld [vmem:[#allocation15 + $0x20] sm:$0xff]
        %v4251 = vld [vmem:[#allocation15 + $0x28] sm:$0xff]
        %v4252 = vld [vmem:[#allocation15 + $0x30] sm:$0xff]
        %v4253 = vld [vmem:[#allocation15 + $0x38] sm:$0xff]
        %v4254 = vld [vmem:[#allocation15 + $0x40] sm:$0xff]
        %v4255 = vld [vmem:[#allocation15 + $0x48] sm:$0xff]
        %v4256 = vld [vmem:[#allocation15 + $0x50] sm:$0xff]
        %v4257 = vld [vmem:[#allocation15 + $0x58] sm:$0xff]
        %v4258 = vld [vmem:[#allocation15 + $0x60] sm:$0xff]
        %v4259 = vld [vmem:[#allocation15 + $0x68] sm:$0xff]
        %v4260 = vld [vmem:[#allocation15 + $0x70] sm:$0xff]
        %v4261 = vld [vmem:[#allocation15 + $0x78] sm:$0xff]
        %v4262 = vld [vmem:[#allocation15 + $0x80] sm:$0xff]
        %v4263 = vld [vmem:[#allocation15 + $0x88] sm:$0xff]
        %v4264 = vld [vmem:[#allocation15 + $0x90] sm:$0xff]
        %v4265 = vld [vmem:[#allocation15 + $0x98] sm:$0xff]
        %v4266 = vld [vmem:[#allocation15 + $0xa0] sm:$0xff]
        %v4267 = vld [vmem:[#allocation15 + $0xa8] sm:$0xff]
        %v4268 = vld [vmem:[#allocation15 + $0xb0] sm:$0xff]
        %v4269 = vld [vmem:[#allocation15 + $0xb8] sm:$0xff]
        %v4270 = vld [vmem:[#allocation15 + $0xc0] sm:$0xff]
        %v4271 = vld [vmem:[#allocation15 + $0xc8] sm:$0xff]
        %v4272 = vld [vmem:[#allocation15 + $0xd0] sm:$0xff]
        %v4273 = vld [vmem:[#allocation15 + $0xd8] sm:$0xff]
        %v4274 = vld [vmem:[#allocation15 + $0xe0] sm:$0xff]
        %v4275 = vld [vmem:[#allocation15 + $0xe8] sm:$0xff]
        %v4276 = vld [vmem:[#allocation15 + $0xf0] sm:$0xff]
        %v4277 = vld [vmem:[#allocation15 + $0xf8] sm:$0xff]
        %v4310 = vunpack.c.l.b16 %v4246
        %v4311 = vunpack.c.h.b16 %v4246
        %v4312 = vunpack.c.l.b16 %v4247
        %v4313 = vunpack.c.h.b16 %v4247
        %v4314 = vunpack.c.l.b16 %v4248
        %v4315 = vunpack.c.h.b16 %v4248
        %v4316 = vunpack.c.l.b16 %v4249
        %v4317 = vunpack.c.h.b16 %v4249
        %v4318 = vunpack.c.l.b16 %v4250
        %v4319 = vunpack.c.h.b16 %v4250
        %v4320 = vunpack.c.l.b16 %v4251
        %v4321 = vunpack.c.h.b16 %v4251
        %v4322 = vunpack.c.l.b16 %v4252
        %v4323 = vunpack.c.h.b16 %v4252
        %v4324 = vunpack.c.l.b16 %v4253
        %v4325 = vunpack.c.h.b16 %v4253
        %v4326 = vunpack.c.l.b16 %v4254
        %v4327 = vunpack.c.h.b16 %v4254
        %v4328 = vunpack.c.l.b16 %v4255
        %v4329 = vunpack.c.h.b16 %v4255
        %v4330 = vunpack.c.l.b16 %v4256
        %v4331 = vunpack.c.h.b16 %v4256
        %v4332 = vunpack.c.l.b16 %v4257
        %v4333 = vunpack.c.h.b16 %v4257
        %v4334 = vunpack.c.l.b16 %v4258
        %v4335 = vunpack.c.h.b16 %v4258
        %v4336 = vunpack.c.l.b16 %v4259
        %v4337 = vunpack.c.h.b16 %v4259
        %v4338 = vunpack.c.l.b16 %v4260
        %v4339 = vunpack.c.h.b16 %v4260
        %v4340 = vunpack.c.l.b16 %v4261
        %v4341 = vunpack.c.h.b16 %v4261
        %v4342 = vunpack.c.l.b16 %v4262
        %v4343 = vunpack.c.h.b16 %v4262
        %v4344 = vunpack.c.l.b16 %v4263
        %v4345 = vunpack.c.h.b16 %v4263
        %v4346 = vunpack.c.l.b16 %v4264
        %v4347 = vunpack.c.h.b16 %v4264
        %v4348 = vunpack.c.l.b16 %v4265
        %v4349 = vunpack.c.h.b16 %v4265
        %v4350 = vunpack.c.l.b16 %v4266
        %v4351 = vunpack.c.h.b16 %v4266
        %v4352 = vunpack.c.l.b16 %v4267
        %v4353 = vunpack.c.h.b16 %v4267
        %v4354 = vunpack.c.l.b16 %v4268
        %v4355 = vunpack.c.h.b16 %v4268
        %v4356 = vunpack.c.l.b16 %v4269
        %v4357 = vunpack.c.h.b16 %v4269
        %v4358 = vunpack.c.l.b16 %v4270
        %v4359 = vunpack.c.h.b16 %v4270
        %v4360 = vunpack.c.l.b16 %v4271
        %v4361 = vunpack.c.h.b16 %v4271
        %v4362 = vunpack.c.l.b16 %v4272
        %v4363 = vunpack.c.h.b16 %v4272
        %v4364 = vunpack.c.l.b16 %v4273
        %v4365 = vunpack.c.h.b16 %v4273
        %v4366 = vunpack.c.l.b16 %v4274
        %v4367 = vunpack.c.h.b16 %v4274
        %v4368 = vunpack.c.l.b16 %v4275
        %v4369 = vunpack.c.h.b16 %v4275
        %v4370 = vunpack.c.l.b16 %v4276
        %v4371 = vunpack.c.h.b16 %v4276
        %v4372 = vunpack.c.l.b16 %v4277
        %v4373 = vunpack.c.h.b16 %v4277
        %v4374 = vpack.c.b16 %v4312, %v4310
        %v4375 = vpack.c.b16 %v4313, %v4311
        %v4376 = vpack.c.b16 %v4316, %v4314
        %v4377 = vpack.c.b16 %v4317, %v4315
        %v4378 = vpack.c.b16 %v4320, %v4318
        %v4379 = vpack.c.b16 %v4321, %v4319
        %v4380 = vpack.c.b16 %v4324, %v4322
        %v4381 = vpack.c.b16 %v4325, %v4323
        %v4382 = vpack.c.b16 %v4328, %v4326
        %v4383 = vpack.c.b16 %v4329, %v4327
        %v4384 = vpack.c.b16 %v4332, %v4330
        %v4385 = vpack.c.b16 %v4333, %v4331
        %v4386 = vpack.c.b16 %v4336, %v4334
        %v4387 = vpack.c.b16 %v4337, %v4335
        %v4388 = vpack.c.b16 %v4340, %v4338
        %v4389 = vpack.c.b16 %v4341, %v4339
        %v4390 = vpack.c.b16 %v4344, %v4342
        %v4391 = vpack.c.b16 %v4345, %v4343
        %v4392 = vpack.c.b16 %v4348, %v4346
        %v4393 = vpack.c.b16 %v4349, %v4347
        %v4394 = vpack.c.b16 %v4352, %v4350
        %v4395 = vpack.c.b16 %v4353, %v4351
        %v4396 = vpack.c.b16 %v4356, %v4354
        %v4397 = vpack.c.b16 %v4357, %v4355
        %v4398 = vpack.c.b16 %v4360, %v4358
        %v4399 = vpack.c.b16 %v4361, %v4359
        %v4400 = vpack.c.b16 %v4364, %v4362
        %v4401 = vpack.c.b16 %v4365, %v4363
        %v4402 = vpack.c.b16 %v4368, %v4366
        %v4403 = vpack.c.b16 %v4369, %v4367
        %v4404 = vpack.c.b16 %v4372, %v4370
        %v4405 = vpack.c.b16 %v4373, %v4371
        %4438 = vmatprep.subr.bf16.mxu0 %v4389
        %4439 = vmatpush1.bf16.msra.mxu0 %v4388
        %4440 = vmatprep.subr.bf16.mxu0 %v4387
        %4441 = vmatpush1.bf16.msra.mxu0 %v4386
        %4442 = vmatprep.subr.bf16.mxu0 %v4385
        %4443 = vmatpush1.bf16.msra.mxu0 %v4384
        %4444 = vmatprep.subr.bf16.mxu0 %v4383
        %4445 = vmatpush1.bf16.msra.mxu0 %v4382
        %4446 = vmatprep.subr.bf16.mxu0 %v4381
        %4447 = vmatpush1.bf16.msra.mxu0 %v4380
        %4448 = vmatprep.subr.bf16.mxu0 %v4379
        %4449 = vmatpush1.bf16.msra.mxu0 %v4378
        %4450 = vmatprep.subr.bf16.mxu0 %v4377
        %4451 = vmatpush1.bf16.msra.mxu0 %v4376
        %4452 = vmatprep.subr.bf16.mxu0 %v4375
        %4453 = vmatpush1.bf16.msra.mxu0 %v4374
        %4454 = vmatprep.subr.bf16.mxu0 %v4405
        %4455 = vmatpush2.bf16.msra.mxu0 %v4404
        %4456 = vmatprep.subr.bf16.mxu0 %v4403
        %4457 = vmatpush2.bf16.msra.mxu0 %v4402
        %4458 = vmatprep.subr.bf16.mxu0 %v4401
        %4459 = vmatpush2.bf16.msra.mxu0 %v4400
        %4460 = vmatprep.subr.bf16.mxu0 %v4399
        %4461 = vmatpush2.bf16.msra.mxu0 %v4398
        %4462 = vmatprep.subr.bf16.mxu0 %v4397
        %4463 = vmatpush2.bf16.msra.mxu0 %v4396
        %4464 = vmatprep.subr.bf16.mxu0 %v4395
        %4465 = vmatpush2.bf16.msra.mxu0 %v4394
        %4466 = vmatprep.subr.bf16.mxu0 %v4393
        %4467 = vmatpush2.bf16.msra.mxu0 %v4392
        %4468 = vmatprep.subr.bf16.mxu0 %v4391
        %4469 = vmatpush2.bf16.msra.mxu0 %v4390
        %4470 = vmatprep.mubr.bf16.mxu0 %v4239
        %4471 = vmatmul.mubr.bf16.gmra.mxu0 %v4238
        %v4472 = vpop.f32.mrf.mxu0
        %v4473 = vadd.f32 0.0, %v4472
        %v4474 = vpop.f32.mrf.mxu0
        %v4475 = vadd.f32 0.0, %v4474
        %v4476 = vpop.f32.mrf.mxu0
        %v4477 = vadd.f32 0.0, %v4476
        %v4478 = vpop.f32.mrf.mxu0
        %v4479 = vadd.f32 0.0, %v4478
        %4480 = vmatprep.mubr.bf16.mxu0 %v4241
        %4481 = vmatmul.mubr.bf16.gmra.mxu0 %v4240
        %v4482 = vpop.f32.mrf.mxu0
        %v4483 = vadd.f32 0.0, %v4482
        %v4484 = vpop.f32.mrf.mxu0
        %v4485 = vadd.f32 0.0, %v4484
        %v4486 = vpop.f32.mrf.mxu0
        %v4487 = vadd.f32 0.0, %v4486
        %v4488 = vpop.f32.mrf.mxu0
        %v4489 = vadd.f32 0.0, %v4488
        %4490 = vmatprep.mubr.bf16.mxu0 %v4243
        %4491 = vmatmul.mubr.bf16.gmra.mxu0 %v4242
        %v4492 = vpop.f32.mrf.mxu0
        %v4493 = vadd.f32 0.0, %v4492
        %v4494 = vpop.f32.mrf.mxu0
        %v4495 = vadd.f32 0.0, %v4494
        %v4496 = vpop.f32.mrf.mxu0
        %v4497 = vadd.f32 0.0, %v4496
        %v4498 = vpop.f32.mrf.mxu0
        %v4499 = vadd.f32 0.0, %v4498
        %4500 = vmatprep.mubr.bf16.mxu0 %v4245
        %4501 = vmatmul.mubr.bf16.gmra.mxu0 %v4244
        %v4502 = vpop.f32.mrf.mxu0
        %v4503 = vadd.f32 0.0, %v4502
        %v4504 = vpop.f32.mrf.mxu0
        %v4505 = vadd.f32 0.0, %v4504
        %v4506 = vpop.f32.mrf.mxu0
        %v4507 = vadd.f32 0.0, %v4506
        %v4508 = vpop.f32.mrf.mxu0
        %v4509 = vadd.f32 0.0, %v4508
        %4510 = vdwg.mxu0
        %v4511 = vadd.f32 %v3929, %v4473
        %v4512 = vadd.f32 %v3930, %v4475
        %v4513 = vadd.f32 %v3931, %v4477
        %v4514 = vadd.f32 %v3932, %v4479
        %v4515 = vadd.f32 %v3933, %v4483
        %v4516 = vadd.f32 %v3934, %v4485
        %v4517 = vadd.f32 %v3935, %v4487
        %v4518 = vadd.f32 %v3936, %v4489
        %v4519 = vadd.f32 %v3937, %v4493
        %v4520 = vadd.f32 %v3938, %v4495
        %v4521 = vadd.f32 %v3939, %v4497
        %v4522 = vadd.f32 %v3940, %v4499
        %v4523 = vadd.f32 %v3941, %v4503
        %v4524 = vadd.f32 %v3942, %v4505
        %v4525 = vadd.f32 %v3943, %v4507
        %v4526 = vadd.f32 %v3944, %v4509
        %v4527 = vld [vmem:[#allocation12 + $0x8] sm:$0xff]
        %v4528 = vld [vmem:[#allocation12 + $0x18] sm:$0xff]
        %v4529 = vld [vmem:[#allocation12 + $0x28] sm:$0xff]
        %v4530 = vld [vmem:[#allocation12 + $0x38] sm:$0xff]
        %v4531 = vld [vmem:[#allocation12 + $0x48] sm:$0xff]
        %v4532 = vld [vmem:[#allocation12 + $0x58] sm:$0xff]
        %v4533 = vld [vmem:[#allocation12 + $0x68] sm:$0xff]
        %v4534 = vld [vmem:[#allocation12 + $0x78] sm:$0xff]
        %v4535 = vld [vmem:[#allocation12 + $0x88] sm:$0xff]
        %v4536 = vld [vmem:[#allocation12 + $0x98] sm:$0xff]
        %v4537 = vld [vmem:[#allocation12 + $0xa8] sm:$0xff]
        %v4538 = vld [vmem:[#allocation12 + $0xb8] sm:$0xff]
        %v4539 = vld [vmem:[#allocation12 + $0xc8] sm:$0xff]
        %v4540 = vld [vmem:[#allocation12 + $0xd8] sm:$0xff]
        %v4541 = vld [vmem:[#allocation12 + $0xe8] sm:$0xff]
        %v4542 = vld [vmem:[#allocation12 + $0xf8] sm:$0xff]
        %v4543 = vld [vmem:[#allocation12 + $0x108] sm:$0xff]
        %v4544 = vld [vmem:[#allocation12 + $0x118] sm:$0xff]
        %v4545 = vld [vmem:[#allocation12 + $0x128] sm:$0xff]
        %v4546 = vld [vmem:[#allocation12 + $0x138] sm:$0xff]
        %v4547 = vld [vmem:[#allocation12 + $0x148] sm:$0xff]
        %v4548 = vld [vmem:[#allocation12 + $0x158] sm:$0xff]
        %v4549 = vld [vmem:[#allocation12 + $0x168] sm:$0xff]
        %v4550 = vld [vmem:[#allocation12 + $0x178] sm:$0xff]
        %v4551 = vld [vmem:[#allocation12 + $0x188] sm:$0xff]
        %v4552 = vld [vmem:[#allocation12 + $0x198] sm:$0xff]
        %v4553 = vld [vmem:[#allocation12 + $0x1a8] sm:$0xff]
        %v4554 = vld [vmem:[#allocation12 + $0x1b8] sm:$0xff]
        %v4555 = vld [vmem:[#allocation12 + $0x1c8] sm:$0xff]
        %v4556 = vld [vmem:[#allocation12 + $0x1d8] sm:$0xff]
        %v4557 = vld [vmem:[#allocation12 + $0x1e8] sm:$0xff]
        %v4558 = vld [vmem:[#allocation12 + $0x1f8] sm:$0xff]
        %v4559 = vld [vmem:[#allocation14 + $0x2] sm:$0x3]
        %v4561 = vlaneseq
        %v4562 = vshrl.u32 %v4561, 7
        %v4563 = vsub.s32 0, %v4562
        %v4564 = vrot.slane %v4559, %v4563
        %v4565 = vlaneseq
        %v4566 = vshrl.u32 %v4565, 7
        %v4567 = vsub.s32 1, %v4566
        %v4568 = vrot.slane %v4559, %v4567
        %v4603 = vunpack.c.l.b16 %v4527
        %v4604 = vunpack.c.h.b16 %v4527
        %v4605 = vunpack.c.l.b16 %v4528
        %v4606 = vunpack.c.h.b16 %v4528
        %v4607 = vunpack.c.l.b16 %v4529
        %v4608 = vunpack.c.h.b16 %v4529
        %v4609 = vunpack.c.l.b16 %v4530
        %v4610 = vunpack.c.h.b16 %v4530
        %v4611 = vunpack.c.l.b16 %v4531
        %v4612 = vunpack.c.h.b16 %v4531
        %v4613 = vunpack.c.l.b16 %v4532
        %v4614 = vunpack.c.h.b16 %v4532
        %v4615 = vunpack.c.l.b16 %v4533
        %v4616 = vunpack.c.h.b16 %v4533
        %v4617 = vunpack.c.l.b16 %v4534
        %v4618 = vunpack.c.h.b16 %v4534
        %v4619 = vunpack.c.l.b16 %v4535
        %v4620 = vunpack.c.h.b16 %v4535
        %v4621 = vunpack.c.l.b16 %v4536
        %v4622 = vunpack.c.h.b16 %v4536
        %v4623 = vunpack.c.l.b16 %v4537
        %v4624 = vunpack.c.h.b16 %v4537
        %v4625 = vunpack.c.l.b16 %v4538
        %v4626 = vunpack.c.h.b16 %v4538
        %v4627 = vunpack.c.l.b16 %v4539
        %v4628 = vunpack.c.h.b16 %v4539
        %v4629 = vunpack.c.l.b16 %v4540
        %v4630 = vunpack.c.h.b16 %v4540
        %v4631 = vunpack.c.l.b16 %v4541
        %v4632 = vunpack.c.h.b16 %v4541
        %v4633 = vunpack.c.l.b16 %v4542
        %v4634 = vunpack.c.h.b16 %v4542
        %v4635 = vunpack.c.l.b16 %v4543
        %v4636 = vunpack.c.h.b16 %v4543
        %v4637 = vunpack.c.l.b16 %v4544
        %v4638 = vunpack.c.h.b16 %v4544
        %v4639 = vunpack.c.l.b16 %v4545
        %v4640 = vunpack.c.h.b16 %v4545
        %v4641 = vunpack.c.l.b16 %v4546
        %v4642 = vunpack.c.h.b16 %v4546
        %v4643 = vunpack.c.l.b16 %v4547
        %v4644 = vunpack.c.h.b16 %v4547
        %v4645 = vunpack.c.l.b16 %v4548
        %v4646 = vunpack.c.h.b16 %v4548
        %v4647 = vunpack.c.l.b16 %v4549
        %v4648 = vunpack.c.h.b16 %v4549
        %v4649 = vunpack.c.l.b16 %v4550
        %v4650 = vunpack.c.h.b16 %v4550
        %v4651 = vunpack.c.l.b16 %v4551
        %v4652 = vunpack.c.h.b16 %v4551
        %v4653 = vunpack.c.l.b16 %v4552
        %v4654 = vunpack.c.h.b16 %v4552
        %v4655 = vunpack.c.l.b16 %v4553
        %v4656 = vunpack.c.h.b16 %v4553
        %v4657 = vunpack.c.l.b16 %v4554
        %v4658 = vunpack.c.h.b16 %v4554
        %v4659 = vunpack.c.l.b16 %v4555
        %v4660 = vunpack.c.h.b16 %v4555
        %v4661 = vunpack.c.l.b16 %v4556
        %v4662 = vunpack.c.h.b16 %v4556
        %v4663 = vunpack.c.l.b16 %v4557
        %v4664 = vunpack.c.h.b16 %v4557
        %v4665 = vunpack.c.l.b16 %v4558
        %v4666 = vunpack.c.h.b16 %v4558
        %v4667 = vpack.c.b16 %v4605, %v4603
        %v4668 = vpack.c.b16 %v4606, %v4604
        %v4669 = vpack.c.b16 %v4609, %v4607
        %v4670 = vpack.c.b16 %v4610, %v4608
        %v4671 = vpack.c.b16 %v4613, %v4611
        %v4672 = vpack.c.b16 %v4614, %v4612
        %v4673 = vpack.c.b16 %v4617, %v4615
        %v4674 = vpack.c.b16 %v4618, %v4616
        %v4675 = vpack.c.b16 %v4621, %v4619
        %v4676 = vpack.c.b16 %v4622, %v4620
        %v4677 = vpack.c.b16 %v4625, %v4623
        %v4678 = vpack.c.b16 %v4626, %v4624
        %v4679 = vpack.c.b16 %v4629, %v4627
        %v4680 = vpack.c.b16 %v4630, %v4628
        %v4681 = vpack.c.b16 %v4633, %v4631
        %v4682 = vpack.c.b16 %v4634, %v4632
        %v4683 = vpack.c.b16 %v4637, %v4635
        %v4684 = vpack.c.b16 %v4638, %v4636
        %v4685 = vpack.c.b16 %v4641, %v4639
        %v4686 = vpack.c.b16 %v4642, %v4640
        %v4687 = vpack.c.b16 %v4645, %v4643
        %v4688 = vpack.c.b16 %v4646, %v4644
        %v4689 = vpack.c.b16 %v4649, %v4647
        %v4690 = vpack.c.b16 %v4650, %v4648
        %v4691 = vpack.c.b16 %v4653, %v4651
        %v4692 = vpack.c.b16 %v4654, %v4652
        %v4693 = vpack.c.b16 %v4657, %v4655
        %v4694 = vpack.c.b16 %v4658, %v4656
        %v4695 = vpack.c.b16 %v4661, %v4659
        %v4696 = vpack.c.b16 %v4662, %v4660
        %v4697 = vpack.c.b16 %v4665, %v4663
        %v4698 = vpack.c.b16 %v4666, %v4664
        %4731 = vmatprep.subr.bf16.mxu0 %v4682
        %4732 = vmatpush1.bf16.msra.mxu0 %v4681
        %4733 = vmatprep.subr.bf16.mxu0 %v4680
        %4734 = vmatpush1.bf16.msra.mxu0 %v4679
        %4735 = vmatprep.subr.bf16.mxu0 %v4678
        %4736 = vmatpush1.bf16.msra.mxu0 %v4677
        %4737 = vmatprep.subr.bf16.mxu0 %v4676
        %4738 = vmatpush1.bf16.msra.mxu0 %v4675
        %4739 = vmatprep.subr.bf16.mxu0 %v4674
        %4740 = vmatpush1.bf16.msra.mxu0 %v4673
        %4741 = vmatprep.subr.bf16.mxu0 %v4672
        %4742 = vmatpush1.bf16.msra.mxu0 %v4671
        %4743 = vmatprep.subr.bf16.mxu0 %v4670
        %4744 = vmatpush1.bf16.msra.mxu0 %v4669
        %4745 = vmatprep.subr.bf16.mxu0 %v4668
        %4746 = vmatpush1.bf16.msra.mxu0 %v4667
        %4747 = vmatprep.subr.bf16.mxu0 %v4698
        %4748 = vmatpush2.bf16.msra.mxu0 %v4697
        %4749 = vmatprep.subr.bf16.mxu0 %v4696
        %4750 = vmatpush2.bf16.msra.mxu0 %v4695
        %4751 = vmatprep.subr.bf16.mxu0 %v4694
        %4752 = vmatpush2.bf16.msra.mxu0 %v4693
        %4753 = vmatprep.subr.bf16.mxu0 %v4692
        %4754 = vmatpush2.bf16.msra.mxu0 %v4691
        %4755 = vmatprep.subr.bf16.mxu0 %v4690
        %4756 = vmatpush2.bf16.msra.mxu0 %v4689
        %4757 = vmatprep.subr.bf16.mxu0 %v4688
        %4758 = vmatpush2.bf16.msra.mxu0 %v4687
        %4759 = vmatprep.subr.bf16.mxu0 %v4686
        %4760 = vmatpush2.bf16.msra.mxu0 %v4685
        %4761 = vmatprep.subr.bf16.mxu0 %v4684
        %4762 = vmatpush2.bf16.msra.mxu0 %v4683
        %4763 = vmatprep.mubr.bf16.mxu0 %v3910
        %4764 = vmatmul.mubr.bf16.gmra.mxu0 %v3909
        %v4765 = vpop.f32.mrf.mxu0
        %v4766 = vadd.f32 %v4564, %v4765
        %v4767 = vpop.f32.mrf.mxu0
        %v4768 = vadd.f32 %v4568, %v4767
        %v4769 = vpop.f32.mrf.mxu0
        %v4770 = vadd.f32 %v4564, %v4769
        %v4771 = vpop.f32.mrf.mxu0
        %v4772 = vadd.f32 %v4568, %v4771
        %4773 = vmatprep.mubr.bf16.mxu0 %v3912
        %4774 = vmatmul.mubr.bf16.gmra.mxu0 %v3911
        %v4775 = vpop.f32.mrf.mxu0
        %v4776 = vadd.f32 %v4564, %v4775
        %v4777 = vpop.f32.mrf.mxu0
        %v4778 = vadd.f32 %v4568, %v4777
        %v4779 = vpop.f32.mrf.mxu0
        %v4780 = vadd.f32 %v4564, %v4779
        %v4781 = vpop.f32.mrf.mxu0
        %v4782 = vadd.f32 %v4568, %v4781
        %4783 = vmatprep.mubr.bf16.mxu0 %v3914
        %4784 = vmatmul.mubr.bf16.gmra.mxu0 %v3913
        %v4785 = vpop.f32.mrf.mxu0
        %v4786 = vadd.f32 %v4564, %v4785
        %v4787 = vpop.f32.mrf.mxu0
        %v4788 = vadd.f32 %v4568, %v4787
        %v4789 = vpop.f32.mrf.mxu0
        %v4790 = vadd.f32 %v4564, %v4789
        %v4791 = vpop.f32.mrf.mxu0
        %v4792 = vadd.f32 %v4568, %v4791
        %4793 = vmatprep.mubr.bf16.mxu0 %v3916
        %4794 = vmatmul.mubr.bf16.gmra.mxu0 %v3915
        %v4795 = vpop.f32.mrf.mxu0
        %v4796 = vadd.f32 %v4564, %v4795
        %v4797 = vpop.f32.mrf.mxu0
        %v4798 = vadd.f32 %v4568, %v4797
        %v4799 = vpop.f32.mrf.mxu0
        %v4800 = vadd.f32 %v4564, %v4799
        %v4801 = vpop.f32.mrf.mxu0
        %v4802 = vadd.f32 %v4568, %v4801
        %4803 = vdwg.mxu0
        %v4804 = vmax.f32 %v4766, 0.0
        %v4805 = vmax.f32 %v4768, 0.0
        %v4806 = vmax.f32 %v4770, 0.0
        %v4807 = vmax.f32 %v4772, 0.0
        %v4808 = vmax.f32 %v4776, 0.0
        %v4809 = vmax.f32 %v4778, 0.0
        %v4810 = vmax.f32 %v4780, 0.0
        %v4811 = vmax.f32 %v4782, 0.0
        %v4812 = vmax.f32 %v4786, 0.0
        %v4813 = vmax.f32 %v4788, 0.0
        %v4814 = vmax.f32 %v4790, 0.0
        %v4815 = vmax.f32 %v4792, 0.0
        %v4816 = vmax.f32 %v4796, 0.0
        %v4817 = vmax.f32 %v4798, 0.0
        %v4818 = vmax.f32 %v4800, 0.0
        %v4819 = vmax.f32 %v4802, 0.0
        %v4820 = vpack.c.bf16 %v4806, %v4804
        %v4821 = vpack.c.bf16 %v4807, %v4805
        %v4822 = vpack.c.bf16 %v4810, %v4808
        %v4823 = vpack.c.bf16 %v4811, %v4809
        %v4824 = vpack.c.bf16 %v4814, %v4812
        %v4825 = vpack.c.bf16 %v4815, %v4813
        %v4826 = vpack.c.bf16 %v4818, %v4816
        %v4827 = vpack.c.bf16 %v4819, %v4817
        %v4828 = vld [vmem:[#allocation15 + $0x100] sm:$0xff]
        %v4829 = vld [vmem:[#allocation15 + $0x108] sm:$0xff]
        %v4830 = vld [vmem:[#allocation15 + $0x110] sm:$0xff]
        %v4831 = vld [vmem:[#allocation15 + $0x118] sm:$0xff]
        %v4832 = vld [vmem:[#allocation15 + $0x120] sm:$0xff]
        %v4833 = vld [vmem:[#allocation15 + $0x128] sm:$0xff]
        %v4834 = vld [vmem:[#allocation15 + $0x130] sm:$0xff]
        %v4835 = vld [vmem:[#allocation15 + $0x138] sm:$0xff]
        %v4836 = vld [vmem:[#allocation15 + $0x140] sm:$0xff]
        %v4837 = vld [vmem:[#allocation15 + $0x148] sm:$0xff]
        %v4838 = vld [vmem:[#allocation15 + $0x150] sm:$0xff]
        %v4839 = vld [vmem:[#allocation15 + $0x158] sm:$0xff]
        %v4840 = vld [vmem:[#allocation15 + $0x160] sm:$0xff]
        %v4841 = vld [vmem:[#allocation15 + $0x168] sm:$0xff]
        %v4842 = vld [vmem:[#allocation15 + $0x170] sm:$0xff]
        %v4843 = vld [vmem:[#allocation15 + $0x178] sm:$0xff]
        %v4844 = vld [vmem:[#allocation15 + $0x180] sm:$0xff]
        %v4845 = vld [vmem:[#allocation15 + $0x188] sm:$0xff]
        %v4846 = vld [vmem:[#allocation15 + $0x190] sm:$0xff]
        %v4847 = vld [vmem:[#allocation15 + $0x198] sm:$0xff]
        %v4848 = vld [vmem:[#allocation15 + $0x1a0] sm:$0xff]
        %v4849 = vld [vmem:[#allocation15 + $0x1a8] sm:$0xff]
        %v4850 = vld [vmem:[#allocation15 + $0x1b0] sm:$0xff]
        %v4851 = vld [vmem:[#allocation15 + $0x1b8] sm:$0xff]
        %v4852 = vld [vmem:[#allocation15 + $0x1c0] sm:$0xff]
        %v4853 = vld [vmem:[#allocation15 + $0x1c8] sm:$0xff]
        %v4854 = vld [vmem:[#allocation15 + $0x1d0] sm:$0xff]
        %v4855 = vld [vmem:[#allocation15 + $0x1d8] sm:$0xff]
        %v4856 = vld [vmem:[#allocation15 + $0x1e0] sm:$0xff]
        %v4857 = vld [vmem:[#allocation15 + $0x1e8] sm:$0xff]
        %v4858 = vld [vmem:[#allocation15 + $0x1f0] sm:$0xff]
        %v4859 = vld [vmem:[#allocation15 + $0x1f8] sm:$0xff]
        %v4892 = vunpack.c.l.b16 %v4828
        %v4893 = vunpack.c.h.b16 %v4828
        %v4894 = vunpack.c.l.b16 %v4829
        %v4895 = vunpack.c.h.b16 %v4829
        %v4896 = vunpack.c.l.b16 %v4830
        %v4897 = vunpack.c.h.b16 %v4830
        %v4898 = vunpack.c.l.b16 %v4831
        %v4899 = vunpack.c.h.b16 %v4831
        %v4900 = vunpack.c.l.b16 %v4832
        %v4901 = vunpack.c.h.b16 %v4832
        %v4902 = vunpack.c.l.b16 %v4833
        %v4903 = vunpack.c.h.b16 %v4833
        %v4904 = vunpack.c.l.b16 %v4834
        %v4905 = vunpack.c.h.b16 %v4834
        %v4906 = vunpack.c.l.b16 %v4835
        %v4907 = vunpack.c.h.b16 %v4835
        %v4908 = vunpack.c.l.b16 %v4836
        %v4909 = vunpack.c.h.b16 %v4836
        %v4910 = vunpack.c.l.b16 %v4837
        %v4911 = vunpack.c.h.b16 %v4837
        %v4912 = vunpack.c.l.b16 %v4838
        %v4913 = vunpack.c.h.b16 %v4838
        %v4914 = vunpack.c.l.b16 %v4839
        %v4915 = vunpack.c.h.b16 %v4839
        %v4916 = vunpack.c.l.b16 %v4840
        %v4917 = vunpack.c.h.b16 %v4840
        %v4918 = vunpack.c.l.b16 %v4841
        %v4919 = vunpack.c.h.b16 %v4841
        %v4920 = vunpack.c.l.b16 %v4842
        %v4921 = vunpack.c.h.b16 %v4842
        %v4922 = vunpack.c.l.b16 %v4843
        %v4923 = vunpack.c.h.b16 %v4843
        %v4924 = vunpack.c.l.b16 %v4844
        %v4925 = vunpack.c.h.b16 %v4844
        %v4926 = vunpack.c.l.b16 %v4845
        %v4927 = vunpack.c.h.b16 %v4845
        %v4928 = vunpack.c.l.b16 %v4846
        %v4929 = vunpack.c.h.b16 %v4846
        %v4930 = vunpack.c.l.b16 %v4847
        %v4931 = vunpack.c.h.b16 %v4847
        %v4932 = vunpack.c.l.b16 %v4848
        %v4933 = vunpack.c.h.b16 %v4848
        %v4934 = vunpack.c.l.b16 %v4849
        %v4935 = vunpack.c.h.b16 %v4849
        %v4936 = vunpack.c.l.b16 %v4850
        %v4937 = vunpack.c.h.b16 %v4850
        %v4938 = vunpack.c.l.b16 %v4851
        %v4939 = vunpack.c.h.b16 %v4851
        %v4940 = vunpack.c.l.b16 %v4852
        %v4941 = vunpack.c.h.b16 %v4852
        %v4942 = vunpack.c.l.b16 %v4853
        %v4943 = vunpack.c.h.b16 %v4853
        %v4944 = vunpack.c.l.b16 %v4854
        %v4945 = vunpack.c.h.b16 %v4854
        %v4946 = vunpack.c.l.b16 %v4855
        %v4947 = vunpack.c.h.b16 %v4855
        %v4948 = vunpack.c.l.b16 %v4856
        %v4949 = vunpack.c.h.b16 %v4856
        %v4950 = vunpack.c.l.b16 %v4857
        %v4951 = vunpack.c.h.b16 %v4857
        %v4952 = vunpack.c.l.b16 %v4858
        %v4953 = vunpack.c.h.b16 %v4858
        %v4954 = vunpack.c.l.b16 %v4859
        %v4955 = vunpack.c.h.b16 %v4859
        %v4956 = vpack.c.b16 %v4894, %v4892
        %v4957 = vpack.c.b16 %v4895, %v4893
        %v4958 = vpack.c.b16 %v4898, %v4896
        %v4959 = vpack.c.b16 %v4899, %v4897
        %v4960 = vpack.c.b16 %v4902, %v4900
        %v4961 = vpack.c.b16 %v4903, %v4901
        %v4962 = vpack.c.b16 %v4906, %v4904
        %v4963 = vpack.c.b16 %v4907, %v4905
        %v4964 = vpack.c.b16 %v4910, %v4908
        %v4965 = vpack.c.b16 %v4911, %v4909
        %v4966 = vpack.c.b16 %v4914, %v4912
        %v4967 = vpack.c.b16 %v4915, %v4913
        %v4968 = vpack.c.b16 %v4918, %v4916
        %v4969 = vpack.c.b16 %v4919, %v4917
        %v4970 = vpack.c.b16 %v4922, %v4920
        %v4971 = vpack.c.b16 %v4923, %v4921
        %v4972 = vpack.c.b16 %v4926, %v4924
        %v4973 = vpack.c.b16 %v4927, %v4925
        %v4974 = vpack.c.b16 %v4930, %v4928
        %v4975 = vpack.c.b16 %v4931, %v4929
        %v4976 = vpack.c.b16 %v4934, %v4932
        %v4977 = vpack.c.b16 %v4935, %v4933
        %v4978 = vpack.c.b16 %v4938, %v4936
        %v4979 = vpack.c.b16 %v4939, %v4937
        %v4980 = vpack.c.b16 %v4942, %v4940
        %v4981 = vpack.c.b16 %v4943, %v4941
        %v4982 = vpack.c.b16 %v4946, %v4944
        %v4983 = vpack.c.b16 %v4947, %v4945
        %v4984 = vpack.c.b16 %v4950, %v4948
        %v4985 = vpack.c.b16 %v4951, %v4949
        %v4986 = vpack.c.b16 %v4954, %v4952
        %v4987 = vpack.c.b16 %v4955, %v4953
        %5020 = vmatprep.subr.bf16.mxu0 %v4971
        %5021 = vmatpush1.bf16.msra.mxu0 %v4970
        %5022 = vmatprep.subr.bf16.mxu0 %v4969
        %5023 = vmatpush1.bf16.msra.mxu0 %v4968
        %5024 = vmatprep.subr.bf16.mxu0 %v4967
        %5025 = vmatpush1.bf16.msra.mxu0 %v4966
        %5026 = vmatprep.subr.bf16.mxu0 %v4965
        %5027 = vmatpush1.bf16.msra.mxu0 %v4964
        %5028 = vmatprep.subr.bf16.mxu0 %v4963
        %5029 = vmatpush1.bf16.msra.mxu0 %v4962
        %5030 = vmatprep.subr.bf16.mxu0 %v4961
        %5031 = vmatpush1.bf16.msra.mxu0 %v4960
        %5032 = vmatprep.subr.bf16.mxu0 %v4959
        %5033 = vmatpush1.bf16.msra.mxu0 %v4958
        %5034 = vmatprep.subr.bf16.mxu0 %v4957
        %5035 = vmatpush1.bf16.msra.mxu0 %v4956
        %5036 = vmatprep.subr.bf16.mxu0 %v4987
        %5037 = vmatpush2.bf16.msra.mxu0 %v4986
        %5038 = vmatprep.subr.bf16.mxu0 %v4985
        %5039 = vmatpush2.bf16.msra.mxu0 %v4984
        %5040 = vmatprep.subr.bf16.mxu0 %v4983
        %5041 = vmatpush2.bf16.msra.mxu0 %v4982
        %5042 = vmatprep.subr.bf16.mxu0 %v4981
        %5043 = vmatpush2.bf16.msra.mxu0 %v4980
        %5044 = vmatprep.subr.bf16.mxu0 %v4979
        %5045 = vmatpush2.bf16.msra.mxu0 %v4978
        %5046 = vmatprep.subr.bf16.mxu0 %v4977
        %5047 = vmatpush2.bf16.msra.mxu0 %v4976
        %5048 = vmatprep.subr.bf16.mxu0 %v4975
        %5049 = vmatpush2.bf16.msra.mxu0 %v4974
        %5050 = vmatprep.subr.bf16.mxu0 %v4973
        %5051 = vmatpush2.bf16.msra.mxu0 %v4972
        %5052 = vmatprep.mubr.bf16.mxu0 %v4821
        %5053 = vmatmul.mubr.bf16.gmra.mxu0 %v4820
        %v5054 = vpop.f32.mrf.mxu0
        %v5055 = vadd.f32 0.0, %v5054
        %v5056 = vpop.f32.mrf.mxu0
        %v5057 = vadd.f32 0.0, %v5056
        %v5058 = vpop.f32.mrf.mxu0
        %v5059 = vadd.f32 0.0, %v5058
        %v5060 = vpop.f32.mrf.mxu0
        %v5061 = vadd.f32 0.0, %v5060
        %5062 = vmatprep.mubr.bf16.mxu0 %v4823
        %5063 = vmatmul.mubr.bf16.gmra.mxu0 %v4822
        %v5064 = vpop.f32.mrf.mxu0
        %v5065 = vadd.f32 0.0, %v5064
        %v5066 = vpop.f32.mrf.mxu0
        %v5067 = vadd.f32 0.0, %v5066
        %v5068 = vpop.f32.mrf.mxu0
        %v5069 = vadd.f32 0.0, %v5068
        %v5070 = vpop.f32.mrf.mxu0
        %v5071 = vadd.f32 0.0, %v5070
        %5072 = vmatprep.mubr.bf16.mxu0 %v4825
        %5073 = vmatmul.mubr.bf16.gmra.mxu0 %v4824
        %v5074 = vpop.f32.mrf.mxu0
        %v5075 = vadd.f32 0.0, %v5074
        %v5076 = vpop.f32.mrf.mxu0
        %v5077 = vadd.f32 0.0, %v5076
        %v5078 = vpop.f32.mrf.mxu0
        %v5079 = vadd.f32 0.0, %v5078
        %v5080 = vpop.f32.mrf.mxu0
        %v5081 = vadd.f32 0.0, %v5080
        %5082 = vmatprep.mubr.bf16.mxu0 %v4827
        %5083 = vmatmul.mubr.bf16.gmra.mxu0 %v4826
        %v5084 = vpop.f32.mrf.mxu0
        %v5085 = vadd.f32 0.0, %v5084
        %v5086 = vpop.f32.mrf.mxu0
        %v5087 = vadd.f32 0.0, %v5086
        %v5088 = vpop.f32.mrf.mxu0
        %v5089 = vadd.f32 0.0, %v5088
        %v5090 = vpop.f32.mrf.mxu0
        %v5091 = vadd.f32 0.0, %v5090
        %5092 = vdwg.mxu0
        %v5093 = vadd.f32 %v4511, %v5055
        %v5094 = vadd.f32 %v4512, %v5057
        %v5095 = vadd.f32 %v4513, %v5059
        %v5096 = vadd.f32 %v4514, %v5061
        %v5097 = vadd.f32 %v4515, %v5065
        %v5098 = vadd.f32 %v4516, %v5067
        %v5099 = vadd.f32 %v4517, %v5069
        %v5100 = vadd.f32 %v4518, %v5071
        %v5101 = vadd.f32 %v4519, %v5075
        %v5102 = vadd.f32 %v4520, %v5077
        %v5103 = vadd.f32 %v4521, %v5079
        %v5104 = vadd.f32 %v4522, %v5081
        %v5105 = vadd.f32 %v4523, %v5085
        %v5106 = vadd.f32 %v4524, %v5087
        %v5107 = vadd.f32 %v4525, %v5089
        %v5108 = vadd.f32 %v4526, %v5091
        %v5109 = vld [vmem:[%s11] sm:$0x3]
        %v5110 = vld [vmem:[%s12] sm:$0x3]
        %v5111 = vadd.f32 %v5093, %v5094
        %5112 = vadd.xlane.f32.xlu0 %v5111
        %v5113 = vpop.xlane.xlu0 %5112
        %v5114 = vadd.f32 %v5095, %v5096
        %5115 = vadd.xlane.f32.xlu0 %v5114
        %v5116 = vpop.xlane.xlu0 %5115
        %v5117 = vadd.f32 %v5097, %v5098
        %5118 = vadd.xlane.f32.xlu0 %v5117
        %v5119 = vpop.xlane.xlu0 %5118
        %v5120 = vadd.f32 %v5099, %v5100
        %5121 = vadd.xlane.f32.xlu0 %v5120
        %v5122 = vpop.xlane.xlu0 %5121
        %v5123 = vadd.f32 %v5101, %v5102
        %5124 = vadd.xlane.f32.xlu0 %v5123
        %v5125 = vpop.xlane.xlu0 %5124
        %v5126 = vadd.f32 %v5103, %v5104
        %5127 = vadd.xlane.f32.xlu0 %v5126
        %v5128 = vpop.xlane.xlu0 %5127
        %v5129 = vadd.f32 %v5105, %v5106
        %5130 = vadd.xlane.f32.xlu0 %v5129
        %v5131 = vpop.xlane.xlu0 %5130
        %v5132 = vadd.f32 %v5107, %v5108
        %5133 = vadd.xlane.f32.xlu0 %v5132
        %v5134 = vpop.xlane.xlu0 %5133
        %v5135 = vmul.f32 %v5113, %v3750
        %v5136 = vmul.f32 %v5116, %v3750
        %v5137 = vmul.f32 %v5119, %v3750
        %v5138 = vmul.f32 %v5122, %v3750
        %v5139 = vmul.f32 %v5125, %v3750
        %v5140 = vmul.f32 %v5128, %v3750
        %v5141 = vmul.f32 %v5131, %v3750
        %v5142 = vmul.f32 %v5134, %v3750
        %v5143 = vsub.f32 %v5093, %v5135
        %v5144 = vsub.f32 %v5094, %v5135
        %v5145 = vsub.f32 %v5095, %v5136
        %v5146 = vsub.f32 %v5096, %v5136
        %v5147 = vsub.f32 %v5097, %v5137
        %v5148 = vsub.f32 %v5098, %v5137
        %v5149 = vsub.f32 %v5099, %v5138
        %v5150 = vsub.f32 %v5100, %v5138
        %v5151 = vsub.f32 %v5101, %v5139
        %v5152 = vsub.f32 %v5102, %v5139
        %v5153 = vsub.f32 %v5103, %v5140
        %v5154 = vsub.f32 %v5104, %v5140
        %v5155 = vsub.f32 %v5105, %v5141
        %v5156 = vsub.f32 %v5106, %v5141
        %v5157 = vsub.f32 %v5107, %v5142
        %v5158 = vsub.f32 %v5108, %v5142
        %v5159 = vmul.f32 %v5143, %v5143
        %v5160 = vmul.f32 %v5144, %v5144
        %v5161 = vmul.f32 %v5145, %v5145
        %v5162 = vmul.f32 %v5146, %v5146
        %v5163 = vmul.f32 %v5147, %v5147
        %v5164 = vmul.f32 %v5148, %v5148
        %v5165 = vmul.f32 %v5149, %v5149
        %v5166 = vmul.f32 %v5150, %v5150
        %v5167 = vmul.f32 %v5151, %v5151
        %v5168 = vmul.f32 %v5152, %v5152
        %v5169 = vmul.f32 %v5153, %v5153
        %v5170 = vmul.f32 %v5154, %v5154
        %v5171 = vmul.f32 %v5155, %v5155
        %v5172 = vmul.f32 %v5156, %v5156
        %v5173 = vmul.f32 %v5157, %v5157
        %v5174 = vmul.f32 %v5158, %v5158
        %v5175 = vadd.f32 %v5159, %v5160
        %5176 = vadd.xlane.f32.xlu0 %v5175
        %v5177 = vpop.xlane.xlu0 %5176
        %v5178 = vadd.f32 %v5161, %v5162
        %5179 = vadd.xlane.f32.xlu0 %v5178
        %v5180 = vpop.xlane.xlu0 %5179
        %v5181 = vadd.f32 %v5163, %v5164
        %5182 = vadd.xlane.f32.xlu0 %v5181
        %v5183 = vpop.xlane.xlu0 %5182
        %v5184 = vadd.f32 %v5165, %v5166
        %5185 = vadd.xlane.f32.xlu0 %v5184
        %v5186 = vpop.xlane.xlu0 %5185
        %v5187 = vadd.f32 %v5167, %v5168
        %5188 = vadd.xlane.f32.xlu0 %v5187
        %v5189 = vpop.xlane.xlu0 %5188
        %v5190 = vadd.f32 %v5169, %v5170
        %5191 = vadd.xlane.f32.xlu0 %v5190
        %v5192 = vpop.xlane.xlu0 %5191
        %v5193 = vadd.f32 %v5171, %v5172
        %5194 = vadd.xlane.f32.xlu0 %v5193
        %v5195 = vpop.xlane.xlu0 %5194
        %v5196 = vadd.f32 %v5173, %v5174
        %5197 = vadd.xlane.f32.xlu0 %v5196
        %v5198 = vpop.xlane.xlu0 %5197
        %v5199 = vmul.f32 %v5177, %v3750
        %v5200 = vmul.f32 %v5180, %v3750
        %v5201 = vmul.f32 %v5183, %v3750
        %v5202 = vmul.f32 %v5186, %v3750
        %v5203 = vmul.f32 %v5189, %v3750
        %v5204 = vmul.f32 %v5192, %v3750
        %v5205 = vmul.f32 %v5195, %v3750
        %v5206 = vmul.f32 %v5198, %v3750
        %v5207 = vadd.f32 %v5199, 1e-05
        %v5208 = vadd.f32 %v5200, 1e-05
        %v5209 = vadd.f32 %v5201, 1e-05
        %v5210 = vadd.f32 %v5202, 1e-05
        %v5211 = vadd.f32 %v5203, 1e-05
        %v5212 = vadd.f32 %v5204, 1e-05
        %v5213 = vadd.f32 %v5205, 1e-05
        %v5214 = vadd.f32 %v5206, 1e-05
        %v5215 = vrsqrt.pop %v5207
        %v5216 = vrsqrt.pop %v5208
        %v5217 = vrsqrt.pop %v5209
        %v5218 = vrsqrt.pop %v5210
        %v5219 = vrsqrt.pop %v5211
        %v5220 = vrsqrt.pop %v5212
        %v5221 = vrsqrt.pop %v5213
        %v5222 = vrsqrt.pop %v5214
        %v5223 = vmul.f32 %v5143, %v5215
        %v5224 = vmul.f32 %v5144, %v5215
        %v5225 = vmul.f32 %v5145, %v5216
        %v5226 = vmul.f32 %v5146, %v5216
        %v5227 = vmul.f32 %v5147, %v5217
        %v5228 = vmul.f32 %v5148, %v5217
        %v5229 = vmul.f32 %v5149, %v5218
        %v5230 = vmul.f32 %v5150, %v5218
        %v5231 = vmul.f32 %v5151, %v5219
        %v5232 = vmul.f32 %v5152, %v5219
        %v5233 = vmul.f32 %v5153, %v5220
        %v5234 = vmul.f32 %v5154, %v5220
        %v5235 = vmul.f32 %v5155, %v5221
        %v5236 = vmul.f32 %v5156, %v5221
        %v5237 = vmul.f32 %v5157, %v5222
        %v5238 = vmul.f32 %v5158, %v5222
        %v5240 = vlaneseq
        %v5241 = vshrl.u32 %v5240, 7
        %v5242 = vsub.s32 0, %v5241
        %v5243 = vrot.slane %v5109, %v5242
        %v5244 = vlaneseq
        %v5245 = vshrl.u32 %v5244, 7
        %v5246 = vsub.s32 1, %v5245
        %v5247 = vrot.slane %v5109, %v5246
        %v5250 = vmul.f32 %v5223, %v5243
        %v5251 = vmul.f32 %v5224, %v5247
        %v5252 = vmul.f32 %v5225, %v5243
        %v5253 = vmul.f32 %v5226, %v5247
        %v5254 = vmul.f32 %v5227, %v5243
        %v5255 = vmul.f32 %v5228, %v5247
        %v5256 = vmul.f32 %v5229, %v5243
        %v5257 = vmul.f32 %v5230, %v5247
        %v5258 = vmul.f32 %v5231, %v5243
        %v5259 = vmul.f32 %v5232, %v5247
        %v5260 = vmul.f32 %v5233, %v5243
        %v5261 = vmul.f32 %v5234, %v5247
        %v5262 = vmul.f32 %v5235, %v5243
        %v5263 = vmul.f32 %v5236, %v5247
        %v5264 = vmul.f32 %v5237, %v5243
        %v5265 = vmul.f32 %v5238, %v5247
        %v5267 = vlaneseq
        %v5268 = vshrl.u32 %v5267, 7
        %v5269 = vsub.s32 0, %v5268
        %v5270 = vrot.slane %v5110, %v5269
        %v5271 = vlaneseq
        %v5272 = vshrl.u32 %v5271, 7
        %v5273 = vsub.s32 1, %v5272
        %v5274 = vrot.slane %v5110, %v5273
        %v5277 = vadd.f32 %v5250, %v5270
        %v5278 = vadd.f32 %v5251, %v5274
        %v5279 = vadd.f32 %v5252, %v5270
        %v5280 = vadd.f32 %v5253, %v5274
        %v5281 = vadd.f32 %v5254, %v5270
        %v5282 = vadd.f32 %v5255, %v5274
        %v5283 = vadd.f32 %v5256, %v5270
        %v5284 = vadd.f32 %v5257, %v5274
        %v5285 = vadd.f32 %v5258, %v5270
        %v5286 = vadd.f32 %v5259, %v5274
        %v5287 = vadd.f32 %v5260, %v5270
        %v5288 = vadd.f32 %v5261, %v5274
        %v5289 = vadd.f32 %v5262, %v5270
        %v5290 = vadd.f32 %v5263, %v5274
        %v5291 = vadd.f32 %v5264, %v5270
        %v5292 = vadd.f32 %v5265, %v5274
        %5293 = vst [vmem:[%s598] sm:$0xff] %v5277
        %5294 = vst [vmem:[%s598 + $0x8] sm:$0xff] %v5278
        %5295 = vst [vmem:[%s598 + $0x10] sm:$0xff] %v5279
        %5296 = vst [vmem:[%s598 + $0x18] sm:$0xff] %v5280
        %5297 = vst [vmem:[%s598 + $0x20] sm:$0xff] %v5281
        %5298 = vst [vmem:[%s598 + $0x28] sm:$0xff] %v5282
        %5299 = vst [vmem:[%s598 + $0x30] sm:$0xff] %v5283
        %5300 = vst [vmem:[%s598 + $0x38] sm:$0xff] %v5284
        %5301 = vst [vmem:[%s598 + $0x40] sm:$0xff] %v5285
        %5302 = vst [vmem:[%s598 + $0x48] sm:$0xff] %v5286
        %5303 = vst [vmem:[%s598 + $0x50] sm:$0xff] %v5287
        %5304 = vst [vmem:[%s598 + $0x58] sm:$0xff] %v5288
        %5305 = vst [vmem:[%s598 + $0x60] sm:$0xff] %v5289
        %5306 = vst [vmem:[%s598 + $0x68] sm:$0xff] %v5290
        %5307 = vst [vmem:[%s598 + $0x70] sm:$0xff] %v5291
        %5308 = vst [vmem:[%s598 + $0x78] sm:$0xff] %v5292
        %s5309 = sand.u32 %s325, 1
        %s5310 = scalar_lea.sflag [#allocation5], %s5309
        %s5311 = sand.u32 %s325, 1
        %s5312 = smul.addr %s5311, 128
        %s5313 = scalar_lea.vmem [#allocation18], %s5312
        %s5314 = sand.u32 %s351, 1
        %s5315 = scalar_lea.sflag [#allocation20], %s5314
        %s5316 = sand.u32 %s351, 1
        %s5317 = smul.addr %s5316, 256
        %s5318 = scalar_lea.vmem [#allocation19], %s5317
        // Predicated region
        $region109: #{encode_layer.1} parent=71 // pred_check
          %p5319 = pneg %p335
        $region110: #{encode_layer.1} parent=71 // pred_check_branch
          %5321 = sbr.rel (%p5319) target = $region112
        $region111: #{encode_layer.1} parent=71 // pred_region
          %s5322 = smul.u32 8, %s39
          %s5324 = ssub.s32 2048, 2048
          %5325 = vsyncadd %s5310, %s5324
          %s5326 = smul.addr %s5322, 2
          %s5327 = smul.addr %s5326, 128
          %s5328 = scalar_lea.hbm %s13, %s5327
          %s5329 = sshll.u32 %s5313, 4
          %s5330 = int_to_ptr.vmem [resolvable:$true] %s5329
          %5335 = dma.vmem_to_hbm [thread:$0]  %s5330, 2048, %s5328, %s5310, 256, 256, 16
        $region112: #{encode_layer.1} parent=71 // pred_fallthru
          _
        // Predicated region
        $region113: #{encode_layer.1} parent=71 // pred_check
          %p5336 = pneg %p361
        $region114: #{encode_layer.1} parent=71 // pred_check_branch
          %5338 = sbr.rel (%p5336) target = $region116
        $region115: #{encode_layer.1} parent=71 // pred_region
          #allocation22 [shape = 'u32[6]{0}', space=smem, size = 0x18, scoped, tag = 'DMA stride descriptor']
          %s5340 = ssub.s32 4096, 4096
          %5341 = vsyncadd %s5315, %s5340
          %s5342 = smul.addr %s39, 8
          %s5343 = smul.addr %s5342, 128
          %s5344 = scalar_lea.hbm %s14, %s5343
          %s5346 = sshll.u32 1, 14
          %s5347 = sxor.u32 4294967295, %s5346
          %s5350 = sshll.u32 7, 18
          %s5351 = sxor.u32 4294967295, %s5350
          %s5352 = sand.u32 0, %s5351
          %s5354 = sor.u32 %s5352, 0
          %s5355 = sshll.u32 %s5318, 4
          %s5356 = int_to_ptr.vmem [resolvable:$true] %s5355
          %5362 = sst [smem:[#allocation22]] 1024
          %s5363 = scalar_lea.smem [#allocation22], 1
          %5364 = sst [smem:[%s5363]] 2048
          %s5365 = scalar_lea.smem [#allocation22], 2
          %5366 = sst [smem:[%s5365]] 8
          %s5367 = scalar_lea.smem [#allocation22], 3
          %5368 = sst [smem:[%s5367]] 128
          %s5369 = scalar_lea.smem [#allocation22], 4
          %5370 = sst [smem:[%s5369]] 128
          %s5371 = scalar_lea.smem [#allocation22], 5
          %5372 = sst [smem:[%s5371]] 8
          %5374 = dma.general %s5356, 4096, %s5344, %s5315, 131072, [#allocation22], %s5354, 0
        $region116: #{encode_layer.1} parent=71 // pred_fallthru
          _
      $region72: #{encode_layer.1} parent=5 // pred_fallthru
        _
      %p5375 = scmp.le.s32.totalorder 2, %s34
      // Predicated region
      $region117: #{encode_layer.1} parent=5 // pred_check
        %p5376 = pneg %p5375
      $region118: #{encode_layer.1} parent=5 // pred_check_branch
        %5378 = sbr.rel (%p5376) target = $region120
      $region119: #{encode_layer.1} parent=5 // pred_region
        %s5379 = ssub.s32 %s34, 2
        // Predicated region
        $region121: #{encode_layer.1} parent=119 // pred_check
          %p5380 = pneg %p341
        $region122: #{encode_layer.1} parent=119 // pred_check_branch
          %5382 = sbr.rel (%p5380) target = $region124
        $region123: #{encode_layer.1} parent=119 // pred_region
          %s5383 = sand.u32 %s326, 1
          %s5384 = scalar_lea.sflag [#allocation5], %s5383
          %s5385 = sand.u32 %s326, 1
          %s5386 = smul.addr %s5385, 128
          %s5387 = scalar_lea.vmem [#allocation18], %s5386
          %5388 = dma.done %s5384, 2048
        $region124: #{encode_layer.1} parent=119 // pred_fallthru
          _
        // Predicated region
        $region125: #{encode_layer.1} parent=119 // pred_check
          %p5389 = pneg %p367
        $region126: #{encode_layer.1} parent=119 // pred_check_branch
          %5391 = sbr.rel (%p5389) target = $region128
        $region127: #{encode_layer.1} parent=119 // pred_region
          %s5392 = sand.u32 %s352, 1
          %s5393 = scalar_lea.sflag [#allocation20], %s5392
          %s5394 = sand.u32 %s352, 1
          %s5395 = smul.addr %s5394, 256
          %s5396 = scalar_lea.vmem [#allocation19], %s5395
          %5397 = dma.done %s5393, 4096
        $region128: #{encode_layer.1} parent=119 // pred_fallthru
          _
      $region120: #{encode_layer.1} parent=5 // pred_fallthru
        _
    $region6: #{encode_layer.1} parent=1 // loop_footer
      %s38 = sadd.s32 1, %s34
    $region7: #{encode_layer.1} parent=1 // loop_footer_branch
      %33 = sbr.rel target = $region3
    $region8: #{encode_layer.1} parent=1 // loop_exit
      _
    %5398 = vsyncpa [#allocation4], 1
    %s5399 = scalar_lea.sflag [#allocation4], 1
    %5400 = vsyncpa %s5399, 1
    %5401 = vsyncpa [#allocation7], 1
    %5402 = vsyncpa [#allocation10], 1
    %5403 = vsyncpa [#allocation13], 1
    %5404 = vsyncpa [#allocation16], 1
    %5405 = vsyncpa [#allocation5], 1
    %s5406 = scalar_lea.sflag [#allocation5], 1
    %5407 = vsyncpa %s5406, 1
    %5408 = vsyncpa [#allocation20], 1
    %s5409 = scalar_lea.sflag [#allocation20], 1
    %5410 = vsyncpa %s5409, 1

</llo_original>
